<compile_context>
chip_gen: v5e
topology: v5e:2x2
jax: 0.10.0
libtpu: 0.0.40
codegen_flags: <defaults>
</compile_context>

<pallas_src>
import functools

import jax
import jax.numpy as jnp
from jax.experimental import pallas as pl
from jax.experimental.pallas import tpu as pltpu

# ---- model dimensions (small demo shapes; seq_length=5000 -> T=16 here) ----
NUM_LAYERS = 2
B = 2
T = 16
IN_CLIN = 5
EMBED = 128
CLIN_OUT = 8
LSTM_IN = 4
HIDDEN = 2
LSTM_FC1 = 128
LSTM_OUT = 8
HEAD_IN = CLIN_OUT + LSTM_OUT     # 16
HEAD_HID = 8


# ----------------------------- Pallas kernel --------------------------------
def _lvonet_kernel(num_layers, seq_len, batch, hidden, lstm_in,
                   clin_ref, eeg_ref, slab_a_ref, slab_b_ref, slab_c_ref,
                   out_ref):
    f32 = jnp.float32
    H = hidden
    G = 4 * H

    # ---- unpack packed parameter slabs with static slices (single loads) ---
    a0 = 0
    w1t = slab_a_ref[a0:a0 + IN_CLIN, :]; a0 += IN_CLIN          # (5, 128)
    b1 = slab_a_ref[a0:a0 + 1, :]; a0 += 1                       # (1, 128)
    wfc1t = slab_a_ref[a0:a0 + HIDDEN, :]; a0 += HIDDEN          # (2, 128)
    bfc1 = slab_a_ref[a0:a0 + 1, :]; a0 += 1                     # (1, 128)
    wl2p = slab_a_ref[a0:a0 + HEAD_HID, :]; a0 += HEAD_HID       # (8, 128) col0
    bl2p = slab_a_ref[a0:a0 + 1, :]; a0 += 1                     # (1, 128) col0

    b0 = 0
    w2fc_t = slab_b_ref[b0:b0 + EMBED, :]; b0 += EMBED           # (128, 16)
    b2bfc = slab_b_ref[b0:b0 + 1, :]; b0 += 1                    # (1, 16)
    wl1t = slab_b_ref[b0:b0 + HEAD_IN, 0:HEAD_HID]; b0 += HEAD_IN  # (16, 8)
    bl1 = slab_b_ref[b0:b0 + 1, 0:HEAD_HID]; b0 += 1             # (1, 8)

    lstm_w = []
    c0 = 0
    for l in range(num_layers):
        in_l = lstm_in if l == 0 else H
        wih_t = slab_c_ref[c0:c0 + in_l, :]; c0 += in_l          # (in_l, 4H)
        whh_t = slab_c_ref[c0:c0 + H, :]; c0 += H                # (H, 4H)
        bias = slab_c_ref[c0:c0 + 1, :]; c0 += 1                 # (1, 4H)  (= bih+bhh)
        lstm_w.append((wih_t, whh_t, bias))

    def vpu_matmul(x, w_t, k):
        # (B, k) @ (k, N) as k broadcast multiply-adds on the VPU (no MXU).
        acc = x[:, 0:1] * w_t[0:1, :]
        for kk in range(1, k):
            acc = acc + x[:, kk:kk + 1] * w_t[kk:kk + 1, :]
        return acc

    # ---- clinical MLP first layer: Linear(5,128) -> ReLU (MXU, off-loop) ---
    clin = clin_ref[...]                                          # (B, 5)
    h_clin = jnp.maximum(
        jnp.dot(clin, w1t, preferred_element_type=f32) + b1, 0.0)  # (B, 128)

    # ---- hoisted layer-0 input projection for ALL timesteps ---------------
    eeg = eeg_ref[...]                                            # (B, T, in)
    wih0_t, whh0_t, bias0 = lstm_w[0]
    gih0 = bias0                                                  # (1, 4H) -> bcast
    for kk in range(lstm_in):
        gih0 = gih0 + eeg[:, :, kk:kk + 1] * wih0_t[kk:kk + 1, :]
    # gih0: (B, T, 4H) = eeg @ Wih0^T + (bih0 + bhh0)

    # ---- LSTM recurrence, fully unrolled (seq_len static & tiny body) ------
    hs = [jnp.zeros((batch, H), f32) for _ in range(num_layers)]
    cs = [jnp.zeros((batch, H), f32) for _ in range(num_layers)]

    def cell(gates, c_prev):
        # one sigmoid + one tanh over the full (B, 4H) gate vreg
        sig = jax.nn.sigmoid(gates)
        th = jnp.tanh(gates)
        i_g = sig[:, 0:H]
        f_g = sig[:, H:2 * H]
        g_g = th[:, 2 * H:3 * H]
        o_g = sig[:, 3 * H:4 * H]
        c_new = f_g * c_prev + i_g * g_g
        h_new = o_g * jnp.tanh(c_new)
        return h_new, c_new

    for t in range(seq_len):
        # layer 0: only the recurrent term is computed in-loop
        gates0 = gih0[:, t, :] + vpu_matmul(hs[0], whh0_t, H)
        hs[0], cs[0] = cell(gates0, cs[0])
        inp = hs[0]
        # layers 1..L-1 (PyTorch gate order i, f, g, o preserved)
        for l in range(1, num_layers):
            wih_t, whh_t, bias = lstm_w[l]
            gates = (vpu_matmul(inp, wih_t, H)
                     + vpu_matmul(hs[l], whh_t, H) + bias)
            hs[l], cs[l] = cell(gates, cs[l])
            inp = hs[l]

    # hn.view(-1, H): layer-major stacking of final hidden states
    hn = jnp.concatenate(hs, axis=0)                              # (L*B, H)

    # ---- LSTM1 head: ReLU -> fc_1(H,128) -> ReLU (K=2 done on the VPU) -----
    o = jnp.maximum(hn, 0.0)
    o = jnp.maximum(vpu_matmul(o, wfc1t, H) + bfc1, 0.0)          # (L*B, 128)

    # ---- merged N=8 projections: [clin@w2 | lstm@wfc] in one MXU matmul ----
    stacked = jnp.concatenate([h_clin, o], axis=0)                # (B+L*B, 128)
    proj = jnp.dot(stacked, w2fc_t, preferred_element_type=f32) + b2bfc
    clin_out = proj[0:batch, 0:CLIN_OUT]                          # (B, 8)
    eeg_out = proj[batch:, CLIN_OUT:CLIN_OUT + LSTM_OUT]          # (L*B, 8)

    # ---- LVONet head: repeat, cat, Linear(16,8)->ReLU->Linear(8,1)->Sigmoid
    if num_layers > 1:
        clin_rep = jnp.concatenate([clin_out] * num_layers, axis=0)
    else:
        clin_rep = clin_out
    x = jnp.concatenate([clin_rep, eeg_out], axis=1)              # (L*B, 16)
    x = jnp.maximum(jnp.dot(x, wl1t, preferred_element_type=f32) + bl1, 0.0)
    # final Linear(8,1) zero-padded to 128 output lanes -> lane-dense store
    y = jnp.dot(x, wl2p, preferred_element_type=f32) + bl2p       # (L*B, 128)
    out_ref[...] = jax.nn.sigmoid(y)


# --------------------- one-time parameter preparation ------------------------
def prepare_params(params, num_layers):
    """Pack all weights (pre-transposed, bias-folded) into 3 f32 slabs.

    Done ONCE at init; the per-call wrapper does no weight transposes/reshapes.
    """
    f32 = jnp.float32

    def row(b):
        return jnp.asarray(b, f32).reshape(1, -1)

    # slab A: lane width = 128
    wl2p = jnp.zeros((HEAD_HID, EMBED), f32).at[:, 0:1].set(params["wl2"].T)
    bl2p = jnp.zeros((1, EMBED), f32).at[0, 0].set(params["bl2"][0])
    slab_a = jnp.concatenate([
        params["w1"].T,            # (5, 128)
        row(params["b1"]),         # (1, 128)
        params["wfc1"].T,          # (2, 128)
        row(params["bfc1"]),       # (1, 128)
        wl2p,                      # (8, 128)  only column 0 meaningful
        bl2p,                      # (1, 128)
    ], axis=0)                     # (18, 128)

    # slab B: lane width = 16  ([w2^T | wfc^T] merged for the fused projection)
    wl1t = jnp.zeros((HEAD_IN, HEAD_IN), f32).at[:, 0:HEAD_HID].set(params["wl1"].T)
    bl1 = jnp.zeros((1, HEAD_IN), f32).at[0, 0:HEAD_HID].set(params["bl1"])
    slab_b = jnp.concatenate([
        jnp.concatenate([params["w2"].T, params["wfc"].T], axis=1),        # (128, 16)
        jnp.concatenate([row(params["b2"]), row(params["bfc"])], axis=1),  # (1, 16)
        wl1t,                      # (16, 16)
        bl1,                       # (1, 16)
    ], axis=0)                     # (146, 16)

    # slab C: lane width = 4*HIDDEN; per layer [Wih^T ; Whh^T ; (bih+bhh)]
    rows = []
    for l in range(num_layers):
        wih, whh, bih, bhh = params["lstm"][l]
        rows += [wih.T, whh.T, row(bih + bhh)]
    slab_c = jnp.concatenate(rows, axis=0)   # (sum(in_l)+L*(H+1), 8)

    return {"slab_a": slab_a, "slab_b": slab_b, "slab_c": slab_c}


# ----------------------------- wrapper (glue) --------------------------------
def lvonet_forward(clinical, eeg, prepped, num_layers):
    """clinical: (B, 5); eeg: (B, T, LSTM_IN) batch-first like PyTorch."""
    batch, seq_len = eeg.shape[0], eeg.shape[1]
    kernel = functools.partial(_lvonet_kernel, num_layers, seq_len, batch,
                               HIDDEN, LSTM_IN)
    vmem = pl.BlockSpec(memory_space=pltpu.MemorySpace.VMEM)
    out_pad = pl.pallas_call(
        kernel,
        out_shape=jax.ShapeDtypeStruct((num_layers * batch, EMBED), jnp.float32),
        in_specs=[vmem] * 5,
        out_specs=vmem,
    )(clinical, eeg, prepped["slab_a"], prepped["slab_b"], prepped["slab_c"])
    # lane-dense (L*B, 128) store in-kernel; the model output is column 0.
    return out_pad[:, :1]


# --------------------------- pure-JAX reference ------------------------------
def lvonet_reference(clinical, eeg, params, num_layers):
    h = jnp.maximum(clinical @ params["w1"].T + params["b1"], 0.0)
    clin_out = h @ params["w2"].T + params["b2"]

    eeg_tm = jnp.transpose(eeg, (1, 0, 2))
    batch = eeg.shape[0]
    hs = [jnp.zeros((batch, HIDDEN), jnp.float32) for _ in range(num_layers)]
    cs = [jnp.zeros((batch, HIDDEN), jnp.float32) for _ in range(num_layers)]
    for t in range(eeg_tm.shape[0]):
        inp = eeg_tm[t]
        for l in range(num_layers):
            wih, whh, bih, bhh = params["lstm"][l]
            gates = inp @ wih.T + hs[l] @ whh.T + bih + bhh
            i_g = jax.nn.sigmoid(gates[:, 0:HIDDEN])
            f_g = jax.nn.sigmoid(gates[:, HIDDEN:2 * HIDDEN])
            g_g = jnp.tanh(gates[:, 2 * HIDDEN:3 * HIDDEN])
            o_g = jax.nn.sigmoid(gates[:, 3 * HIDDEN:4 * HIDDEN])
            cs[l] = f_g * cs[l] + i_g * g_g
            hs[l] = o_g * jnp.tanh(cs[l])
            inp = hs[l]
    hn = jnp.concatenate(hs, axis=0)

    o = jnp.maximum(hn, 0.0)
    o = jnp.maximum(o @ params["wfc1"].T + params["bfc1"], 0.0)
    eeg_out = o @ params["wfc"].T + params["bfc"]

    clin_rep = jnp.tile(clin_out, (num_layers, 1)) if num_layers > 1 else clin_out
    x = jnp.concatenate([clin_rep, eeg_out], axis=1)
    x = jnp.maximum(x @ params["wl1"].T + params["bl1"], 0.0)
    x = x @ params["wl2"].T + params["bl2"]
    return jax.nn.sigmoid(x)


# ----------------------------- deterministic init ----------------------------
def init_params(key, num_layers):
    def uniform(key, shape, fan_in):
        k = 1.0 / jnp.sqrt(jnp.float32(fan_in))
        return jax.random.uniform(key, shape, jnp.float32, -k, k)

    keys = iter(jax.random.split(key, 64))
    p = {
        "w1": uniform(next(keys), (EMBED, IN_CLIN), IN_CLIN),
        "b1": uniform(next(keys), (EMBED,), IN_CLIN),
        "w2": uniform(next(keys), (CLIN_OUT, EMBED), EMBED),
        "b2": uniform(next(keys), (CLIN_OUT,), EMBED),
        "lstm": [],
        "wfc1": uniform(next(keys), (LSTM_FC1, HIDDEN), HIDDEN),
        "bfc1": uniform(next(keys), (LSTM_FC1,), HIDDEN),
        "wfc": uniform(next(keys), (LSTM_OUT, LSTM_FC1), LSTM_FC1),
        "bfc": uniform(next(keys), (LSTM_OUT,), LSTM_FC1),
        "wl1": uniform(next(keys), (HEAD_HID, HEAD_IN), HEAD_IN),
        "bl1": uniform(next(keys), (HEAD_HID,), HEAD_IN),
        "wl2": uniform(next(keys), (1, HEAD_HID), HEAD_HID),
        "bl2": uniform(next(keys), (1,), HEAD_HID),
    }
    for l in range(num_layers):
        in_l = LSTM_IN if l == 0 else HIDDEN
        p["lstm"].append((
            uniform(next(keys), (4 * HIDDEN, in_l), HIDDEN),     # W_ih
            uniform(next(keys), (4 * HIDDEN, HIDDEN), HIDDEN),   # W_hh
            uniform(next(keys), (4 * HIDDEN,), HIDDEN),          # b_ih
            uniform(next(keys), (4 * HIDDEN,), HIDDEN),          # b_hh
        ))
    return p


# ----------------------------------- main ------------------------------------
if __name__ == "__main__":
    key = jax.random.PRNGKey(0)
    k_clin, k_eeg, k_par = jax.random.split(key, 3)

    clinical = jax.random.normal(k_clin, (B, IN_CLIN), jnp.float32)
    eeg = jax.random.normal(k_eeg, (B, T, LSTM_IN), jnp.float32)
    params = init_params(k_par, NUM_LAYERS)

    # one-time parameter packing (not on the per-call path)
    prepped = prepare_params(params, NUM_LAYERS)

    out = lvonet_forward(clinical, eeg, prepped, NUM_LAYERS)
    out = jax.block_until_ready(out)

    ref = lvonet_reference(clinical, eeg, params, NUM_LAYERS)
    assert out.shape == (NUM_LAYERS * B, 1), out.shape
    assert jnp.allclose(out, ref, atol=2e-5, rtol=1e-4), (out, ref)

    print("KERNEL_OK")
</pallas_src>

<mosaic_0001>
module attributes {stable_mosaic.version = 11 : i64} {
  func.func @_lvonet_kernel(%arg0: memref<2x5xf32, #tpu.memory_space<vmem>>, %arg1: memref<2x16x4xf32, #tpu.memory_space<vmem>>, %arg2: memref<18x128xf32, #tpu.memory_space<vmem>>, %arg3: memref<146x16xf32, #tpu.memory_space<vmem>>, %arg4: memref<12x8xf32, #tpu.memory_space<vmem>>, %arg5: memref<4x128xf32, #tpu.memory_space<vmem>>) attributes {dimension_semantics = [], scalar_prefetch = 0 : i64, scratch_operands = 0 : i64, tpu.core_type = #tpu.core_type<tc>} {
    %c0 = arith.constant 0 : index
    %c0_0 = arith.constant 0 : index
    %0 = vector.load %arg2[%c0, %c0_0] : memref<18x128xf32, #tpu.memory_space<vmem>>, vector<5x128xf32>
    %c5 = arith.constant 5 : index
    %c0_1 = arith.constant 0 : index
    %1 = vector.load %arg2[%c5, %c0_1] : memref<18x128xf32, #tpu.memory_space<vmem>>, vector<1x128xf32>
    %c6 = arith.constant 6 : index
    %c0_2 = arith.constant 0 : index
    %2 = vector.load %arg2[%c6, %c0_2] : memref<18x128xf32, #tpu.memory_space<vmem>>, vector<2x128xf32>
    %c8 = arith.constant 8 : index
    %c0_3 = arith.constant 0 : index
    %3 = vector.load %arg2[%c8, %c0_3] : memref<18x128xf32, #tpu.memory_space<vmem>>, vector<1x128xf32>
    %c9 = arith.constant 9 : index
    %c0_4 = arith.constant 0 : index
    %4 = vector.load %arg2[%c9, %c0_4] : memref<18x128xf32, #tpu.memory_space<vmem>>, vector<8x128xf32>
    %c17 = arith.constant 17 : index
    %c0_5 = arith.constant 0 : index
    %5 = vector.load %arg2[%c17, %c0_5] : memref<18x128xf32, #tpu.memory_space<vmem>>, vector<1x128xf32>
    %c0_6 = arith.constant 0 : index
    %c0_7 = arith.constant 0 : index
    %6 = vector.load %arg3[%c0_6, %c0_7] : memref<146x16xf32, #tpu.memory_space<vmem>>, vector<128x16xf32>
    %c128 = arith.constant 128 : index
    %c0_8 = arith.constant 0 : index
    %7 = vector.load %arg3[%c128, %c0_8] : memref<146x16xf32, #tpu.memory_space<vmem>>, vector<1x16xf32>
    %c129 = arith.constant 129 : index
    %c0_9 = arith.constant 0 : index
    %8 = vector.load %arg3[%c129, %c0_9] : memref<146x16xf32, #tpu.memory_space<vmem>>, vector<16x8xf32>
    %c145 = arith.constant 145 : index
    %c0_10 = arith.constant 0 : index
    %9 = vector.load %arg3[%c145, %c0_10] : memref<146x16xf32, #tpu.memory_space<vmem>>, vector<1x8xf32>
    %c0_11 = arith.constant 0 : index
    %c0_12 = arith.constant 0 : index
    %10 = vector.load %arg4[%c0_11, %c0_12] : memref<12x8xf32, #tpu.memory_space<vmem>>, vector<4x8xf32>
    %c4 = arith.constant 4 : index
    %c0_13 = arith.constant 0 : index
    %11 = vector.load %arg4[%c4, %c0_13] : memref<12x8xf32, #tpu.memory_space<vmem>>, vector<2x8xf32>
    %c6_14 = arith.constant 6 : index
    %c0_15 = arith.constant 0 : index
    %12 = vector.load %arg4[%c6_14, %c0_15] : memref<12x8xf32, #tpu.memory_space<vmem>>, vector<1x8xf32>
    %c7 = arith.constant 7 : index
    %c0_16 = arith.constant 0 : index
    %13 = vector.load %arg4[%c7, %c0_16] : memref<12x8xf32, #tpu.memory_space<vmem>>, vector<2x8xf32>
    %c9_17 = arith.constant 9 : index
    %c0_18 = arith.constant 0 : index
    %14 = vector.load %arg4[%c9_17, %c0_18] : memref<12x8xf32, #tpu.memory_space<vmem>>, vector<2x8xf32>
    %c11 = arith.constant 11 : index
    %c0_19 = arith.constant 0 : index
    %15 = vector.load %arg4[%c11, %c0_19] : memref<12x8xf32, #tpu.memory_space<vmem>>, vector<1x8xf32>
    %c0_20 = arith.constant 0 : index
    %c0_21 = arith.constant 0 : index
    %16 = vector.load %arg0[%c0_20, %c0_21] : memref<2x5xf32, #tpu.memory_space<vmem>>, vector<2x5xf32>
    %cst = arith.constant dense<0.000000e+00> : vector<2x128xf32>
    %17 = tpu.matmul %16, %0, %cst {dimension_numbers = #tpu.dot_dimension_numbers<[1], [0], [0], [1], [0, 0, 1, 1], [], []>} : vector<2x5xf32>, vector<5x128xf32>, vector<2x128xf32> -> vector<2x128xf32>
    %18 = vector.broadcast %1 : vector<1x128xf32> to vector<2x128xf32>
    %19 = arith.addf %17, %18 : vector<2x128xf32>
    %cst_22 = arith.constant 0.000000e+00 : f32
    %20 = vector.broadcast %cst_22 : f32 to vector<2x128xf32>
    %21 = arith.maximumf %19, %20 : vector<2x128xf32>
    %c0_23 = arith.constant 0 : index
    %c0_24 = arith.constant 0 : index
    %c0_25 = arith.constant 0 : index
    %22 = vector.load %arg1[%c0_23, %c0_24, %c0_25] : memref<2x16x4xf32, #tpu.memory_space<vmem>>, vector<2x16x4xf32>
    %23 = vector.extract_strided_slice %22 {offsets = [0, 0, 0], sizes = [2, 16, 1], strides = [1, 1, 1]} : vector<2x16x4xf32> to vector<2x16x1xf32>
    %24 = vector.extract_strided_slice %10 {offsets = [0, 0], sizes = [1, 8], strides = [1, 1]} : vector<4x8xf32> to vector<1x8xf32>
    %25 = vector.shape_cast %24 : vector<1x8xf32> to vector<1x1x8xf32>
    %26 = vector.broadcast %23 : vector<2x16x1xf32> to vector<2x16x8xf32>
    %27 = vector.broadcast %25 : vector<1x1x8xf32> to vector<2x16x8xf32>
    %28 = arith.mulf %26, %27 : vector<2x16x8xf32>
    %29 = vector.shape_cast %12 : vector<1x8xf32> to vector<1x1x8xf32>
    %30 = vector.broadcast %29 : vector<1x1x8xf32> to vector<2x16x8xf32>
    %31 = arith.addf %30, %28 : vector<2x16x8xf32>
    %32 = vector.extract_strided_slice %22 {offsets = [0, 0, 1], sizes = [2, 16, 1], strides = [1, 1, 1]} : vector<2x16x4xf32> to vector<2x16x1xf32>
    %33 = vector.extract_strided_slice %10 {offsets = [1, 0], sizes = [1, 8], strides = [1, 1]} : vector<4x8xf32> to vector<1x8xf32>
    %34 = vector.shape_cast %33 : vector<1x8xf32> to vector<1x1x8xf32>
    %35 = vector.broadcast %32 : vector<2x16x1xf32> to vector<2x16x8xf32>
    %36 = vector.broadcast %34 : vector<1x1x8xf32> to vector<2x16x8xf32>
    %37 = arith.mulf %35, %36 : vector<2x16x8xf32>
    %38 = arith.addf %31, %37 : vector<2x16x8xf32>
    %39 = vector.extract_strided_slice %22 {offsets = [0, 0, 2], sizes = [2, 16, 1], strides = [1, 1, 1]} : vector<2x16x4xf32> to vector<2x16x1xf32>
    %40 = vector.extract_strided_slice %10 {offsets = [2, 0], sizes = [1, 8], strides = [1, 1]} : vector<4x8xf32> to vector<1x8xf32>
    %41 = vector.shape_cast %40 : vector<1x8xf32> to vector<1x1x8xf32>
    %42 = vector.broadcast %39 : vector<2x16x1xf32> to vector<2x16x8xf32>
    %43 = vector.broadcast %41 : vector<1x1x8xf32> to vector<2x16x8xf32>
    %44 = arith.mulf %42, %43 : vector<2x16x8xf32>
    %45 = arith.addf %38, %44 : vector<2x16x8xf32>
    %46 = vector.extract_strided_slice %22 {offsets = [0, 0, 3], sizes = [2, 16, 1], strides = [1, 1, 1]} : vector<2x16x4xf32> to vector<2x16x1xf32>
    %47 = vector.extract_strided_slice %10 {offsets = [3, 0], sizes = [1, 8], strides = [1, 1]} : vector<4x8xf32> to vector<1x8xf32>
    %48 = vector.shape_cast %47 : vector<1x8xf32> to vector<1x1x8xf32>
    %49 = vector.broadcast %46 : vector<2x16x1xf32> to vector<2x16x8xf32>
    %50 = vector.broadcast %48 : vector<1x1x8xf32> to vector<2x16x8xf32>
    %51 = arith.mulf %49, %50 : vector<2x16x8xf32>
    %52 = arith.addf %45, %51 : vector<2x16x8xf32>
    %cst_26 = arith.constant 0.000000e+00 : f32
    %53 = vector.broadcast %cst_26 : f32 to vector<2x2xf32>
    %cst_27 = arith.constant 0.000000e+00 : f32
    %54 = vector.broadcast %cst_27 : f32 to vector<2x2xf32>
    %cst_28 = arith.constant 0.000000e+00 : f32
    %55 = vector.broadcast %cst_28 : f32 to vector<2x2xf32>
    %cst_29 = arith.constant 0.000000e+00 : f32
    %56 = vector.broadcast %cst_29 : f32 to vector<2x2xf32>
    %57 = vector.extract_strided_slice %52 {offsets = [0, 0, 0], sizes = [2, 1, 8], strides = [1, 1, 1]} : vector<2x16x8xf32> to vector<2x1x8xf32>
    %58 = vector.shape_cast %57 : vector<2x1x8xf32> to vector<2x8xf32>
    %59 = vector.extract_strided_slice %53 {offsets = [0, 0], sizes = [2, 1], strides = [1, 1]} : vector<2x2xf32> to vector<2x1xf32>
    %60 = vector.extract_strided_slice %11 {offsets = [0, 0], sizes = [1, 8], strides = [1, 1]} : vector<2x8xf32> to vector<1x8xf32>
    %61 = vector.broadcast %59 : vector<2x1xf32> to vector<2x8xf32>
    %62 = vector.broadcast %60 : vector<1x8xf32> to vector<2x8xf32>
    %63 = arith.mulf %61, %62 : vector<2x8xf32>
    %64 = vector.extract_strided_slice %53 {offsets = [0, 1], sizes = [2, 1], strides = [1, 1]} : vector<2x2xf32> to vector<2x1xf32>
    %65 = vector.extract_strided_slice %11 {offsets = [1, 0], sizes = [1, 8], strides = [1, 1]} : vector<2x8xf32> to vector<1x8xf32>
    %66 = vector.broadcast %64 : vector<2x1xf32> to vector<2x8xf32>
    %67 = vector.broadcast %65 : vector<1x8xf32> to vector<2x8xf32>
    %68 = arith.mulf %66, %67 : vector<2x8xf32>
    %69 = arith.addf %63, %68 : vector<2x8xf32>
    %70 = arith.addf %58, %69 : vector<2x8xf32>
    %71 = arith.negf %70 : vector<2x8xf32>
    %72 = math.exp %71 : vector<2x8xf32>
    %cst_30 = arith.constant 1.000000e+00 : f32
    %73 = vector.broadcast %cst_30 : f32 to vector<2x8xf32>
    %74 = arith.addf %73, %72 : vector<2x8xf32>
    %75 = arith.divf %73, %74 : vector<2x8xf32>
    %76 = math.tanh %70 : vector<2x8xf32>
    %77 = vector.extract_strided_slice %75 {offsets = [0, 0], sizes = [2, 2], strides = [1, 1]} : vector<2x8xf32> to vector<2x2xf32>
    %78 = vector.extract_strided_slice %75 {offsets = [0, 2], sizes = [2, 2], strides = [1, 1]} : vector<2x8xf32> to vector<2x2xf32>
    %79 = vector.extract_strided_slice %76 {offsets = [0, 4], sizes = [2, 2], strides = [1, 1]} : vector<2x8xf32> to vector<2x2xf32>
    %80 = vector.extract_strided_slice %75 {offsets = [0, 6], sizes = [2, 2], strides = [1, 1]} : vector<2x8xf32> to vector<2x2xf32>
    %81 = arith.mulf %78, %55 : vector<2x2xf32>
    %82 = arith.mulf %77, %79 : vector<2x2xf32>
    %83 = arith.addf %81, %82 : vector<2x2xf32>
    %84 = math.tanh %83 : vector<2x2xf32>
    %85 = arith.mulf %80, %84 : vector<2x2xf32>
    %86 = vector.extract_strided_slice %85 {offsets = [0, 0], sizes = [2, 1], strides = [1, 1]} : vector<2x2xf32> to vector<2x1xf32>
    %87 = vector.extract_strided_slice %13 {offsets = [0, 0], sizes = [1, 8], strides = [1, 1]} : vector<2x8xf32> to vector<1x8xf32>
    %88 = vector.broadcast %86 : vector<2x1xf32> to vector<2x8xf32>
    %89 = vector.broadcast %87 : vector<1x8xf32> to vector<2x8xf32>
    %90 = arith.mulf %88, %89 : vector<2x8xf32>
    %91 = vector.extract_strided_slice %85 {offsets = [0, 1], sizes = [2, 1], strides = [1, 1]} : vector<2x2xf32> to vector<2x1xf32>
    %92 = vector.extract_strided_slice %13 {offsets = [1, 0], sizes = [1, 8], strides = [1, 1]} : vector<2x8xf32> to vector<1x8xf32>
    %93 = vector.broadcast %91 : vector<2x1xf32> to vector<2x8xf32>
    %94 = vector.broadcast %92 : vector<1x8xf32> to vector<2x8xf32>
    %95 = arith.mulf %93, %94 : vector<2x8xf32>
    %96 = arith.addf %90, %95 : vector<2x8xf32>
    %97 = vector.extract_strided_slice %54 {offsets = [0, 0], sizes = [2, 1], strides = [1, 1]} : vector<2x2xf32> to vector<2x1xf32>
    %98 = vector.extract_strided_slice %14 {offsets = [0, 0], sizes = [1, 8], strides = [1, 1]} : vector<2x8xf32> to vector<1x8xf32>
    %99 = vector.broadcast %97 : vector<2x1xf32> to vector<2x8xf32>
    %100 = vector.broadcast %98 : vector<1x8xf32> to vector<2x8xf32>
    %101 = arith.mulf %99, %100 : vector<2x8xf32>
    %102 = vector.extract_strided_slice %54 {offsets = [0, 1], sizes = [2, 1], strides = [1, 1]} : vector<2x2xf32> to vector<2x1xf32>
    %103 = vector.extract_strided_slice %14 {offsets = [1, 0], sizes = [1, 8], strides = [1, 1]} : vector<2x8xf32> to vector<1x8xf32>
    %104 = vector.broadcast %102 : vector<2x1xf32> to vector<2x8xf32>
    %105 = vector.broadcast %103 : vector<1x8xf32> to vector<2x8xf32>
    %106 = arith.mulf %104, %105 : vector<2x8xf32>
    %107 = arith.addf %101, %106 : vector<2x8xf32>
    %108 = arith.addf %96, %107 : vector<2x8xf32>
    %109 = vector.broadcast %15 : vector<1x8xf32> to vector<2x8xf32>
    %110 = arith.addf %108, %109 : vector<2x8xf32>
    %111 = arith.negf %110 : vector<2x8xf32>
    %112 = math.exp %111 : vector<2x8xf32>
    %cst_31 = arith.constant 1.000000e+00 : f32
    %113 = vector.broadcast %cst_31 : f32 to vector<2x8xf32>
    %114 = arith.addf %113, %112 : vector<2x8xf32>
    %115 = arith.divf %113, %114 : vector<2x8xf32>
    %116 = math.tanh %110 : vector<2x8xf32>
    %117 = vector.extract_strided_slice %115 {offsets = [0, 0], sizes = [2, 2], strides = [1, 1]} : vector<2x8xf32> to vector<2x2xf32>
    %118 = vector.extract_strided_slice %115 {offsets = [0, 2], sizes = [2, 2], strides = [1, 1]} : vector<2x8xf32> to vector<2x2xf32>
    %119 = vector.extract_strided_slice %116 {offsets = [0, 4], sizes = [2, 2], strides = [1, 1]} : vector<2x8xf32> to vector<2x2xf32>
    %120 = vector.extract_strided_slice %115 {offsets = [0, 6], sizes = [2, 2], strides = [1, 1]} : vector<2x8xf32> to vector<2x2xf32>
    %121 = arith.mulf %118, %56 : vector<2x2xf32>
    %122 = arith.mulf %117, %119 : vector<2x2xf32>
    %123 = arith.addf %121, %122 : vector<2x2xf32>
    %124 = math.tanh %123 : vector<2x2xf32>
    %125 = arith.mulf %120, %124 : vector<2x2xf32>
    %126 = vector.extract_strided_slice %52 {offsets = [0, 1, 0], sizes = [2, 1, 8], strides = [1, 1, 1]} : vector<2x16x8xf32> to vector<2x1x8xf32>
    %127 = vector.shape_cast %126 : vector<2x1x8xf32> to vector<2x8xf32>
    %128 = vector.extract_strided_slice %85 {offsets = [0, 0], sizes = [2, 1], strides = [1, 1]} : vector<2x2xf32> to vector<2x1xf32>
    %129 = vector.extract_strided_slice %11 {offsets = [0, 0], sizes = [1, 8], strides = [1, 1]} : vector<2x8xf32> to vector<1x8xf32>
    %130 = vector.broadcast %128 : vector<2x1xf32> to vector<2x8xf32>
    %131 = vector.broadcast %129 : vector<1x8xf32> to vector<2x8xf32>
    %132 = arith.mulf %130, %131 : vector<2x8xf32>
    %133 = vector.extract_strided_slice %85 {offsets = [0, 1], sizes = [2, 1], strides = [1, 1]} : vector<2x2xf32> to vector<2x1xf32>
    %134 = vector.extract_strided_slice %11 {offsets = [1, 0], sizes = [1, 8], strides = [1, 1]} : vector<2x8xf32> to vector<1x8xf32>
    %135 = vector.broadcast %133 : vector<2x1xf32> to vector<2x8xf32>
    %136 = vector.broadcast %134 : vector<1x8xf32> to vector<2x8xf32>
    %137 = arith.mulf %135, %136 : vector<2x8xf32>
    %138 = arith.addf %132, %137 : vector<2x8xf32>
    %139 = arith.addf %127, %138 : vector<2x8xf32>
    %140 = arith.negf %139 : vector<2x8xf32>
    %141 = math.exp %140 : vector<2x8xf32>
    %cst_32 = arith.constant 1.000000e+00 : f32
    %142 = vector.broadcast %cst_32 : f32 to vector<2x8xf32>
    %143 = arith.addf %142, %141 : vector<2x8xf32>
    %144 = arith.divf %142, %143 : vector<2x8xf32>
    %145 = math.tanh %139 : vector<2x8xf32>
    %146 = vector.extract_strided_slice %144 {offsets = [0, 0], sizes = [2, 2], strides = [1, 1]} : vector<2x8xf32> to vector<2x2xf32>
    %147 = vector.extract_strided_slice %144 {offsets = [0, 2], sizes = [2, 2], strides = [1, 1]} : vector<2x8xf32> to vector<2x2xf32>
    %148 = vector.extract_strided_slice %145 {offsets = [0, 4], sizes = [2, 2], strides = [1, 1]} : vector<2x8xf32> to vector<2x2xf32>
    %149 = vector.extract_strided_slice %144 {offsets = [0, 6], sizes = [2, 2], strides = [1, 1]} : vector<2x8xf32> to vector<2x2xf32>
    %150 = arith.mulf %147, %83 : vector<2x2xf32>
    %151 = arith.mulf %146, %148 : vector<2x2xf32>
    %152 = arith.addf %150, %151 : vector<2x2xf32>
    %153 = math.tanh %152 : vector<2x2xf32>
    %154 = arith.mulf %149, %153 : vector<2x2xf32>
    %155 = vector.extract_strided_slice %154 {offsets = [0, 0], sizes = [2, 1], strides = [1, 1]} : vector<2x2xf32> to vector<2x1xf32>
    %156 = vector.extract_strided_slice %13 {offsets = [0, 0], sizes = [1, 8], strides = [1, 1]} : vector<2x8xf32> to vector<1x8xf32>
    %157 = vector.broadcast %155 : vector<2x1xf32> to vector<2x8xf32>
    %158 = vector.broadcast %156 : vector<1x8xf32> to vector<2x8xf32>
    %159 = arith.mulf %157, %158 : vector<2x8xf32>
    %160 = vector.extract_strided_slice %154 {offsets = [0, 1], sizes = [2, 1], strides = [1, 1]} : vector<2x2xf32> to vector<2x1xf32>
    %161 = vector.extract_strided_slice %13 {offsets = [1, 0], sizes = [1, 8], strides = [1, 1]} : vector<2x8xf32> to vector<1x8xf32>
    %162 = vector.broadcast %160 : vector<2x1xf32> to vector<2x8xf32>
    %163 = vector.broadcast %161 : vector<1x8xf32> to vector<2x8xf32>
    %164 = arith.mulf %162, %163 : vector<2x8xf32>
    %165 = arith.addf %159, %164 : vector<2x8xf32>
    %166 = vector.extract_strided_slice %125 {offsets = [0, 0], sizes = [2, 1], strides = [1, 1]} : vector<2x2xf32> to vector<2x1xf32>
    %167 = vector.extract_strided_slice %14 {offsets = [0, 0], sizes = [1, 8], strides = [1, 1]} : vector<2x8xf32> to vector<1x8xf32>
    %168 = vector.broadcast %166 : vector<2x1xf32> to vector<2x8xf32>
    %169 = vector.broadcast %167 : vector<1x8xf32> to vector<2x8xf32>
    %170 = arith.mulf %168, %169 : vector<2x8xf32>
    %171 = vector.extract_strided_slice %125 {offsets = [0, 1], sizes = [2, 1], strides = [1, 1]} : vector<2x2xf32> to vector<2x1xf32>
    %172 = vector.extract_strided_slice %14 {offsets = [1, 0], sizes = [1, 8], strides = [1, 1]} : vector<2x8xf32> to vector<1x8xf32>
    %173 = vector.broadcast %171 : vector<2x1xf32> to vector<2x8xf32>
    %174 = vector.broadcast %172 : vector<1x8xf32> to vector<2x8xf32>
    %175 = arith.mulf %173, %174 : vector<2x8xf32>
    %176 = arith.addf %170, %175 : vector<2x8xf32>
    %177 = arith.addf %165, %176 : vector<2x8xf32>
    %178 = vector.broadcast %15 : vector<1x8xf32> to vector<2x8xf32>
    %179 = arith.addf %177, %178 : vector<2x8xf32>
    %180 = arith.negf %179 : vector<2x8xf32>
    %181 = math.exp %180 : vector<2x8xf32>
    %cst_33 = arith.constant 1.000000e+00 : f32
    %182 = vector.broadcast %cst_33 : f32 to vector<2x8xf32>
    %183 = arith.addf %182, %181 : vector<2x8xf32>
    %184 = arith.divf %182, %183 : vector<2x8xf32>
    %185 = math.tanh %179 : vector<2x8xf32>
    %186 = vector.extract_strided_slice %184 {offsets = [0, 0], sizes = [2, 2], strides = [1, 1]} : vector<2x8xf32> to vector<2x2xf32>
    %187 = vector.extract_strided_slice %184 {offsets = [0, 2], sizes = [2, 2], strides = [1, 1]} : vector<2x8xf32> to vector<2x2xf32>
    %188 = vector.extract_strided_slice %185 {offsets = [0, 4], sizes = [2, 2], strides = [1, 1]} : vector<2x8xf32> to vector<2x2xf32>
    %189 = vector.extract_strided_slice %184 {offsets = [0, 6], sizes = [2, 2], strides = [1, 1]} : vector<2x8xf32> to vector<2x2xf32>
    %190 = arith.mulf %187, %123 : vector<2x2xf32>
    %191 = arith.mulf %186, %188 : vector<2x2xf32>
    %192 = arith.addf %190, %191 : vector<2x2xf32>
    %193 = math.tanh %192 : vector<2x2xf32>
    %194 = arith.mulf %189, %193 : vector<2x2xf32>
    %195 = vector.extract_strided_slice %52 {offsets = [0, 2, 0], sizes = [2, 1, 8], strides = [1, 1, 1]} : vector<2x16x8xf32> to vector<2x1x8xf32>
    %196 = vector.shape_cast %195 : vector<2x1x8xf32> to vector<2x8xf32>
    %197 = vector.extract_strided_slice %154 {offsets = [0, 0], sizes = [2, 1], strides = [1, 1]} : vector<2x2xf32> to vector<2x1xf32>
    %198 = vector.extract_strided_slice %11 {offsets = [0, 0], sizes = [1, 8], strides = [1, 1]} : vector<2x8xf32> to vector<1x8xf32>
    %199 = vector.broadcast %197 : vector<2x1xf32> to vector<2x8xf32>
    %200 = vector.broadcast %198 : vector<1x8xf32> to vector<2x8xf32>
    %201 = arith.mulf %199, %200 : vector<2x8xf32>
    %202 = vector.extract_strided_slice %154 {offsets = [0, 1], sizes = [2, 1], strides = [1, 1]} : vector<2x2xf32> to vector<2x1xf32>
    %203 = vector.extract_strided_slice %11 {offsets = [1, 0], sizes = [1, 8], strides = [1, 1]} : vector<2x8xf32> to vector<1x8xf32>
    %204 = vector.broadcast %202 : vector<2x1xf32> to vector<2x8xf32>
    %205 = vector.broadcast %203 : vector<1x8xf32> to vector<2x8xf32>
    %206 = arith.mulf %204, %205 : vector<2x8xf32>
    %207 = arith.addf %201, %206 : vector<2x8xf32>
    %208 = arith.addf %196, %207 : vector<2x8xf32>
    %209 = arith.negf %208 : vector<2x8xf32>
    %210 = math.exp %209 : vector<2x8xf32>
    %cst_34 = arith.constant 1.000000e+00 : f32
    %211 = vector.broadcast %cst_34 : f32 to vector<2x8xf32>
    %212 = arith.addf %211, %210 : vector<2x8xf32>
    %213 = arith.divf %211, %212 : vector<2x8xf32>
    %214 = math.tanh %208 : vector<2x8xf32>
    %215 = vector.extract_strided_slice %213 {offsets = [0, 0], sizes = [2, 2], strides = [1, 1]} : vector<2x8xf32> to vector<2x2xf32>
    %216 = vector.extract_strided_slice %213 {offsets = [0, 2], sizes = [2, 2], strides = [1, 1]} : vector<2x8xf32> to vector<2x2xf32>
    %217 = vector.extract_strided_slice %214 {offsets = [0, 4], sizes = [2, 2], strides = [1, 1]} : vector<2x8xf32> to vector<2x2xf32>
    %218 = vector.extract_strided_slice %213 {offsets = [0, 6], sizes = [2, 2], strides = [1, 1]} : vector<2x8xf32> to vector<2x2xf32>
    %219 = arith.mulf %216, %152 : vector<2x2xf32>
    %220 = arith.mulf %215, %217 : vector<2x2xf32>
    %221 = arith.addf %219, %220 : vector<2x2xf32>
    %222 = math.tanh %221 : vector<2x2xf32>
    %223 = arith.mulf %218, %222 : vector<2x2xf32>
    %224 = vector.extract_strided_slice %223 {offsets = [0, 0], sizes = [2, 1], strides = [1, 1]} : vector<2x2xf32> to vector<2x1xf32>
    %225 = vector.extract_strided_slice %13 {offsets = [0, 0], sizes = [1, 8], strides = [1, 1]} : vector<2x8xf32> to vector<1x8xf32>
    %226 = vector.broadcast %224 : vector<2x1xf32> to vector<2x8xf32>
    %227 = vector.broadcast %225 : vector<1x8xf32> to vector<2x8xf32>
    %228 = arith.mulf %226, %227 : vector<2x8xf32>
    %229 = vector.extract_strided_slice %223 {offsets = [0, 1], sizes = [2, 1], strides = [1, 1]} : vector<2x2xf32> to vector<2x1xf32>
    %230 = vector.extract_strided_slice %13 {offsets = [1, 0], sizes = [1, 8], strides = [1, 1]} : vector<2x8xf32> to vector<1x8xf32>
    %231 = vector.broadcast %229 : vector<2x1xf32> to vector<2x8xf32>
    %232 = vector.broadcast %230 : vector<1x8xf32> to vector<2x8xf32>
    %233 = arith.mulf %231, %232 : vector<2x8xf32>
    %234 = arith.addf %228, %233 : vector<2x8xf32>
    %235 = vector.extract_strided_slice %194 {offsets = [0, 0], sizes = [2, 1], strides = [1, 1]} : vector<2x2xf32> to vector<2x1xf32>
    %236 = vector.extract_strided_slice %14 {offsets = [0, 0], sizes = [1, 8], strides = [1, 1]} : vector<2x8xf32> to vector<1x8xf32>
    %237 = vector.broadcast %235 : vector<2x1xf32> to vector<2x8xf32>
    %238 = vector.broadcast %236 : vector<1x8xf32> to vector<2x8xf32>
    %239 = arith.mulf %237, %238 : vector<2x8xf32>
    %240 = vector.extract_strided_slice %194 {offsets = [0, 1], sizes = [2, 1], strides = [1, 1]} : vector<2x2xf32> to vector<2x1xf32>
    %241 = vector.extract_strided_slice %14 {offsets = [1, 0], sizes = [1, 8], strides = [1, 1]} : vector<2x8xf32> to vector<1x8xf32>
    %242 = vector.broadcast %240 : vector<2x1xf32> to vector<2x8xf32>
    %243 = vector.broadcast %241 : vector<1x8xf32> to vector<2x8xf32>
    %244 = arith.mulf %242, %243 : vector<2x8xf32>
    %245 = arith.addf %239, %244 : vector<2x8xf32>
    %246 = arith.addf %234, %245 : vector<2x8xf32>
    %247 = vector.broadcast %15 : vector<1x8xf32> to vector<2x8xf32>
    %248 = arith.addf %246, %247 : vector<2x8xf32>
    %249 = arith.negf %248 : vector<2x8xf32>
    %250 = math.exp %249 : vector<2x8xf32>
    %cst_35 = arith.constant 1.000000e+00 : f32
    %251 = vector.broadcast %cst_35 : f32 to vector<2x8xf32>
    %252 = arith.addf %251, %250 : vector<2x8xf32>
    %253 = arith.divf %251, %252 : vector<2x8xf32>
    %254 = math.tanh %248 : vector<2x8xf32>
    %255 = vector.extract_strided_slice %253 {offsets = [0, 0], sizes = [2, 2], strides = [1, 1]} : vector<2x8xf32> to vector<2x2xf32>
    %256 = vector.extract_strided_slice %253 {offsets = [0, 2], sizes = [2, 2], strides = [1, 1]} : vector<2x8xf32> to vector<2x2xf32>
    %257 = vector.extract_strided_slice %254 {offsets = [0, 4], sizes = [2, 2], strides = [1, 1]} : vector<2x8xf32> to vector<2x2xf32>
    %258 = vector.extract_strided_slice %253 {offsets = [0, 6], sizes = [2, 2], strides = [1, 1]} : vector<2x8xf32> to vector<2x2xf32>
    %259 = arith.mulf %256, %192 : vector<2x2xf32>
    %260 = arith.mulf %255, %257 : vector<2x2xf32>
    %261 = arith.addf %259, %260 : vector<2x2xf32>
    %262 = math.tanh %261 : vector<2x2xf32>
    %263 = arith.mulf %258, %262 : vector<2x2xf32>
    %264 = vector.extract_strided_slice %52 {offsets = [0, 3, 0], sizes = [2, 1, 8], strides = [1, 1, 1]} : vector<2x16x8xf32> to vector<2x1x8xf32>
    %265 = vector.shape_cast %264 : vector<2x1x8xf32> to vector<2x8xf32>
    %266 = vector.extract_strided_slice %223 {offsets = [0, 0], sizes = [2, 1], strides = [1, 1]} : vector<2x2xf32> to vector<2x1xf32>
    %267 = vector.extract_strided_slice %11 {offsets = [0, 0], sizes = [1, 8], strides = [1, 1]} : vector<2x8xf32> to vector<1x8xf32>
    %268 = vector.broadcast %266 : vector<2x1xf32> to vector<2x8xf32>
    %269 = vector.broadcast %267 : vector<1x8xf32> to vector<2x8xf32>
    %270 = arith.mulf %268, %269 : vector<2x8xf32>
    %271 = vector.extract_strided_slice %223 {offsets = [0, 1], sizes = [2, 1], strides = [1, 1]} : vector<2x2xf32> to vector<2x1xf32>
    %272 = vector.extract_strided_slice %11 {offsets = [1, 0], sizes = [1, 8], strides = [1, 1]} : vector<2x8xf32> to vector<1x8xf32>
    %273 = vector.broadcast %271 : vector<2x1xf32> to vector<2x8xf32>
    %274 = vector.broadcast %272 : vector<1x8xf32> to vector<2x8xf32>
    %275 = arith.mulf %273, %274 : vector<2x8xf32>
    %276 = arith.addf %270, %275 : vector<2x8xf32>
    %277 = arith.addf %265, %276 : vector<2x8xf32>
    %278 = arith.negf %277 : vector<2x8xf32>
    %279 = math.exp %278 : vector<2x8xf32>
    %cst_36 = arith.constant 1.000000e+00 : f32
    %280 = vector.broadcast %cst_36 : f32 to vector<2x8xf32>
    %281 = arith.addf %280, %279 : vector<2x8xf32>
    %282 = arith.divf %280, %281 : vector<2x8xf32>
    %283 = math.tanh %277 : vector<2x8xf32>
    %284 = vector.extract_strided_slice %282 {offsets = [0, 0], sizes = [2, 2], strides = [1, 1]} : vector<2x8xf32> to vector<2x2xf32>
    %285 = vector.extract_strided_slice %282 {offsets = [0, 2], sizes = [2, 2], strides = [1, 1]} : vector<2x8xf32> to vector<2x2xf32>
    %286 = vector.extract_strided_slice %283 {offsets = [0, 4], sizes = [2, 2], strides = [1, 1]} : vector<2x8xf32> to vector<2x2xf32>
    %287 = vector.extract_strided_slice %282 {offsets = [0, 6], sizes = [2, 2], strides = [1, 1]} : vector<2x8xf32> to vector<2x2xf32>
    %288 = arith.mulf %285, %221 : vector<2x2xf32>
    %289 = arith.mulf %284, %286 : vector<2x2xf32>
    %290 = arith.addf %288, %289 : vector<2x2xf32>
    %291 = math.tanh %290 : vector<2x2xf32>
    %292 = arith.mulf %287, %291 : vector<2x2xf32>
    %293 = vector.extract_strided_slice %292 {offsets = [0, 0], sizes = [2, 1], strides = [1, 1]} : vector<2x2xf32> to vector<2x1xf32>
    %294 = vector.extract_strided_slice %13 {offsets = [0, 0], sizes = [1, 8], strides = [1, 1]} : vector<2x8xf32> to vector<1x8xf32>
    %295 = vector.broadcast %293 : vector<2x1xf32> to vector<2x8xf32>
    %296 = vector.broadcast %294 : vector<1x8xf32> to vector<2x8xf32>
    %297 = arith.mulf %295, %296 : vector<2x8xf32>
    %298 = vector.extract_strided_slice %292 {offsets = [0, 1], sizes = [2, 1], strides = [1, 1]} : vector<2x2xf32> to vector<2x1xf32>
    %299 = vector.extract_strided_slice %13 {offsets = [1, 0], sizes = [1, 8], strides = [1, 1]} : vector<2x8xf32> to vector<1x8xf32>
    %300 = vector.broadcast %298 : vector<2x1xf32> to vector<2x8xf32>
    %301 = vector.broadcast %299 : vector<1x8xf32> to vector<2x8xf32>
    %302 = arith.mulf %300, %301 : vector<2x8xf32>
    %303 = arith.addf %297, %302 : vector<2x8xf32>
    %304 = vector.extract_strided_slice %263 {offsets = [0, 0], sizes = [2, 1], strides = [1, 1]} : vector<2x2xf32> to vector<2x1xf32>
    %305 = vector.extract_strided_slice %14 {offsets = [0, 0], sizes = [1, 8], strides = [1, 1]} : vector<2x8xf32> to vector<1x8xf32>
    %306 = vector.broadcast %304 : vector<2x1xf32> to vector<2x8xf32>
    %307 = vector.broadcast %305 : vector<1x8xf32> to vector<2x8xf32>
    %308 = arith.mulf %306, %307 : vector<2x8xf32>
    %309 = vector.extract_strided_slice %263 {offsets = [0, 1], sizes = [2, 1], strides = [1, 1]} : vector<2x2xf32> to vector<2x1xf32>
    %310 = vector.extract_strided_slice %14 {offsets = [1, 0], sizes = [1, 8], strides = [1, 1]} : vector<2x8xf32> to vector<1x8xf32>
    %311 = vector.broadcast %309 : vector<2x1xf32> to vector<2x8xf32>
    %312 = vector.broadcast %310 : vector<1x8xf32> to vector<2x8xf32>
    %313 = arith.mulf %311, %312 : vector<2x8xf32>
    %314 = arith.addf %308, %313 : vector<2x8xf32>
    %315 = arith.addf %303, %314 : vector<2x8xf32>
    %316 = vector.broadcast %15 : vector<1x8xf32> to vector<2x8xf32>
    %317 = arith.addf %315, %316 : vector<2x8xf32>
    %318 = arith.negf %317 : vector<2x8xf32>
    %319 = math.exp %318 : vector<2x8xf32>
    %cst_37 = arith.constant 1.000000e+00 : f32
    %320 = vector.broadcast %cst_37 : f32 to vector<2x8xf32>
    %321 = arith.addf %320, %319 : vector<2x8xf32>
    %322 = arith.divf %320, %321 : vector<2x8xf32>
    %323 = math.tanh %317 : vector<2x8xf32>
    %324 = vector.extract_strided_slice %322 {offsets = [0, 0], sizes = [2, 2], strides = [1, 1]} : vector<2x8xf32> to vector<2x2xf32>
    %325 = vector.extract_strided_slice %322 {offsets = [0, 2], sizes = [2, 2], strides = [1, 1]} : vector<2x8xf32> to vector<2x2xf32>
    %326 = vector.extract_strided_slice %323 {offsets = [0, 4], sizes = [2, 2], strides = [1, 1]} : vector<2x8xf32> to vector<2x2xf32>
    %327 = vector.extract_strided_slice %322 {offsets = [0, 6], sizes = [2, 2], strides = [1, 1]} : vector<2x8xf32> to vector<2x2xf32>
    %328 = arith.mulf %325, %261 : vector<2x2xf32>
    %329 = arith.mulf %324, %326 : vector<2x2xf32>
    %330 = arith.addf %328, %329 : vector<2x2xf32>
    %331 = math.tanh %330 : vector<2x2xf32>
    %332 = arith.mulf %327, %331 : vector<2x2xf32>
    %333 = vector.extract_strided_slice %52 {offsets = [0, 4, 0], sizes = [2, 1, 8], strides = [1, 1, 1]} : vector<2x16x8xf32> to vector<2x1x8xf32>
    %334 = vector.shape_cast %333 : vector<2x1x8xf32> to vector<2x8xf32>
    %335 = vector.extract_strided_slice %292 {offsets = [0, 0], sizes = [2, 1], strides = [1, 1]} : vector<2x2xf32> to vector<2x1xf32>
    %336 = vector.extract_strided_slice %11 {offsets = [0, 0], sizes = [1, 8], strides = [1, 1]} : vector<2x8xf32> to vector<1x8xf32>
    %337 = vector.broadcast %335 : vector<2x1xf32> to vector<2x8xf32>
    %338 = vector.broadcast %336 : vector<1x8xf32> to vector<2x8xf32>
    %339 = arith.mulf %337, %338 : vector<2x8xf32>
    %340 = vector.extract_strided_slice %292 {offsets = [0, 1], sizes = [2, 1], strides = [1, 1]} : vector<2x2xf32> to vector<2x1xf32>
    %341 = vector.extract_strided_slice %11 {offsets = [1, 0], sizes = [1, 8], strides = [1, 1]} : vector<2x8xf32> to vector<1x8xf32>
    %342 = vector.broadcast %340 : vector<2x1xf32> to vector<2x8xf32>
    %343 = vector.broadcast %341 : vector<1x8xf32> to vector<2x8xf32>
    %344 = arith.mulf %342, %343 : vector<2x8xf32>
    %345 = arith.addf %339, %344 : vector<2x8xf32>
    %346 = arith.addf %334, %345 : vector<2x8xf32>
    %347 = arith.negf %346 : vector<2x8xf32>
    %348 = math.exp %347 : vector<2x8xf32>
    %cst_38 = arith.constant 1.000000e+00 : f32
    %349 = vector.broadcast %cst_38 : f32 to vector<2x8xf32>
    %350 = arith.addf %349, %348 : vector<2x8xf32>
    %351 = arith.divf %349, %350 : vector<2x8xf32>
    %352 = math.tanh %346 : vector<2x8xf32>
    %353 = vector.extract_strided_slice %351 {offsets = [0, 0], sizes = [2, 2], strides = [1, 1]} : vector<2x8xf32> to vector<2x2xf32>
    %354 = vector.extract_strided_slice %351 {offsets = [0, 2], sizes = [2, 2], strides = [1, 1]} : vector<2x8xf32> to vector<2x2xf32>
    %355 = vector.extract_strided_slice %352 {offsets = [0, 4], sizes = [2, 2], strides = [1, 1]} : vector<2x8xf32> to vector<2x2xf32>
    %356 = vector.extract_strided_slice %351 {offsets = [0, 6], sizes = [2, 2], strides = [1, 1]} : vector<2x8xf32> to vector<2x2xf32>
    %357 = arith.mulf %354, %290 : vector<2x2xf32>
    %358 = arith.mulf %353, %355 : vector<2x2xf32>
    %359 = arith.addf %357, %358 : vector<2x2xf32>
    %360 = math.tanh %359 : vector<2x2xf32>
    %361 = arith.mulf %356, %360 : vector<2x2xf32>
    %362 = vector.extract_strided_slice %361 {offsets = [0, 0], sizes = [2, 1], strides = [1, 1]} : vector<2x2xf32> to vector<2x1xf32>
    %363 = vector.extract_strided_slice %13 {offsets = [0, 0], sizes = [1, 8], strides = [1, 1]} : vector<2x8xf32> to vector<1x8xf32>
    %364 = vector.broadcast %362 : vector<2x1xf32> to vector<2x8xf32>
    %365 = vector.broadcast %363 : vector<1x8xf32> to vector<2x8xf32>
    %366 = arith.mulf %364, %365 : vector<2x8xf32>
    %367 = vector.extract_strided_slice %361 {offsets = [0, 1], sizes = [2, 1], strides = [1, 1]} : vector<2x2xf32> to vector<2x1xf32>
    %368 = vector.extract_strided_slice %13 {offsets = [1, 0], sizes = [1, 8], strides = [1, 1]} : vector<2x8xf32> to vector<1x8xf32>
    %369 = vector.broadcast %367 : vector<2x1xf32> to vector<2x8xf32>
    %370 = vector.broadcast %368 : vector<1x8xf32> to vector<2x8xf32>
    %371 = arith.mulf %369, %370 : vector<2x8xf32>
    %372 = arith.addf %366, %371 : vector<2x8xf32>
    %373 = vector.extract_strided_slice %332 {offsets = [0, 0], sizes = [2, 1], strides = [1, 1]} : vector<2x2xf32> to vector<2x1xf32>
    %374 = vector.extract_strided_slice %14 {offsets = [0, 0], sizes = [1, 8], strides = [1, 1]} : vector<2x8xf32> to vector<1x8xf32>
    %375 = vector.broadcast %373 : vector<2x1xf32> to vector<2x8xf32>
    %376 = vector.broadcast %374 : vector<1x8xf32> to vector<2x8xf32>
    %377 = arith.mulf %375, %376 : vector<2x8xf32>
    %378 = vector.extract_strided_slice %332 {offsets = [0, 1], sizes = [2, 1], strides = [1, 1]} : vector<2x2xf32> to vector<2x1xf32>
    %379 = vector.extract_strided_slice %14 {offsets = [1, 0], sizes = [1, 8], strides = [1, 1]} : vector<2x8xf32> to vector<1x8xf32>
    %380 = vector.broadcast %378 : vector<2x1xf32> to vector<2x8xf32>
    %381 = vector.broadcast %379 : vector<1x8xf32> to vector<2x8xf32>
    %382 = arith.mulf %380, %381 : vector<2x8xf32>
    %383 = arith.addf %377, %382 : vector<2x8xf32>
    %384 = arith.addf %372, %383 : vector<2x8xf32>
    %385 = vector.broadcast %15 : vector<1x8xf32> to vector<2x8xf32>
    %386 = arith.addf %384, %385 : vector<2x8xf32>
    %387 = arith.negf %386 : vector<2x8xf32>
    %388 = math.exp %387 : vector<2x8xf32>
    %cst_39 = arith.constant 1.000000e+00 : f32
    %389 = vector.broadcast %cst_39 : f32 to vector<2x8xf32>
    %390 = arith.addf %389, %388 : vector<2x8xf32>
    %391 = arith.divf %389, %390 : vector<2x8xf32>
    %392 = math.tanh %386 : vector<2x8xf32>
    %393 = vector.extract_strided_slice %391 {offsets = [0, 0], sizes = [2, 2], strides = [1, 1]} : vector<2x8xf32> to vector<2x2xf32>
    %394 = vector.extract_strided_slice %391 {offsets = [0, 2], sizes = [2, 2], strides = [1, 1]} : vector<2x8xf32> to vector<2x2xf32>
    %395 = vector.extract_strided_slice %392 {offsets = [0, 4], sizes = [2, 2], strides = [1, 1]} : vector<2x8xf32> to vector<2x2xf32>
    %396 = vector.extract_strided_slice %391 {offsets = [0, 6], sizes = [2, 2], strides = [1, 1]} : vector<2x8xf32> to vector<2x2xf32>
    %397 = arith.mulf %394, %330 : vector<2x2xf32>
    %398 = arith.mulf %393, %395 : vector<2x2xf32>
    %399 = arith.addf %397, %398 : vector<2x2xf32>
    %400 = math.tanh %399 : vector<2x2xf32>
    %401 = arith.mulf %396, %400 : vector<2x2xf32>
    %402 = vector.extract_strided_slice %52 {offsets = [0, 5, 0], sizes = [2, 1, 8], strides = [1, 1, 1]} : vector<2x16x8xf32> to vector<2x1x8xf32>
    %403 = vector.shape_cast %402 : vector<2x1x8xf32> to vector<2x8xf32>
    %404 = vector.extract_strided_slice %361 {offsets = [0, 0], sizes = [2, 1], strides = [1, 1]} : vector<2x2xf32> to vector<2x1xf32>
    %405 = vector.extract_strided_slice %11 {offsets = [0, 0], sizes = [1, 8], strides = [1, 1]} : vector<2x8xf32> to vector<1x8xf32>
    %406 = vector.broadcast %404 : vector<2x1xf32> to vector<2x8xf32>
    %407 = vector.broadcast %405 : vector<1x8xf32> to vector<2x8xf32>
    %408 = arith.mulf %406, %407 : vector<2x8xf32>
    %409 = vector.extract_strided_slice %361 {offsets = [0, 1], sizes = [2, 1], strides = [1, 1]} : vector<2x2xf32> to vector<2x1xf32>
    %410 = vector.extract_strided_slice %11 {offsets = [1, 0], sizes = [1, 8], strides = [1, 1]} : vector<2x8xf32> to vector<1x8xf32>
    %411 = vector.broadcast %409 : vector<2x1xf32> to vector<2x8xf32>
    %412 = vector.broadcast %410 : vector<1x8xf32> to vector<2x8xf32>
    %413 = arith.mulf %411, %412 : vector<2x8xf32>
    %414 = arith.addf %408, %413 : vector<2x8xf32>
    %415 = arith.addf %403, %414 : vector<2x8xf32>
    %416 = arith.negf %415 : vector<2x8xf32>
    %417 = math.exp %416 : vector<2x8xf32>
    %cst_40 = arith.constant 1.000000e+00 : f32
    %418 = vector.broadcast %cst_40 : f32 to vector<2x8xf32>
    %419 = arith.addf %418, %417 : vector<2x8xf32>
    %420 = arith.divf %418, %419 : vector<2x8xf32>
    %421 = math.tanh %415 : vector<2x8xf32>
    %422 = vector.extract_strided_slice %420 {offsets = [0, 0], sizes = [2, 2], strides = [1, 1]} : vector<2x8xf32> to vector<2x2xf32>
    %423 = vector.extract_strided_slice %420 {offsets = [0, 2], sizes = [2, 2], strides = [1, 1]} : vector<2x8xf32> to vector<2x2xf32>
    %424 = vector.extract_strided_slice %421 {offsets = [0, 4], sizes = [2, 2], strides = [1, 1]} : vector<2x8xf32> to vector<2x2xf32>
    %425 = vector.extract_strided_slice %420 {offsets = [0, 6], sizes = [2, 2], strides = [1, 1]} : vector<2x8xf32> to vector<2x2xf32>
    %426 = arith.mulf %423, %359 : vector<2x2xf32>
    %427 = arith.mulf %422, %424 : vector<2x2xf32>
    %428 = arith.addf %426, %427 : vector<2x2xf32>
    %429 = math.tanh %428 : vector<2x2xf32>
    %430 = arith.mulf %425, %429 : vector<2x2xf32>
    %431 = vector.extract_strided_slice %430 {offsets = [0, 0], sizes = [2, 1], strides = [1, 1]} : vector<2x2xf32> to vector<2x1xf32>
    %432 = vector.extract_strided_slice %13 {offsets = [0, 0], sizes = [1, 8], strides = [1, 1]} : vector<2x8xf32> to vector<1x8xf32>
    %433 = vector.broadcast %431 : vector<2x1xf32> to vector<2x8xf32>
    %434 = vector.broadcast %432 : vector<1x8xf32> to vector<2x8xf32>
    %435 = arith.mulf %433, %434 : vector<2x8xf32>
    %436 = vector.extract_strided_slice %430 {offsets = [0, 1], sizes = [2, 1], strides = [1, 1]} : vector<2x2xf32> to vector<2x1xf32>
    %437 = vector.extract_strided_slice %13 {offsets = [1, 0], sizes = [1, 8], strides = [1, 1]} : vector<2x8xf32> to vector<1x8xf32>
    %438 = vector.broadcast %436 : vector<2x1xf32> to vector<2x8xf32>
    %439 = vector.broadcast %437 : vector<1x8xf32> to vector<2x8xf32>
    %440 = arith.mulf %438, %439 : vector<2x8xf32>
    %441 = arith.addf %435, %440 : vector<2x8xf32>
    %442 = vector.extract_strided_slice %401 {offsets = [0, 0], sizes = [2, 1], strides = [1, 1]} : vector<2x2xf32> to vector<2x1xf32>
    %443 = vector.extract_strided_slice %14 {offsets = [0, 0], sizes = [1, 8], strides = [1, 1]} : vector<2x8xf32> to vector<1x8xf32>
    %444 = vector.broadcast %442 : vector<2x1xf32> to vector<2x8xf32>
    %445 = vector.broadcast %443 : vector<1x8xf32> to vector<2x8xf32>
    %446 = arith.mulf %444, %445 : vector<2x8xf32>
    %447 = vector.extract_strided_slice %401 {offsets = [0, 1], sizes = [2, 1], strides = [1, 1]} : vector<2x2xf32> to vector<2x1xf32>
    %448 = vector.extract_strided_slice %14 {offsets = [1, 0], sizes = [1, 8], strides = [1, 1]} : vector<2x8xf32> to vector<1x8xf32>
    %449 = vector.broadcast %447 : vector<2x1xf32> to vector<2x8xf32>
    %450 = vector.broadcast %448 : vector<1x8xf32> to vector<2x8xf32>
    %451 = arith.mulf %449, %450 : vector<2x8xf32>
    %452 = arith.addf %446, %451 : vector<2x8xf32>
    %453 = arith.addf %441, %452 : vector<2x8xf32>
    %454 = vector.broadcast %15 : vector<1x8xf32> to vector<2x8xf32>
    %455 = arith.addf %453, %454 : vector<2x8xf32>
    %456 = arith.negf %455 : vector<2x8xf32>
    %457 = math.exp %456 : vector<2x8xf32>
    %cst_41 = arith.constant 1.000000e+00 : f32
    %458 = vector.broadcast %cst_41 : f32 to vector<2x8xf32>
    %459 = arith.addf %458, %457 : vector<2x8xf32>
    %460 = arith.divf %458, %459 : vector<2x8xf32>
    %461 = math.tanh %455 : vector<2x8xf32>
    %462 = vector.extract_strided_slice %460 {offsets = [0, 0], sizes = [2, 2], strides = [1, 1]} : vector<2x8xf32> to vector<2x2xf32>
    %463 = vector.extract_strided_slice %460 {offsets = [0, 2], sizes = [2, 2], strides = [1, 1]} : vector<2x8xf32> to vector<2x2xf32>
    %464 = vector.extract_strided_slice %461 {offsets = [0, 4], sizes = [2, 2], strides = [1, 1]} : vector<2x8xf32> to vector<2x2xf32>
    %465 = vector.extract_strided_slice %460 {offsets = [0, 6], sizes = [2, 2], strides = [1, 1]} : vector<2x8xf32> to vector<2x2xf32>
    %466 = arith.mulf %463, %399 : vector<2x2xf32>
    %467 = arith.mulf %462, %464 : vector<2x2xf32>
    %468 = arith.addf %466, %467 : vector<2x2xf32>
    %469 = math.tanh %468 : vector<2x2xf32>
    %470 = arith.mulf %465, %469 : vector<2x2xf32>
    %471 = vector.extract_strided_slice %52 {offsets = [0, 6, 0], sizes = [2, 1, 8], strides = [1, 1, 1]} : vector<2x16x8xf32> to vector<2x1x8xf32>
    %472 = vector.shape_cast %471 : vector<2x1x8xf32> to vector<2x8xf32>
    %473 = vector.extract_strided_slice %430 {offsets = [0, 0], sizes = [2, 1], strides = [1, 1]} : vector<2x2xf32> to vector<2x1xf32>
    %474 = vector.extract_strided_slice %11 {offsets = [0, 0], sizes = [1, 8], strides = [1, 1]} : vector<2x8xf32> to vector<1x8xf32>
    %475 = vector.broadcast %473 : vector<2x1xf32> to vector<2x8xf32>
    %476 = vector.broadcast %474 : vector<1x8xf32> to vector<2x8xf32>
    %477 = arith.mulf %475, %476 : vector<2x8xf32>
    %478 = vector.extract_strided_slice %430 {offsets = [0, 1], sizes = [2, 1], strides = [1, 1]} : vector<2x2xf32> to vector<2x1xf32>
    %479 = vector.extract_strided_slice %11 {offsets = [1, 0], sizes = [1, 8], strides = [1, 1]} : vector<2x8xf32> to vector<1x8xf32>
    %480 = vector.broadcast %478 : vector<2x1xf32> to vector<2x8xf32>
    %481 = vector.broadcast %479 : vector<1x8xf32> to vector<2x8xf32>
    %482 = arith.mulf %480, %481 : vector<2x8xf32>
    %483 = arith.addf %477, %482 : vector<2x8xf32>
    %484 = arith.addf %472, %483 : vector<2x8xf32>
    %485 = arith.negf %484 : vector<2x8xf32>
    %486 = math.exp %485 : vector<2x8xf32>
    %cst_42 = arith.constant 1.000000e+00 : f32
    %487 = vector.broadcast %cst_42 : f32 to vector<2x8xf32>
    %488 = arith.addf %487, %486 : vector<2x8xf32>
    %489 = arith.divf %487, %488 : vector<2x8xf32>
    %490 = math.tanh %484 : vector<2x8xf32>
    %491 = vector.extract_strided_slice %489 {offsets = [0, 0], sizes = [2, 2], strides = [1, 1]} : vector<2x8xf32> to vector<2x2xf32>
    %492 = vector.extract_strided_slice %489 {offsets = [0, 2], sizes = [2, 2], strides = [1, 1]} : vector<2x8xf32> to vector<2x2xf32>
    %493 = vector.extract_strided_slice %490 {offsets = [0, 4], sizes = [2, 2], strides = [1, 1]} : vector<2x8xf32> to vector<2x2xf32>
    %494 = vector.extract_strided_slice %489 {offsets = [0, 6], sizes = [2, 2], strides = [1, 1]} : vector<2x8xf32> to vector<2x2xf32>
    %495 = arith.mulf %492, %428 : vector<2x2xf32>
    %496 = arith.mulf %491, %493 : vector<2x2xf32>
    %497 = arith.addf %495, %496 : vector<2x2xf32>
    %498 = math.tanh %497 : vector<2x2xf32>
    %499 = arith.mulf %494, %498 : vector<2x2xf32>
    %500 = vector.extract_strided_slice %499 {offsets = [0, 0], sizes = [2, 1], strides = [1, 1]} : vector<2x2xf32> to vector<2x1xf32>
    %501 = vector.extract_strided_slice %13 {offsets = [0, 0], sizes = [1, 8], strides = [1, 1]} : vector<2x8xf32> to vector<1x8xf32>
    %502 = vector.broadcast %500 : vector<2x1xf32> to vector<2x8xf32>
    %503 = vector.broadcast %501 : vector<1x8xf32> to vector<2x8xf32>
    %504 = arith.mulf %502, %503 : vector<2x8xf32>
    %505 = vector.extract_strided_slice %499 {offsets = [0, 1], sizes = [2, 1], strides = [1, 1]} : vector<2x2xf32> to vector<2x1xf32>
    %506 = vector.extract_strided_slice %13 {offsets = [1, 0], sizes = [1, 8], strides = [1, 1]} : vector<2x8xf32> to vector<1x8xf32>
    %507 = vector.broadcast %505 : vector<2x1xf32> to vector<2x8xf32>
    %508 = vector.broadcast %506 : vector<1x8xf32> to vector<2x8xf32>
    %509 = arith.mulf %507, %508 : vector<2x8xf32>
    %510 = arith.addf %504, %509 : vector<2x8xf32>
    %511 = vector.extract_strided_slice %470 {offsets = [0, 0], sizes = [2, 1], strides = [1, 1]} : vector<2x2xf32> to vector<2x1xf32>
    %512 = vector.extract_strided_slice %14 {offsets = [0, 0], sizes = [1, 8], strides = [1, 1]} : vector<2x8xf32> to vector<1x8xf32>
    %513 = vector.broadcast %511 : vector<2x1xf32> to vector<2x8xf32>
    %514 = vector.broadcast %512 : vector<1x8xf32> to vector<2x8xf32>
    %515 = arith.mulf %513, %514 : vector<2x8xf32>
    %516 = vector.extract_strided_slice %470 {offsets = [0, 1], sizes = [2, 1], strides = [1, 1]} : vector<2x2xf32> to vector<2x1xf32>
    %517 = vector.extract_strided_slice %14 {offsets = [1, 0], sizes = [1, 8], strides = [1, 1]} : vector<2x8xf32> to vector<1x8xf32>
    %518 = vector.broadcast %516 : vector<2x1xf32> to vector<2x8xf32>
    %519 = vector.broadcast %517 : vector<1x8xf32> to vector<2x8xf32>
    %520 = arith.mulf %518, %519 : vector<2x8xf32>
    %521 = arith.addf %515, %520 : vector<2x8xf32>
    %522 = arith.addf %510, %521 : vector<2x8xf32>
    %523 = vector.broadcast %15 : vector<1x8xf32> to vector<2x8xf32>
    %524 = arith.addf %522, %523 : vector<2x8xf32>
    %525 = arith.negf %524 : vector<2x8xf32>
    %526 = math.exp %525 : vector<2x8xf32>
    %cst_43 = arith.constant 1.000000e+00 : f32
    %527 = vector.broadcast %cst_43 : f32 to vector<2x8xf32>
    %528 = arith.addf %527, %526 : vector<2x8xf32>
    %529 = arith.divf %527, %528 : vector<2x8xf32>
    %530 = math.tanh %524 : vector<2x8xf32>
    %531 = vector.extract_strided_slice %529 {offsets = [0, 0], sizes = [2, 2], strides = [1, 1]} : vector<2x8xf32> to vector<2x2xf32>
    %532 = vector.extract_strided_slice %529 {offsets = [0, 2], sizes = [2, 2], strides = [1, 1]} : vector<2x8xf32> to vector<2x2xf32>
    %533 = vector.extract_strided_slice %530 {offsets = [0, 4], sizes = [2, 2], strides = [1, 1]} : vector<2x8xf32> to vector<2x2xf32>
    %534 = vector.extract_strided_slice %529 {offsets = [0, 6], sizes = [2, 2], strides = [1, 1]} : vector<2x8xf32> to vector<2x2xf32>
    %535 = arith.mulf %532, %468 : vector<2x2xf32>
    %536 = arith.mulf %531, %533 : vector<2x2xf32>
    %537 = arith.addf %535, %536 : vector<2x2xf32>
    %538 = math.tanh %537 : vector<2x2xf32>
    %539 = arith.mulf %534, %538 : vector<2x2xf32>
    %540 = vector.extract_strided_slice %52 {offsets = [0, 7, 0], sizes = [2, 1, 8], strides = [1, 1, 1]} : vector<2x16x8xf32> to vector<2x1x8xf32>
    %541 = vector.shape_cast %540 : vector<2x1x8xf32> to vector<2x8xf32>
    %542 = vector.extract_strided_slice %499 {offsets = [0, 0], sizes = [2, 1], strides = [1, 1]} : vector<2x2xf32> to vector<2x1xf32>
    %543 = vector.extract_strided_slice %11 {offsets = [0, 0], sizes = [1, 8], strides = [1, 1]} : vector<2x8xf32> to vector<1x8xf32>
    %544 = vector.broadcast %542 : vector<2x1xf32> to vector<2x8xf32>
    %545 = vector.broadcast %543 : vector<1x8xf32> to vector<2x8xf32>
    %546 = arith.mulf %544, %545 : vector<2x8xf32>
    %547 = vector.extract_strided_slice %499 {offsets = [0, 1], sizes = [2, 1], strides = [1, 1]} : vector<2x2xf32> to vector<2x1xf32>
    %548 = vector.extract_strided_slice %11 {offsets = [1, 0], sizes = [1, 8], strides = [1, 1]} : vector<2x8xf32> to vector<1x8xf32>
    %549 = vector.broadcast %547 : vector<2x1xf32> to vector<2x8xf32>
    %550 = vector.broadcast %548 : vector<1x8xf32> to vector<2x8xf32>
    %551 = arith.mulf %549, %550 : vector<2x8xf32>
    %552 = arith.addf %546, %551 : vector<2x8xf32>
    %553 = arith.addf %541, %552 : vector<2x8xf32>
    %554 = arith.negf %553 : vector<2x8xf32>
    %555 = math.exp %554 : vector<2x8xf32>
    %cst_44 = arith.constant 1.000000e+00 : f32
    %556 = vector.broadcast %cst_44 : f32 to vector<2x8xf32>
    %557 = arith.addf %556, %555 : vector<2x8xf32>
    %558 = arith.divf %556, %557 : vector<2x8xf32>
    %559 = math.tanh %553 : vector<2x8xf32>
    %560 = vector.extract_strided_slice %558 {offsets = [0, 0], sizes = [2, 2], strides = [1, 1]} : vector<2x8xf32> to vector<2x2xf32>
    %561 = vector.extract_strided_slice %558 {offsets = [0, 2], sizes = [2, 2], strides = [1, 1]} : vector<2x8xf32> to vector<2x2xf32>
    %562 = vector.extract_strided_slice %559 {offsets = [0, 4], sizes = [2, 2], strides = [1, 1]} : vector<2x8xf32> to vector<2x2xf32>
    %563 = vector.extract_strided_slice %558 {offsets = [0, 6], sizes = [2, 2], strides = [1, 1]} : vector<2x8xf32> to vector<2x2xf32>
    %564 = arith.mulf %561, %497 : vector<2x2xf32>
    %565 = arith.mulf %560, %562 : vector<2x2xf32>
    %566 = arith.addf %564, %565 : vector<2x2xf32>
    %567 = math.tanh %566 : vector<2x2xf32>
    %568 = arith.mulf %563, %567 : vector<2x2xf32>
    %569 = vector.extract_strided_slice %568 {offsets = [0, 0], sizes = [2, 1], strides = [1, 1]} : vector<2x2xf32> to vector<2x1xf32>
    %570 = vector.extract_strided_slice %13 {offsets = [0, 0], sizes = [1, 8], strides = [1, 1]} : vector<2x8xf32> to vector<1x8xf32>
    %571 = vector.broadcast %569 : vector<2x1xf32> to vector<2x8xf32>
    %572 = vector.broadcast %570 : vector<1x8xf32> to vector<2x8xf32>
    %573 = arith.mulf %571, %572 : vector<2x8xf32>
    %574 = vector.extract_strided_slice %568 {offsets = [0, 1], sizes = [2, 1], strides = [1, 1]} : vector<2x2xf32> to vector<2x1xf32>
    %575 = vector.extract_strided_slice %13 {offsets = [1, 0], sizes = [1, 8], strides = [1, 1]} : vector<2x8xf32> to vector<1x8xf32>
    %576 = vector.broadcast %574 : vector<2x1xf32> to vector<2x8xf32>
    %577 = vector.broadcast %575 : vector<1x8xf32> to vector<2x8xf32>
    %578 = arith.mulf %576, %577 : vector<2x8xf32>
    %579 = arith.addf %573, %578 : vector<2x8xf32>
    %580 = vector.extract_strided_slice %539 {offsets = [0, 0], sizes = [2, 1], strides = [1, 1]} : vector<2x2xf32> to vector<2x1xf32>
    %581 = vector.extract_strided_slice %14 {offsets = [0, 0], sizes = [1, 8], strides = [1, 1]} : vector<2x8xf32> to vector<1x8xf32>
    %582 = vector.broadcast %580 : vector<2x1xf32> to vector<2x8xf32>
    %583 = vector.broadcast %581 : vector<1x8xf32> to vector<2x8xf32>
    %584 = arith.mulf %582, %583 : vector<2x8xf32>
    %585 = vector.extract_strided_slice %539 {offsets = [0, 1], sizes = [2, 1], strides = [1, 1]} : vector<2x2xf32> to vector<2x1xf32>
    %586 = vector.extract_strided_slice %14 {offsets = [1, 0], sizes = [1, 8], strides = [1, 1]} : vector<2x8xf32> to vector<1x8xf32>
    %587 = vector.broadcast %585 : vector<2x1xf32> to vector<2x8xf32>
    %588 = vector.broadcast %586 : vector<1x8xf32> to vector<2x8xf32>
    %589 = arith.mulf %587, %588 : vector<2x8xf32>
    %590 = arith.addf %584, %589 : vector<2x8xf32>
    %591 = arith.addf %579, %590 : vector<2x8xf32>
    %592 = vector.broadcast %15 : vector<1x8xf32> to vector<2x8xf32>
    %593 = arith.addf %591, %592 : vector<2x8xf32>
    %594 = arith.negf %593 : vector<2x8xf32>
    %595 = math.exp %594 : vector<2x8xf32>
    %cst_45 = arith.constant 1.000000e+00 : f32
    %596 = vector.broadcast %cst_45 : f32 to vector<2x8xf32>
    %597 = arith.addf %596, %595 : vector<2x8xf32>
    %598 = arith.divf %596, %597 : vector<2x8xf32>
    %599 = math.tanh %593 : vector<2x8xf32>
    %600 = vector.extract_strided_slice %598 {offsets = [0, 0], sizes = [2, 2], strides = [1, 1]} : vector<2x8xf32> to vector<2x2xf32>
    %601 = vector.extract_strided_slice %598 {offsets = [0, 2], sizes = [2, 2], strides = [1, 1]} : vector<2x8xf32> to vector<2x2xf32>
    %602 = vector.extract_strided_slice %599 {offsets = [0, 4], sizes = [2, 2], strides = [1, 1]} : vector<2x8xf32> to vector<2x2xf32>
    %603 = vector.extract_strided_slice %598 {offsets = [0, 6], sizes = [2, 2], strides = [1, 1]} : vector<2x8xf32> to vector<2x2xf32>
    %604 = arith.mulf %601, %537 : vector<2x2xf32>
    %605 = arith.mulf %600, %602 : vector<2x2xf32>
    %606 = arith.addf %604, %605 : vector<2x2xf32>
    %607 = math.tanh %606 : vector<2x2xf32>
    %608 = arith.mulf %603, %607 : vector<2x2xf32>
    %609 = vector.extract_strided_slice %52 {offsets = [0, 8, 0], sizes = [2, 1, 8], strides = [1, 1, 1]} : vector<2x16x8xf32> to vector<2x1x8xf32>
    %610 = vector.shape_cast %609 : vector<2x1x8xf32> to vector<2x8xf32>
    %611 = vector.extract_strided_slice %568 {offsets = [0, 0], sizes = [2, 1], strides = [1, 1]} : vector<2x2xf32> to vector<2x1xf32>
    %612 = vector.extract_strided_slice %11 {offsets = [0, 0], sizes = [1, 8], strides = [1, 1]} : vector<2x8xf32> to vector<1x8xf32>
    %613 = vector.broadcast %611 : vector<2x1xf32> to vector<2x8xf32>
    %614 = vector.broadcast %612 : vector<1x8xf32> to vector<2x8xf32>
    %615 = arith.mulf %613, %614 : vector<2x8xf32>
    %616 = vector.extract_strided_slice %568 {offsets = [0, 1], sizes = [2, 1], strides = [1, 1]} : vector<2x2xf32> to vector<2x1xf32>
    %617 = vector.extract_strided_slice %11 {offsets = [1, 0], sizes = [1, 8], strides = [1, 1]} : vector<2x8xf32> to vector<1x8xf32>
    %618 = vector.broadcast %616 : vector<2x1xf32> to vector<2x8xf32>
    %619 = vector.broadcast %617 : vector<1x8xf32> to vector<2x8xf32>
    %620 = arith.mulf %618, %619 : vector<2x8xf32>
    %621 = arith.addf %615, %620 : vector<2x8xf32>
    %622 = arith.addf %610, %621 : vector<2x8xf32>
    %623 = arith.negf %622 : vector<2x8xf32>
    %624 = math.exp %623 : vector<2x8xf32>
    %cst_46 = arith.constant 1.000000e+00 : f32
    %625 = vector.broadcast %cst_46 : f32 to vector<2x8xf32>
    %626 = arith.addf %625, %624 : vector<2x8xf32>
    %627 = arith.divf %625, %626 : vector<2x8xf32>
    %628 = math.tanh %622 : vector<2x8xf32>
    %629 = vector.extract_strided_slice %627 {offsets = [0, 0], sizes = [2, 2], strides = [1, 1]} : vector<2x8xf32> to vector<2x2xf32>
    %630 = vector.extract_strided_slice %627 {offsets = [0, 2], sizes = [2, 2], strides = [1, 1]} : vector<2x8xf32> to vector<2x2xf32>
    %631 = vector.extract_strided_slice %628 {offsets = [0, 4], sizes = [2, 2], strides = [1, 1]} : vector<2x8xf32> to vector<2x2xf32>
    %632 = vector.extract_strided_slice %627 {offsets = [0, 6], sizes = [2, 2], strides = [1, 1]} : vector<2x8xf32> to vector<2x2xf32>
    %633 = arith.mulf %630, %566 : vector<2x2xf32>
    %634 = arith.mulf %629, %631 : vector<2x2xf32>
    %635 = arith.addf %633, %634 : vector<2x2xf32>
    %636 = math.tanh %635 : vector<2x2xf32>
    %637 = arith.mulf %632, %636 : vector<2x2xf32>
    %638 = vector.extract_strided_slice %637 {offsets = [0, 0], sizes = [2, 1], strides = [1, 1]} : vector<2x2xf32> to vector<2x1xf32>
    %639 = vector.extract_strided_slice %13 {offsets = [0, 0], sizes = [1, 8], strides = [1, 1]} : vector<2x8xf32> to vector<1x8xf32>
    %640 = vector.broadcast %638 : vector<2x1xf32> to vector<2x8xf32>
    %641 = vector.broadcast %639 : vector<1x8xf32> to vector<2x8xf32>
    %642 = arith.mulf %640, %641 : vector<2x8xf32>
    %643 = vector.extract_strided_slice %637 {offsets = [0, 1], sizes = [2, 1], strides = [1, 1]} : vector<2x2xf32> to vector<2x1xf32>
    %644 = vector.extract_strided_slice %13 {offsets = [1, 0], sizes = [1, 8], strides = [1, 1]} : vector<2x8xf32> to vector<1x8xf32>
    %645 = vector.broadcast %643 : vector<2x1xf32> to vector<2x8xf32>
    %646 = vector.broadcast %644 : vector<1x8xf32> to vector<2x8xf32>
    %647 = arith.mulf %645, %646 : vector<2x8xf32>
    %648 = arith.addf %642, %647 : vector<2x8xf32>
    %649 = vector.extract_strided_slice %608 {offsets = [0, 0], sizes = [2, 1], strides = [1, 1]} : vector<2x2xf32> to vector<2x1xf32>
    %650 = vector.extract_strided_slice %14 {offsets = [0, 0], sizes = [1, 8], strides = [1, 1]} : vector<2x8xf32> to vector<1x8xf32>
    %651 = vector.broadcast %649 : vector<2x1xf32> to vector<2x8xf32>
    %652 = vector.broadcast %650 : vector<1x8xf32> to vector<2x8xf32>
    %653 = arith.mulf %651, %652 : vector<2x8xf32>
    %654 = vector.extract_strided_slice %608 {offsets = [0, 1], sizes = [2, 1], strides = [1, 1]} : vector<2x2xf32> to vector<2x1xf32>
    %655 = vector.extract_strided_slice %14 {offsets = [1, 0], sizes = [1, 8], strides = [1, 1]} : vector<2x8xf32> to vector<1x8xf32>
    %656 = vector.broadcast %654 : vector<2x1xf32> to vector<2x8xf32>
    %657 = vector.broadcast %655 : vector<1x8xf32> to vector<2x8xf32>
    %658 = arith.mulf %656, %657 : vector<2x8xf32>
    %659 = arith.addf %653, %658 : vector<2x8xf32>
    %660 = arith.addf %648, %659 : vector<2x8xf32>
    %661 = vector.broadcast %15 : vector<1x8xf32> to vector<2x8xf32>
    %662 = arith.addf %660, %661 : vector<2x8xf32>
    %663 = arith.negf %662 : vector<2x8xf32>
    %664 = math.exp %663 : vector<2x8xf32>
    %cst_47 = arith.constant 1.000000e+00 : f32
    %665 = vector.broadcast %cst_47 : f32 to vector<2x8xf32>
    %666 = arith.addf %665, %664 : vector<2x8xf32>
    %667 = arith.divf %665, %666 : vector<2x8xf32>
    %668 = math.tanh %662 : vector<2x8xf32>
    %669 = vector.extract_strided_slice %667 {offsets = [0, 0], sizes = [2, 2], strides = [1, 1]} : vector<2x8xf32> to vector<2x2xf32>
    %670 = vector.extract_strided_slice %667 {offsets = [0, 2], sizes = [2, 2], strides = [1, 1]} : vector<2x8xf32> to vector<2x2xf32>
    %671 = vector.extract_strided_slice %668 {offsets = [0, 4], sizes = [2, 2], strides = [1, 1]} : vector<2x8xf32> to vector<2x2xf32>
    %672 = vector.extract_strided_slice %667 {offsets = [0, 6], sizes = [2, 2], strides = [1, 1]} : vector<2x8xf32> to vector<2x2xf32>
    %673 = arith.mulf %670, %606 : vector<2x2xf32>
    %674 = arith.mulf %669, %671 : vector<2x2xf32>
    %675 = arith.addf %673, %674 : vector<2x2xf32>
    %676 = math.tanh %675 : vector<2x2xf32>
    %677 = arith.mulf %672, %676 : vector<2x2xf32>
    %678 = vector.extract_strided_slice %52 {offsets = [0, 9, 0], sizes = [2, 1, 8], strides = [1, 1, 1]} : vector<2x16x8xf32> to vector<2x1x8xf32>
    %679 = vector.shape_cast %678 : vector<2x1x8xf32> to vector<2x8xf32>
    %680 = vector.extract_strided_slice %637 {offsets = [0, 0], sizes = [2, 1], strides = [1, 1]} : vector<2x2xf32> to vector<2x1xf32>
    %681 = vector.extract_strided_slice %11 {offsets = [0, 0], sizes = [1, 8], strides = [1, 1]} : vector<2x8xf32> to vector<1x8xf32>
    %682 = vector.broadcast %680 : vector<2x1xf32> to vector<2x8xf32>
    %683 = vector.broadcast %681 : vector<1x8xf32> to vector<2x8xf32>
    %684 = arith.mulf %682, %683 : vector<2x8xf32>
    %685 = vector.extract_strided_slice %637 {offsets = [0, 1], sizes = [2, 1], strides = [1, 1]} : vector<2x2xf32> to vector<2x1xf32>
    %686 = vector.extract_strided_slice %11 {offsets = [1, 0], sizes = [1, 8], strides = [1, 1]} : vector<2x8xf32> to vector<1x8xf32>
    %687 = vector.broadcast %685 : vector<2x1xf32> to vector<2x8xf32>
    %688 = vector.broadcast %686 : vector<1x8xf32> to vector<2x8xf32>
    %689 = arith.mulf %687, %688 : vector<2x8xf32>
    %690 = arith.addf %684, %689 : vector<2x8xf32>
    %691 = arith.addf %679, %690 : vector<2x8xf32>
    %692 = arith.negf %691 : vector<2x8xf32>
    %693 = math.exp %692 : vector<2x8xf32>
    %cst_48 = arith.constant 1.000000e+00 : f32
    %694 = vector.broadcast %cst_48 : f32 to vector<2x8xf32>
    %695 = arith.addf %694, %693 : vector<2x8xf32>
    %696 = arith.divf %694, %695 : vector<2x8xf32>
    %697 = math.tanh %691 : vector<2x8xf32>
    %698 = vector.extract_strided_slice %696 {offsets = [0, 0], sizes = [2, 2], strides = [1, 1]} : vector<2x8xf32> to vector<2x2xf32>
    %699 = vector.extract_strided_slice %696 {offsets = [0, 2], sizes = [2, 2], strides = [1, 1]} : vector<2x8xf32> to vector<2x2xf32>
    %700 = vector.extract_strided_slice %697 {offsets = [0, 4], sizes = [2, 2], strides = [1, 1]} : vector<2x8xf32> to vector<2x2xf32>
    %701 = vector.extract_strided_slice %696 {offsets = [0, 6], sizes = [2, 2], strides = [1, 1]} : vector<2x8xf32> to vector<2x2xf32>
    %702 = arith.mulf %699, %635 : vector<2x2xf32>
    %703 = arith.mulf %698, %700 : vector<2x2xf32>
    %704 = arith.addf %702, %703 : vector<2x2xf32>
    %705 = math.tanh %704 : vector<2x2xf32>
    %706 = arith.mulf %701, %705 : vector<2x2xf32>
    %707 = vector.extract_strided_slice %706 {offsets = [0, 0], sizes = [2, 1], strides = [1, 1]} : vector<2x2xf32> to vector<2x1xf32>
    %708 = vector.extract_strided_slice %13 {offsets = [0, 0], sizes = [1, 8], strides = [1, 1]} : vector<2x8xf32> to vector<1x8xf32>
    %709 = vector.broadcast %707 : vector<2x1xf32> to vector<2x8xf32>
    %710 = vector.broadcast %708 : vector<1x8xf32> to vector<2x8xf32>
    %711 = arith.mulf %709, %710 : vector<2x8xf32>
    %712 = vector.extract_strided_slice %706 {offsets = [0, 1], sizes = [2, 1], strides = [1, 1]} : vector<2x2xf32> to vector<2x1xf32>
    %713 = vector.extract_strided_slice %13 {offsets = [1, 0], sizes = [1, 8], strides = [1, 1]} : vector<2x8xf32> to vector<1x8xf32>
    %714 = vector.broadcast %712 : vector<2x1xf32> to vector<2x8xf32>
    %715 = vector.broadcast %713 : vector<1x8xf32> to vector<2x8xf32>
    %716 = arith.mulf %714, %715 : vector<2x8xf32>
    %717 = arith.addf %711, %716 : vector<2x8xf32>
    %718 = vector.extract_strided_slice %677 {offsets = [0, 0], sizes = [2, 1], strides = [1, 1]} : vector<2x2xf32> to vector<2x1xf32>
    %719 = vector.extract_strided_slice %14 {offsets = [0, 0], sizes = [1, 8], strides = [1, 1]} : vector<2x8xf32> to vector<1x8xf32>
    %720 = vector.broadcast %718 : vector<2x1xf32> to vector<2x8xf32>
    %721 = vector.broadcast %719 : vector<1x8xf32> to vector<2x8xf32>
    %722 = arith.mulf %720, %721 : vector<2x8xf32>
    %723 = vector.extract_strided_slice %677 {offsets = [0, 1], sizes = [2, 1], strides = [1, 1]} : vector<2x2xf32> to vector<2x1xf32>
    %724 = vector.extract_strided_slice %14 {offsets = [1, 0], sizes = [1, 8], strides = [1, 1]} : vector<2x8xf32> to vector<1x8xf32>
    %725 = vector.broadcast %723 : vector<2x1xf32> to vector<2x8xf32>
    %726 = vector.broadcast %724 : vector<1x8xf32> to vector<2x8xf32>
    %727 = arith.mulf %725, %726 : vector<2x8xf32>
    %728 = arith.addf %722, %727 : vector<2x8xf32>
    %729 = arith.addf %717, %728 : vector<2x8xf32>
    %730 = vector.broadcast %15 : vector<1x8xf32> to vector<2x8xf32>
    %731 = arith.addf %729, %730 : vector<2x8xf32>
    %732 = arith.negf %731 : vector<2x8xf32>
    %733 = math.exp %732 : vector<2x8xf32>
    %cst_49 = arith.constant 1.000000e+00 : f32
    %734 = vector.broadcast %cst_49 : f32 to vector<2x8xf32>
    %735 = arith.addf %734, %733 : vector<2x8xf32>
    %736 = arith.divf %734, %735 : vector<2x8xf32>
    %737 = math.tanh %731 : vector<2x8xf32>
    %738 = vector.extract_strided_slice %736 {offsets = [0, 0], sizes = [2, 2], strides = [1, 1]} : vector<2x8xf32> to vector<2x2xf32>
    %739 = vector.extract_strided_slice %736 {offsets = [0, 2], sizes = [2, 2], strides = [1, 1]} : vector<2x8xf32> to vector<2x2xf32>
    %740 = vector.extract_strided_slice %737 {offsets = [0, 4], sizes = [2, 2], strides = [1, 1]} : vector<2x8xf32> to vector<2x2xf32>
    %741 = vector.extract_strided_slice %736 {offsets = [0, 6], sizes = [2, 2], strides = [1, 1]} : vector<2x8xf32> to vector<2x2xf32>
    %742 = arith.mulf %739, %675 : vector<2x2xf32>
    %743 = arith.mulf %738, %740 : vector<2x2xf32>
    %744 = arith.addf %742, %743 : vector<2x2xf32>
    %745 = math.tanh %744 : vector<2x2xf32>
    %746 = arith.mulf %741, %745 : vector<2x2xf32>
    %747 = vector.extract_strided_slice %52 {offsets = [0, 10, 0], sizes = [2, 1, 8], strides = [1, 1, 1]} : vector<2x16x8xf32> to vector<2x1x8xf32>
    %748 = vector.shape_cast %747 : vector<2x1x8xf32> to vector<2x8xf32>
    %749 = vector.extract_strided_slice %706 {offsets = [0, 0], sizes = [2, 1], strides = [1, 1]} : vector<2x2xf32> to vector<2x1xf32>
    %750 = vector.extract_strided_slice %11 {offsets = [0, 0], sizes = [1, 8], strides = [1, 1]} : vector<2x8xf32> to vector<1x8xf32>
    %751 = vector.broadcast %749 : vector<2x1xf32> to vector<2x8xf32>
    %752 = vector.broadcast %750 : vector<1x8xf32> to vector<2x8xf32>
    %753 = arith.mulf %751, %752 : vector<2x8xf32>
    %754 = vector.extract_strided_slice %706 {offsets = [0, 1], sizes = [2, 1], strides = [1, 1]} : vector<2x2xf32> to vector<2x1xf32>
    %755 = vector.extract_strided_slice %11 {offsets = [1, 0], sizes = [1, 8], strides = [1, 1]} : vector<2x8xf32> to vector<1x8xf32>
    %756 = vector.broadcast %754 : vector<2x1xf32> to vector<2x8xf32>
    %757 = vector.broadcast %755 : vector<1x8xf32> to vector<2x8xf32>
    %758 = arith.mulf %756, %757 : vector<2x8xf32>
    %759 = arith.addf %753, %758 : vector<2x8xf32>
    %760 = arith.addf %748, %759 : vector<2x8xf32>
    %761 = arith.negf %760 : vector<2x8xf32>
    %762 = math.exp %761 : vector<2x8xf32>
    %cst_50 = arith.constant 1.000000e+00 : f32
    %763 = vector.broadcast %cst_50 : f32 to vector<2x8xf32>
    %764 = arith.addf %763, %762 : vector<2x8xf32>
    %765 = arith.divf %763, %764 : vector<2x8xf32>
    %766 = math.tanh %760 : vector<2x8xf32>
    %767 = vector.extract_strided_slice %765 {offsets = [0, 0], sizes = [2, 2], strides = [1, 1]} : vector<2x8xf32> to vector<2x2xf32>
    %768 = vector.extract_strided_slice %765 {offsets = [0, 2], sizes = [2, 2], strides = [1, 1]} : vector<2x8xf32> to vector<2x2xf32>
    %769 = vector.extract_strided_slice %766 {offsets = [0, 4], sizes = [2, 2], strides = [1, 1]} : vector<2x8xf32> to vector<2x2xf32>
    %770 = vector.extract_strided_slice %765 {offsets = [0, 6], sizes = [2, 2], strides = [1, 1]} : vector<2x8xf32> to vector<2x2xf32>
    %771 = arith.mulf %768, %704 : vector<2x2xf32>
    %772 = arith.mulf %767, %769 : vector<2x2xf32>
    %773 = arith.addf %771, %772 : vector<2x2xf32>
    %774 = math.tanh %773 : vector<2x2xf32>
    %775 = arith.mulf %770, %774 : vector<2x2xf32>
    %776 = vector.extract_strided_slice %775 {offsets = [0, 0], sizes = [2, 1], strides = [1, 1]} : vector<2x2xf32> to vector<2x1xf32>
    %777 = vector.extract_strided_slice %13 {offsets = [0, 0], sizes = [1, 8], strides = [1, 1]} : vector<2x8xf32> to vector<1x8xf32>
    %778 = vector.broadcast %776 : vector<2x1xf32> to vector<2x8xf32>
    %779 = vector.broadcast %777 : vector<1x8xf32> to vector<2x8xf32>
    %780 = arith.mulf %778, %779 : vector<2x8xf32>
    %781 = vector.extract_strided_slice %775 {offsets = [0, 1], sizes = [2, 1], strides = [1, 1]} : vector<2x2xf32> to vector<2x1xf32>
    %782 = vector.extract_strided_slice %13 {offsets = [1, 0], sizes = [1, 8], strides = [1, 1]} : vector<2x8xf32> to vector<1x8xf32>
    %783 = vector.broadcast %781 : vector<2x1xf32> to vector<2x8xf32>
    %784 = vector.broadcast %782 : vector<1x8xf32> to vector<2x8xf32>
    %785 = arith.mulf %783, %784 : vector<2x8xf32>
    %786 = arith.addf %780, %785 : vector<2x8xf32>
    %787 = vector.extract_strided_slice %746 {offsets = [0, 0], sizes = [2, 1], strides = [1, 1]} : vector<2x2xf32> to vector<2x1xf32>
    %788 = vector.extract_strided_slice %14 {offsets = [0, 0], sizes = [1, 8], strides = [1, 1]} : vector<2x8xf32> to vector<1x8xf32>
    %789 = vector.broadcast %787 : vector<2x1xf32> to vector<2x8xf32>
    %790 = vector.broadcast %788 : vector<1x8xf32> to vector<2x8xf32>
    %791 = arith.mulf %789, %790 : vector<2x8xf32>
    %792 = vector.extract_strided_slice %746 {offsets = [0, 1], sizes = [2, 1], strides = [1, 1]} : vector<2x2xf32> to vector<2x1xf32>
    %793 = vector.extract_strided_slice %14 {offsets = [1, 0], sizes = [1, 8], strides = [1, 1]} : vector<2x8xf32> to vector<1x8xf32>
    %794 = vector.broadcast %792 : vector<2x1xf32> to vector<2x8xf32>
    %795 = vector.broadcast %793 : vector<1x8xf32> to vector<2x8xf32>
    %796 = arith.mulf %794, %795 : vector<2x8xf32>
    %797 = arith.addf %791, %796 : vector<2x8xf32>
    %798 = arith.addf %786, %797 : vector<2x8xf32>
    %799 = vector.broadcast %15 : vector<1x8xf32> to vector<2x8xf32>
    %800 = arith.addf %798, %799 : vector<2x8xf32>
    %801 = arith.negf %800 : vector<2x8xf32>
    %802 = math.exp %801 : vector<2x8xf32>
    %cst_51 = arith.constant 1.000000e+00 : f32
    %803 = vector.broadcast %cst_51 : f32 to vector<2x8xf32>
    %804 = arith.addf %803, %802 : vector<2x8xf32>
    %805 = arith.divf %803, %804 : vector<2x8xf32>
    %806 = math.tanh %800 : vector<2x8xf32>
    %807 = vector.extract_strided_slice %805 {offsets = [0, 0], sizes = [2, 2], strides = [1, 1]} : vector<2x8xf32> to vector<2x2xf32>
    %808 = vector.extract_strided_slice %805 {offsets = [0, 2], sizes = [2, 2], strides = [1, 1]} : vector<2x8xf32> to vector<2x2xf32>
    %809 = vector.extract_strided_slice %806 {offsets = [0, 4], sizes = [2, 2], strides = [1, 1]} : vector<2x8xf32> to vector<2x2xf32>
    %810 = vector.extract_strided_slice %805 {offsets = [0, 6], sizes = [2, 2], strides = [1, 1]} : vector<2x8xf32> to vector<2x2xf32>
    %811 = arith.mulf %808, %744 : vector<2x2xf32>
    %812 = arith.mulf %807, %809 : vector<2x2xf32>
    %813 = arith.addf %811, %812 : vector<2x2xf32>
    %814 = math.tanh %813 : vector<2x2xf32>
    %815 = arith.mulf %810, %814 : vector<2x2xf32>
    %816 = vector.extract_strided_slice %52 {offsets = [0, 11, 0], sizes = [2, 1, 8], strides = [1, 1, 1]} : vector<2x16x8xf32> to vector<2x1x8xf32>
    %817 = vector.shape_cast %816 : vector<2x1x8xf32> to vector<2x8xf32>
    %818 = vector.extract_strided_slice %775 {offsets = [0, 0], sizes = [2, 1], strides = [1, 1]} : vector<2x2xf32> to vector<2x1xf32>
    %819 = vector.extract_strided_slice %11 {offsets = [0, 0], sizes = [1, 8], strides = [1, 1]} : vector<2x8xf32> to vector<1x8xf32>
    %820 = vector.broadcast %818 : vector<2x1xf32> to vector<2x8xf32>
    %821 = vector.broadcast %819 : vector<1x8xf32> to vector<2x8xf32>
    %822 = arith.mulf %820, %821 : vector<2x8xf32>
    %823 = vector.extract_strided_slice %775 {offsets = [0, 1], sizes = [2, 1], strides = [1, 1]} : vector<2x2xf32> to vector<2x1xf32>
    %824 = vector.extract_strided_slice %11 {offsets = [1, 0], sizes = [1, 8], strides = [1, 1]} : vector<2x8xf32> to vector<1x8xf32>
    %825 = vector.broadcast %823 : vector<2x1xf32> to vector<2x8xf32>
    %826 = vector.broadcast %824 : vector<1x8xf32> to vector<2x8xf32>
    %827 = arith.mulf %825, %826 : vector<2x8xf32>
    %828 = arith.addf %822, %827 : vector<2x8xf32>
    %829 = arith.addf %817, %828 : vector<2x8xf32>
    %830 = arith.negf %829 : vector<2x8xf32>
    %831 = math.exp %830 : vector<2x8xf32>
    %cst_52 = arith.constant 1.000000e+00 : f32
    %832 = vector.broadcast %cst_52 : f32 to vector<2x8xf32>
    %833 = arith.addf %832, %831 : vector<2x8xf32>
    %834 = arith.divf %832, %833 : vector<2x8xf32>
    %835 = math.tanh %829 : vector<2x8xf32>
    %836 = vector.extract_strided_slice %834 {offsets = [0, 0], sizes = [2, 2], strides = [1, 1]} : vector<2x8xf32> to vector<2x2xf32>
    %837 = vector.extract_strided_slice %834 {offsets = [0, 2], sizes = [2, 2], strides = [1, 1]} : vector<2x8xf32> to vector<2x2xf32>
    %838 = vector.extract_strided_slice %835 {offsets = [0, 4], sizes = [2, 2], strides = [1, 1]} : vector<2x8xf32> to vector<2x2xf32>
    %839 = vector.extract_strided_slice %834 {offsets = [0, 6], sizes = [2, 2], strides = [1, 1]} : vector<2x8xf32> to vector<2x2xf32>
    %840 = arith.mulf %837, %773 : vector<2x2xf32>
    %841 = arith.mulf %836, %838 : vector<2x2xf32>
    %842 = arith.addf %840, %841 : vector<2x2xf32>
    %843 = math.tanh %842 : vector<2x2xf32>
    %844 = arith.mulf %839, %843 : vector<2x2xf32>
    %845 = vector.extract_strided_slice %844 {offsets = [0, 0], sizes = [2, 1], strides = [1, 1]} : vector<2x2xf32> to vector<2x1xf32>
    %846 = vector.extract_strided_slice %13 {offsets = [0, 0], sizes = [1, 8], strides = [1, 1]} : vector<2x8xf32> to vector<1x8xf32>
    %847 = vector.broadcast %845 : vector<2x1xf32> to vector<2x8xf32>
    %848 = vector.broadcast %846 : vector<1x8xf32> to vector<2x8xf32>
    %849 = arith.mulf %847, %848 : vector<2x8xf32>
    %850 = vector.extract_strided_slice %844 {offsets = [0, 1], sizes = [2, 1], strides = [1, 1]} : vector<2x2xf32> to vector<2x1xf32>
    %851 = vector.extract_strided_slice %13 {offsets = [1, 0], sizes = [1, 8], strides = [1, 1]} : vector<2x8xf32> to vector<1x8xf32>
    %852 = vector.broadcast %850 : vector<2x1xf32> to vector<2x8xf32>
    %853 = vector.broadcast %851 : vector<1x8xf32> to vector<2x8xf32>
    %854 = arith.mulf %852, %853 : vector<2x8xf32>
    %855 = arith.addf %849, %854 : vector<2x8xf32>
    %856 = vector.extract_strided_slice %815 {offsets = [0, 0], sizes = [2, 1], strides = [1, 1]} : vector<2x2xf32> to vector<2x1xf32>
    %857 = vector.extract_strided_slice %14 {offsets = [0, 0], sizes = [1, 8], strides = [1, 1]} : vector<2x8xf32> to vector<1x8xf32>
    %858 = vector.broadcast %856 : vector<2x1xf32> to vector<2x8xf32>
    %859 = vector.broadcast %857 : vector<1x8xf32> to vector<2x8xf32>
    %860 = arith.mulf %858, %859 : vector<2x8xf32>
    %861 = vector.extract_strided_slice %815 {offsets = [0, 1], sizes = [2, 1], strides = [1, 1]} : vector<2x2xf32> to vector<2x1xf32>
    %862 = vector.extract_strided_slice %14 {offsets = [1, 0], sizes = [1, 8], strides = [1, 1]} : vector<2x8xf32> to vector<1x8xf32>
    %863 = vector.broadcast %861 : vector<2x1xf32> to vector<2x8xf32>
    %864 = vector.broadcast %862 : vector<1x8xf32> to vector<2x8xf32>
    %865 = arith.mulf %863, %864 : vector<2x8xf32>
    %866 = arith.addf %860, %865 : vector<2x8xf32>
    %867 = arith.addf %855, %866 : vector<2x8xf32>
    %868 = vector.broadcast %15 : vector<1x8xf32> to vector<2x8xf32>
    %869 = arith.addf %867, %868 : vector<2x8xf32>
    %870 = arith.negf %869 : vector<2x8xf32>
    %871 = math.exp %870 : vector<2x8xf32>
    %cst_53 = arith.constant 1.000000e+00 : f32
    %872 = vector.broadcast %cst_53 : f32 to vector<2x8xf32>
    %873 = arith.addf %872, %871 : vector<2x8xf32>
    %874 = arith.divf %872, %873 : vector<2x8xf32>
    %875 = math.tanh %869 : vector<2x8xf32>
    %876 = vector.extract_strided_slice %874 {offsets = [0, 0], sizes = [2, 2], strides = [1, 1]} : vector<2x8xf32> to vector<2x2xf32>
    %877 = vector.extract_strided_slice %874 {offsets = [0, 2], sizes = [2, 2], strides = [1, 1]} : vector<2x8xf32> to vector<2x2xf32>
    %878 = vector.extract_strided_slice %875 {offsets = [0, 4], sizes = [2, 2], strides = [1, 1]} : vector<2x8xf32> to vector<2x2xf32>
    %879 = vector.extract_strided_slice %874 {offsets = [0, 6], sizes = [2, 2], strides = [1, 1]} : vector<2x8xf32> to vector<2x2xf32>
    %880 = arith.mulf %877, %813 : vector<2x2xf32>
    %881 = arith.mulf %876, %878 : vector<2x2xf32>
    %882 = arith.addf %880, %881 : vector<2x2xf32>
    %883 = math.tanh %882 : vector<2x2xf32>
    %884 = arith.mulf %879, %883 : vector<2x2xf32>
    %885 = vector.extract_strided_slice %52 {offsets = [0, 12, 0], sizes = [2, 1, 8], strides = [1, 1, 1]} : vector<2x16x8xf32> to vector<2x1x8xf32>
    %886 = vector.shape_cast %885 : vector<2x1x8xf32> to vector<2x8xf32>
    %887 = vector.extract_strided_slice %844 {offsets = [0, 0], sizes = [2, 1], strides = [1, 1]} : vector<2x2xf32> to vector<2x1xf32>
    %888 = vector.extract_strided_slice %11 {offsets = [0, 0], sizes = [1, 8], strides = [1, 1]} : vector<2x8xf32> to vector<1x8xf32>
    %889 = vector.broadcast %887 : vector<2x1xf32> to vector<2x8xf32>
    %890 = vector.broadcast %888 : vector<1x8xf32> to vector<2x8xf32>
    %891 = arith.mulf %889, %890 : vector<2x8xf32>
    %892 = vector.extract_strided_slice %844 {offsets = [0, 1], sizes = [2, 1], strides = [1, 1]} : vector<2x2xf32> to vector<2x1xf32>
    %893 = vector.extract_strided_slice %11 {offsets = [1, 0], sizes = [1, 8], strides = [1, 1]} : vector<2x8xf32> to vector<1x8xf32>
    %894 = vector.broadcast %892 : vector<2x1xf32> to vector<2x8xf32>
    %895 = vector.broadcast %893 : vector<1x8xf32> to vector<2x8xf32>
    %896 = arith.mulf %894, %895 : vector<2x8xf32>
    %897 = arith.addf %891, %896 : vector<2x8xf32>
    %898 = arith.addf %886, %897 : vector<2x8xf32>
    %899 = arith.negf %898 : vector<2x8xf32>
    %900 = math.exp %899 : vector<2x8xf32>
    %cst_54 = arith.constant 1.000000e+00 : f32
    %901 = vector.broadcast %cst_54 : f32 to vector<2x8xf32>
    %902 = arith.addf %901, %900 : vector<2x8xf32>
    %903 = arith.divf %901, %902 : vector<2x8xf32>
    %904 = math.tanh %898 : vector<2x8xf32>
    %905 = vector.extract_strided_slice %903 {offsets = [0, 0], sizes = [2, 2], strides = [1, 1]} : vector<2x8xf32> to vector<2x2xf32>
    %906 = vector.extract_strided_slice %903 {offsets = [0, 2], sizes = [2, 2], strides = [1, 1]} : vector<2x8xf32> to vector<2x2xf32>
    %907 = vector.extract_strided_slice %904 {offsets = [0, 4], sizes = [2, 2], strides = [1, 1]} : vector<2x8xf32> to vector<2x2xf32>
    %908 = vector.extract_strided_slice %903 {offsets = [0, 6], sizes = [2, 2], strides = [1, 1]} : vector<2x8xf32> to vector<2x2xf32>
    %909 = arith.mulf %906, %842 : vector<2x2xf32>
    %910 = arith.mulf %905, %907 : vector<2x2xf32>
    %911 = arith.addf %909, %910 : vector<2x2xf32>
    %912 = math.tanh %911 : vector<2x2xf32>
    %913 = arith.mulf %908, %912 : vector<2x2xf32>
    %914 = vector.extract_strided_slice %913 {offsets = [0, 0], sizes = [2, 1], strides = [1, 1]} : vector<2x2xf32> to vector<2x1xf32>
    %915 = vector.extract_strided_slice %13 {offsets = [0, 0], sizes = [1, 8], strides = [1, 1]} : vector<2x8xf32> to vector<1x8xf32>
    %916 = vector.broadcast %914 : vector<2x1xf32> to vector<2x8xf32>
    %917 = vector.broadcast %915 : vector<1x8xf32> to vector<2x8xf32>
    %918 = arith.mulf %916, %917 : vector<2x8xf32>
    %919 = vector.extract_strided_slice %913 {offsets = [0, 1], sizes = [2, 1], strides = [1, 1]} : vector<2x2xf32> to vector<2x1xf32>
    %920 = vector.extract_strided_slice %13 {offsets = [1, 0], sizes = [1, 8], strides = [1, 1]} : vector<2x8xf32> to vector<1x8xf32>
    %921 = vector.broadcast %919 : vector<2x1xf32> to vector<2x8xf32>
    %922 = vector.broadcast %920 : vector<1x8xf32> to vector<2x8xf32>
    %923 = arith.mulf %921, %922 : vector<2x8xf32>
    %924 = arith.addf %918, %923 : vector<2x8xf32>
    %925 = vector.extract_strided_slice %884 {offsets = [0, 0], sizes = [2, 1], strides = [1, 1]} : vector<2x2xf32> to vector<2x1xf32>
    %926 = vector.extract_strided_slice %14 {offsets = [0, 0], sizes = [1, 8], strides = [1, 1]} : vector<2x8xf32> to vector<1x8xf32>
    %927 = vector.broadcast %925 : vector<2x1xf32> to vector<2x8xf32>
    %928 = vector.broadcast %926 : vector<1x8xf32> to vector<2x8xf32>
    %929 = arith.mulf %927, %928 : vector<2x8xf32>
    %930 = vector.extract_strided_slice %884 {offsets = [0, 1], sizes = [2, 1], strides = [1, 1]} : vector<2x2xf32> to vector<2x1xf32>
    %931 = vector.extract_strided_slice %14 {offsets = [1, 0], sizes = [1, 8], strides = [1, 1]} : vector<2x8xf32> to vector<1x8xf32>
    %932 = vector.broadcast %930 : vector<2x1xf32> to vector<2x8xf32>
    %933 = vector.broadcast %931 : vector<1x8xf32> to vector<2x8xf32>
    %934 = arith.mulf %932, %933 : vector<2x8xf32>
    %935 = arith.addf %929, %934 : vector<2x8xf32>
    %936 = arith.addf %924, %935 : vector<2x8xf32>
    %937 = vector.broadcast %15 : vector<1x8xf32> to vector<2x8xf32>
    %938 = arith.addf %936, %937 : vector<2x8xf32>
    %939 = arith.negf %938 : vector<2x8xf32>
    %940 = math.exp %939 : vector<2x8xf32>
    %cst_55 = arith.constant 1.000000e+00 : f32
    %941 = vector.broadcast %cst_55 : f32 to vector<2x8xf32>
    %942 = arith.addf %941, %940 : vector<2x8xf32>
    %943 = arith.divf %941, %942 : vector<2x8xf32>
    %944 = math.tanh %938 : vector<2x8xf32>
    %945 = vector.extract_strided_slice %943 {offsets = [0, 0], sizes = [2, 2], strides = [1, 1]} : vector<2x8xf32> to vector<2x2xf32>
    %946 = vector.extract_strided_slice %943 {offsets = [0, 2], sizes = [2, 2], strides = [1, 1]} : vector<2x8xf32> to vector<2x2xf32>
    %947 = vector.extract_strided_slice %944 {offsets = [0, 4], sizes = [2, 2], strides = [1, 1]} : vector<2x8xf32> to vector<2x2xf32>
    %948 = vector.extract_strided_slice %943 {offsets = [0, 6], sizes = [2, 2], strides = [1, 1]} : vector<2x8xf32> to vector<2x2xf32>
    %949 = arith.mulf %946, %882 : vector<2x2xf32>
    %950 = arith.mulf %945, %947 : vector<2x2xf32>
    %951 = arith.addf %949, %950 : vector<2x2xf32>
    %952 = math.tanh %951 : vector<2x2xf32>
    %953 = arith.mulf %948, %952 : vector<2x2xf32>
    %954 = vector.extract_strided_slice %52 {offsets = [0, 13, 0], sizes = [2, 1, 8], strides = [1, 1, 1]} : vector<2x16x8xf32> to vector<2x1x8xf32>
    %955 = vector.shape_cast %954 : vector<2x1x8xf32> to vector<2x8xf32>
    %956 = vector.extract_strided_slice %913 {offsets = [0, 0], sizes = [2, 1], strides = [1, 1]} : vector<2x2xf32> to vector<2x1xf32>
    %957 = vector.extract_strided_slice %11 {offsets = [0, 0], sizes = [1, 8], strides = [1, 1]} : vector<2x8xf32> to vector<1x8xf32>
    %958 = vector.broadcast %956 : vector<2x1xf32> to vector<2x8xf32>
    %959 = vector.broadcast %957 : vector<1x8xf32> to vector<2x8xf32>
    %960 = arith.mulf %958, %959 : vector<2x8xf32>
    %961 = vector.extract_strided_slice %913 {offsets = [0, 1], sizes = [2, 1], strides = [1, 1]} : vector<2x2xf32> to vector<2x1xf32>
    %962 = vector.extract_strided_slice %11 {offsets = [1, 0], sizes = [1, 8], strides = [1, 1]} : vector<2x8xf32> to vector<1x8xf32>
    %963 = vector.broadcast %961 : vector<2x1xf32> to vector<2x8xf32>
    %964 = vector.broadcast %962 : vector<1x8xf32> to vector<2x8xf32>
    %965 = arith.mulf %963, %964 : vector<2x8xf32>
    %966 = arith.addf %960, %965 : vector<2x8xf32>
    %967 = arith.addf %955, %966 : vector<2x8xf32>
    %968 = arith.negf %967 : vector<2x8xf32>
    %969 = math.exp %968 : vector<2x8xf32>
    %cst_56 = arith.constant 1.000000e+00 : f32
    %970 = vector.broadcast %cst_56 : f32 to vector<2x8xf32>
    %971 = arith.addf %970, %969 : vector<2x8xf32>
    %972 = arith.divf %970, %971 : vector<2x8xf32>
    %973 = math.tanh %967 : vector<2x8xf32>
    %974 = vector.extract_strided_slice %972 {offsets = [0, 0], sizes = [2, 2], strides = [1, 1]} : vector<2x8xf32> to vector<2x2xf32>
    %975 = vector.extract_strided_slice %972 {offsets = [0, 2], sizes = [2, 2], strides = [1, 1]} : vector<2x8xf32> to vector<2x2xf32>
    %976 = vector.extract_strided_slice %973 {offsets = [0, 4], sizes = [2, 2], strides = [1, 1]} : vector<2x8xf32> to vector<2x2xf32>
    %977 = vector.extract_strided_slice %972 {offsets = [0, 6], sizes = [2, 2], strides = [1, 1]} : vector<2x8xf32> to vector<2x2xf32>
    %978 = arith.mulf %975, %911 : vector<2x2xf32>
    %979 = arith.mulf %974, %976 : vector<2x2xf32>
    %980 = arith.addf %978, %979 : vector<2x2xf32>
    %981 = math.tanh %980 : vector<2x2xf32>
    %982 = arith.mulf %977, %981 : vector<2x2xf32>
    %983 = vector.extract_strided_slice %982 {offsets = [0, 0], sizes = [2, 1], strides = [1, 1]} : vector<2x2xf32> to vector<2x1xf32>
    %984 = vector.extract_strided_slice %13 {offsets = [0, 0], sizes = [1, 8], strides = [1, 1]} : vector<2x8xf32> to vector<1x8xf32>
    %985 = vector.broadcast %983 : vector<2x1xf32> to vector<2x8xf32>
    %986 = vector.broadcast %984 : vector<1x8xf32> to vector<2x8xf32>
    %987 = arith.mulf %985, %986 : vector<2x8xf32>
    %988 = vector.extract_strided_slice %982 {offsets = [0, 1], sizes = [2, 1], strides = [1, 1]} : vector<2x2xf32> to vector<2x1xf32>
    %989 = vector.extract_strided_slice %13 {offsets = [1, 0], sizes = [1, 8], strides = [1, 1]} : vector<2x8xf32> to vector<1x8xf32>
    %990 = vector.broadcast %988 : vector<2x1xf32> to vector<2x8xf32>
    %991 = vector.broadcast %989 : vector<1x8xf32> to vector<2x8xf32>
    %992 = arith.mulf %990, %991 : vector<2x8xf32>
    %993 = arith.addf %987, %992 : vector<2x8xf32>
    %994 = vector.extract_strided_slice %953 {offsets = [0, 0], sizes = [2, 1], strides = [1, 1]} : vector<2x2xf32> to vector<2x1xf32>
    %995 = vector.extract_strided_slice %14 {offsets = [0, 0], sizes = [1, 8], strides = [1, 1]} : vector<2x8xf32> to vector<1x8xf32>
    %996 = vector.broadcast %994 : vector<2x1xf32> to vector<2x8xf32>
    %997 = vector.broadcast %995 : vector<1x8xf32> to vector<2x8xf32>
    %998 = arith.mulf %996, %997 : vector<2x8xf32>
    %999 = vector.extract_strided_slice %953 {offsets = [0, 1], sizes = [2, 1], strides = [1, 1]} : vector<2x2xf32> to vector<2x1xf32>
    %1000 = vector.extract_strided_slice %14 {offsets = [1, 0], sizes = [1, 8], strides = [1, 1]} : vector<2x8xf32> to vector<1x8xf32>
    %1001 = vector.broadcast %999 : vector<2x1xf32> to vector<2x8xf32>
    %1002 = vector.broadcast %1000 : vector<1x8xf32> to vector<2x8xf32>
    %1003 = arith.mulf %1001, %1002 : vector<2x8xf32>
    %1004 = arith.addf %998, %1003 : vector<2x8xf32>
    %1005 = arith.addf %993, %1004 : vector<2x8xf32>
    %1006 = vector.broadcast %15 : vector<1x8xf32> to vector<2x8xf32>
    %1007 = arith.addf %1005, %1006 : vector<2x8xf32>
    %1008 = arith.negf %1007 : vector<2x8xf32>
    %1009 = math.exp %1008 : vector<2x8xf32>
    %cst_57 = arith.constant 1.000000e+00 : f32
    %1010 = vector.broadcast %cst_57 : f32 to vector<2x8xf32>
    %1011 = arith.addf %1010, %1009 : vector<2x8xf32>
    %1012 = arith.divf %1010, %1011 : vector<2x8xf32>
    %1013 = math.tanh %1007 : vector<2x8xf32>
    %1014 = vector.extract_strided_slice %1012 {offsets = [0, 0], sizes = [2, 2], strides = [1, 1]} : vector<2x8xf32> to vector<2x2xf32>
    %1015 = vector.extract_strided_slice %1012 {offsets = [0, 2], sizes = [2, 2], strides = [1, 1]} : vector<2x8xf32> to vector<2x2xf32>
    %1016 = vector.extract_strided_slice %1013 {offsets = [0, 4], sizes = [2, 2], strides = [1, 1]} : vector<2x8xf32> to vector<2x2xf32>
    %1017 = vector.extract_strided_slice %1012 {offsets = [0, 6], sizes = [2, 2], strides = [1, 1]} : vector<2x8xf32> to vector<2x2xf32>
    %1018 = arith.mulf %1015, %951 : vector<2x2xf32>
    %1019 = arith.mulf %1014, %1016 : vector<2x2xf32>
    %1020 = arith.addf %1018, %1019 : vector<2x2xf32>
    %1021 = math.tanh %1020 : vector<2x2xf32>
    %1022 = arith.mulf %1017, %1021 : vector<2x2xf32>
    %1023 = vector.extract_strided_slice %52 {offsets = [0, 14, 0], sizes = [2, 1, 8], strides = [1, 1, 1]} : vector<2x16x8xf32> to vector<2x1x8xf32>
    %1024 = vector.shape_cast %1023 : vector<2x1x8xf32> to vector<2x8xf32>
    %1025 = vector.extract_strided_slice %982 {offsets = [0, 0], sizes = [2, 1], strides = [1, 1]} : vector<2x2xf32> to vector<2x1xf32>
    %1026 = vector.extract_strided_slice %11 {offsets = [0, 0], sizes = [1, 8], strides = [1, 1]} : vector<2x8xf32> to vector<1x8xf32>
    %1027 = vector.broadcast %1025 : vector<2x1xf32> to vector<2x8xf32>
    %1028 = vector.broadcast %1026 : vector<1x8xf32> to vector<2x8xf32>
    %1029 = arith.mulf %1027, %1028 : vector<2x8xf32>
    %1030 = vector.extract_strided_slice %982 {offsets = [0, 1], sizes = [2, 1], strides = [1, 1]} : vector<2x2xf32> to vector<2x1xf32>
    %1031 = vector.extract_strided_slice %11 {offsets = [1, 0], sizes = [1, 8], strides = [1, 1]} : vector<2x8xf32> to vector<1x8xf32>
    %1032 = vector.broadcast %1030 : vector<2x1xf32> to vector<2x8xf32>
    %1033 = vector.broadcast %1031 : vector<1x8xf32> to vector<2x8xf32>
    %1034 = arith.mulf %1032, %1033 : vector<2x8xf32>
    %1035 = arith.addf %1029, %1034 : vector<2x8xf32>
    %1036 = arith.addf %1024, %1035 : vector<2x8xf32>
    %1037 = arith.negf %1036 : vector<2x8xf32>
    %1038 = math.exp %1037 : vector<2x8xf32>
    %cst_58 = arith.constant 1.000000e+00 : f32
    %1039 = vector.broadcast %cst_58 : f32 to vector<2x8xf32>
    %1040 = arith.addf %1039, %1038 : vector<2x8xf32>
    %1041 = arith.divf %1039, %1040 : vector<2x8xf32>
    %1042 = math.tanh %1036 : vector<2x8xf32>
    %1043 = vector.extract_strided_slice %1041 {offsets = [0, 0], sizes = [2, 2], strides = [1, 1]} : vector<2x8xf32> to vector<2x2xf32>
    %1044 = vector.extract_strided_slice %1041 {offsets = [0, 2], sizes = [2, 2], strides = [1, 1]} : vector<2x8xf32> to vector<2x2xf32>
    %1045 = vector.extract_strided_slice %1042 {offsets = [0, 4], sizes = [2, 2], strides = [1, 1]} : vector<2x8xf32> to vector<2x2xf32>
    %1046 = vector.extract_strided_slice %1041 {offsets = [0, 6], sizes = [2, 2], strides = [1, 1]} : vector<2x8xf32> to vector<2x2xf32>
    %1047 = arith.mulf %1044, %980 : vector<2x2xf32>
    %1048 = arith.mulf %1043, %1045 : vector<2x2xf32>
    %1049 = arith.addf %1047, %1048 : vector<2x2xf32>
    %1050 = math.tanh %1049 : vector<2x2xf32>
    %1051 = arith.mulf %1046, %1050 : vector<2x2xf32>
    %1052 = vector.extract_strided_slice %1051 {offsets = [0, 0], sizes = [2, 1], strides = [1, 1]} : vector<2x2xf32> to vector<2x1xf32>
    %1053 = vector.extract_strided_slice %13 {offsets = [0, 0], sizes = [1, 8], strides = [1, 1]} : vector<2x8xf32> to vector<1x8xf32>
    %1054 = vector.broadcast %1052 : vector<2x1xf32> to vector<2x8xf32>
    %1055 = vector.broadcast %1053 : vector<1x8xf32> to vector<2x8xf32>
    %1056 = arith.mulf %1054, %1055 : vector<2x8xf32>
    %1057 = vector.extract_strided_slice %1051 {offsets = [0, 1], sizes = [2, 1], strides = [1, 1]} : vector<2x2xf32> to vector<2x1xf32>
    %1058 = vector.extract_strided_slice %13 {offsets = [1, 0], sizes = [1, 8], strides = [1, 1]} : vector<2x8xf32> to vector<1x8xf32>
    %1059 = vector.broadcast %1057 : vector<2x1xf32> to vector<2x8xf32>
    %1060 = vector.broadcast %1058 : vector<1x8xf32> to vector<2x8xf32>
    %1061 = arith.mulf %1059, %1060 : vector<2x8xf32>
    %1062 = arith.addf %1056, %1061 : vector<2x8xf32>
    %1063 = vector.extract_strided_slice %1022 {offsets = [0, 0], sizes = [2, 1], strides = [1, 1]} : vector<2x2xf32> to vector<2x1xf32>
    %1064 = vector.extract_strided_slice %14 {offsets = [0, 0], sizes = [1, 8], strides = [1, 1]} : vector<2x8xf32> to vector<1x8xf32>
    %1065 = vector.broadcast %1063 : vector<2x1xf32> to vector<2x8xf32>
    %1066 = vector.broadcast %1064 : vector<1x8xf32> to vector<2x8xf32>
    %1067 = arith.mulf %1065, %1066 : vector<2x8xf32>
    %1068 = vector.extract_strided_slice %1022 {offsets = [0, 1], sizes = [2, 1], strides = [1, 1]} : vector<2x2xf32> to vector<2x1xf32>
    %1069 = vector.extract_strided_slice %14 {offsets = [1, 0], sizes = [1, 8], strides = [1, 1]} : vector<2x8xf32> to vector<1x8xf32>
    %1070 = vector.broadcast %1068 : vector<2x1xf32> to vector<2x8xf32>
    %1071 = vector.broadcast %1069 : vector<1x8xf32> to vector<2x8xf32>
    %1072 = arith.mulf %1070, %1071 : vector<2x8xf32>
    %1073 = arith.addf %1067, %1072 : vector<2x8xf32>
    %1074 = arith.addf %1062, %1073 : vector<2x8xf32>
    %1075 = vector.broadcast %15 : vector<1x8xf32> to vector<2x8xf32>
    %1076 = arith.addf %1074, %1075 : vector<2x8xf32>
    %1077 = arith.negf %1076 : vector<2x8xf32>
    %1078 = math.exp %1077 : vector<2x8xf32>
    %cst_59 = arith.constant 1.000000e+00 : f32
    %1079 = vector.broadcast %cst_59 : f32 to vector<2x8xf32>
    %1080 = arith.addf %1079, %1078 : vector<2x8xf32>
    %1081 = arith.divf %1079, %1080 : vector<2x8xf32>
    %1082 = math.tanh %1076 : vector<2x8xf32>
    %1083 = vector.extract_strided_slice %1081 {offsets = [0, 0], sizes = [2, 2], strides = [1, 1]} : vector<2x8xf32> to vector<2x2xf32>
    %1084 = vector.extract_strided_slice %1081 {offsets = [0, 2], sizes = [2, 2], strides = [1, 1]} : vector<2x8xf32> to vector<2x2xf32>
    %1085 = vector.extract_strided_slice %1082 {offsets = [0, 4], sizes = [2, 2], strides = [1, 1]} : vector<2x8xf32> to vector<2x2xf32>
    %1086 = vector.extract_strided_slice %1081 {offsets = [0, 6], sizes = [2, 2], strides = [1, 1]} : vector<2x8xf32> to vector<2x2xf32>
    %1087 = arith.mulf %1084, %1020 : vector<2x2xf32>
    %1088 = arith.mulf %1083, %1085 : vector<2x2xf32>
    %1089 = arith.addf %1087, %1088 : vector<2x2xf32>
    %1090 = math.tanh %1089 : vector<2x2xf32>
    %1091 = arith.mulf %1086, %1090 : vector<2x2xf32>
    %1092 = vector.extract_strided_slice %52 {offsets = [0, 15, 0], sizes = [2, 1, 8], strides = [1, 1, 1]} : vector<2x16x8xf32> to vector<2x1x8xf32>
    %1093 = vector.shape_cast %1092 : vector<2x1x8xf32> to vector<2x8xf32>
    %1094 = vector.extract_strided_slice %1051 {offsets = [0, 0], sizes = [2, 1], strides = [1, 1]} : vector<2x2xf32> to vector<2x1xf32>
    %1095 = vector.extract_strided_slice %11 {offsets = [0, 0], sizes = [1, 8], strides = [1, 1]} : vector<2x8xf32> to vector<1x8xf32>
    %1096 = vector.broadcast %1094 : vector<2x1xf32> to vector<2x8xf32>
    %1097 = vector.broadcast %1095 : vector<1x8xf32> to vector<2x8xf32>
    %1098 = arith.mulf %1096, %1097 : vector<2x8xf32>
    %1099 = vector.extract_strided_slice %1051 {offsets = [0, 1], sizes = [2, 1], strides = [1, 1]} : vector<2x2xf32> to vector<2x1xf32>
    %1100 = vector.extract_strided_slice %11 {offsets = [1, 0], sizes = [1, 8], strides = [1, 1]} : vector<2x8xf32> to vector<1x8xf32>
    %1101 = vector.broadcast %1099 : vector<2x1xf32> to vector<2x8xf32>
    %1102 = vector.broadcast %1100 : vector<1x8xf32> to vector<2x8xf32>
    %1103 = arith.mulf %1101, %1102 : vector<2x8xf32>
    %1104 = arith.addf %1098, %1103 : vector<2x8xf32>
    %1105 = arith.addf %1093, %1104 : vector<2x8xf32>
    %1106 = arith.negf %1105 : vector<2x8xf32>
    %1107 = math.exp %1106 : vector<2x8xf32>
    %cst_60 = arith.constant 1.000000e+00 : f32
    %1108 = vector.broadcast %cst_60 : f32 to vector<2x8xf32>
    %1109 = arith.addf %1108, %1107 : vector<2x8xf32>
    %1110 = arith.divf %1108, %1109 : vector<2x8xf32>
    %1111 = math.tanh %1105 : vector<2x8xf32>
    %1112 = vector.extract_strided_slice %1110 {offsets = [0, 0], sizes = [2, 2], strides = [1, 1]} : vector<2x8xf32> to vector<2x2xf32>
    %1113 = vector.extract_strided_slice %1110 {offsets = [0, 2], sizes = [2, 2], strides = [1, 1]} : vector<2x8xf32> to vector<2x2xf32>
    %1114 = vector.extract_strided_slice %1111 {offsets = [0, 4], sizes = [2, 2], strides = [1, 1]} : vector<2x8xf32> to vector<2x2xf32>
    %1115 = vector.extract_strided_slice %1110 {offsets = [0, 6], sizes = [2, 2], strides = [1, 1]} : vector<2x8xf32> to vector<2x2xf32>
    %1116 = arith.mulf %1113, %1049 : vector<2x2xf32>
    %1117 = arith.mulf %1112, %1114 : vector<2x2xf32>
    %1118 = arith.addf %1116, %1117 : vector<2x2xf32>
    %1119 = math.tanh %1118 : vector<2x2xf32>
    %1120 = arith.mulf %1115, %1119 : vector<2x2xf32>
    %1121 = vector.extract_strided_slice %1120 {offsets = [0, 0], sizes = [2, 1], strides = [1, 1]} : vector<2x2xf32> to vector<2x1xf32>
    %1122 = vector.extract_strided_slice %13 {offsets = [0, 0], sizes = [1, 8], strides = [1, 1]} : vector<2x8xf32> to vector<1x8xf32>
    %1123 = vector.broadcast %1121 : vector<2x1xf32> to vector<2x8xf32>
    %1124 = vector.broadcast %1122 : vector<1x8xf32> to vector<2x8xf32>
    %1125 = arith.mulf %1123, %1124 : vector<2x8xf32>
    %1126 = vector.extract_strided_slice %1120 {offsets = [0, 1], sizes = [2, 1], strides = [1, 1]} : vector<2x2xf32> to vector<2x1xf32>
    %1127 = vector.extract_strided_slice %13 {offsets = [1, 0], sizes = [1, 8], strides = [1, 1]} : vector<2x8xf32> to vector<1x8xf32>
    %1128 = vector.broadcast %1126 : vector<2x1xf32> to vector<2x8xf32>
    %1129 = vector.broadcast %1127 : vector<1x8xf32> to vector<2x8xf32>
    %1130 = arith.mulf %1128, %1129 : vector<2x8xf32>
    %1131 = arith.addf %1125, %1130 : vector<2x8xf32>
    %1132 = vector.extract_strided_slice %1091 {offsets = [0, 0], sizes = [2, 1], strides = [1, 1]} : vector<2x2xf32> to vector<2x1xf32>
    %1133 = vector.extract_strided_slice %14 {offsets = [0, 0], sizes = [1, 8], strides = [1, 1]} : vector<2x8xf32> to vector<1x8xf32>
    %1134 = vector.broadcast %1132 : vector<2x1xf32> to vector<2x8xf32>
    %1135 = vector.broadcast %1133 : vector<1x8xf32> to vector<2x8xf32>
    %1136 = arith.mulf %1134, %1135 : vector<2x8xf32>
    %1137 = vector.extract_strided_slice %1091 {offsets = [0, 1], sizes = [2, 1], strides = [1, 1]} : vector<2x2xf32> to vector<2x1xf32>
    %1138 = vector.extract_strided_slice %14 {offsets = [1, 0], sizes = [1, 8], strides = [1, 1]} : vector<2x8xf32> to vector<1x8xf32>
    %1139 = vector.broadcast %1137 : vector<2x1xf32> to vector<2x8xf32>
    %1140 = vector.broadcast %1138 : vector<1x8xf32> to vector<2x8xf32>
    %1141 = arith.mulf %1139, %1140 : vector<2x8xf32>
    %1142 = arith.addf %1136, %1141 : vector<2x8xf32>
    %1143 = arith.addf %1131, %1142 : vector<2x8xf32>
    %1144 = vector.broadcast %15 : vector<1x8xf32> to vector<2x8xf32>
    %1145 = arith.addf %1143, %1144 : vector<2x8xf32>
    %1146 = arith.negf %1145 : vector<2x8xf32>
    %1147 = math.exp %1146 : vector<2x8xf32>
    %cst_61 = arith.constant 1.000000e+00 : f32
    %1148 = vector.broadcast %cst_61 : f32 to vector<2x8xf32>
    %1149 = arith.addf %1148, %1147 : vector<2x8xf32>
    %1150 = arith.divf %1148, %1149 : vector<2x8xf32>
    %1151 = math.tanh %1145 : vector<2x8xf32>
    %1152 = vector.extract_strided_slice %1150 {offsets = [0, 0], sizes = [2, 2], strides = [1, 1]} : vector<2x8xf32> to vector<2x2xf32>
    %1153 = vector.extract_strided_slice %1150 {offsets = [0, 2], sizes = [2, 2], strides = [1, 1]} : vector<2x8xf32> to vector<2x2xf32>
    %1154 = vector.extract_strided_slice %1151 {offsets = [0, 4], sizes = [2, 2], strides = [1, 1]} : vector<2x8xf32> to vector<2x2xf32>
    %1155 = vector.extract_strided_slice %1150 {offsets = [0, 6], sizes = [2, 2], strides = [1, 1]} : vector<2x8xf32> to vector<2x2xf32>
    %1156 = arith.mulf %1153, %1089 : vector<2x2xf32>
    %1157 = arith.mulf %1152, %1154 : vector<2x2xf32>
    %1158 = arith.addf %1156, %1157 : vector<2x2xf32>
    %1159 = math.tanh %1158 : vector<2x2xf32>
    %1160 = arith.mulf %1155, %1159 : vector<2x2xf32>
    %1161 = tpu.concatenate %1120, %1160 in 0 : vector<2x2xf32>, vector<2x2xf32> -> vector<4x2xf32>
    %cst_62 = arith.constant 0.000000e+00 : f32
    %1162 = vector.broadcast %cst_62 : f32 to vector<4x2xf32>
    %1163 = arith.maximumf %1161, %1162 : vector<4x2xf32>
    %1164 = vector.extract_strided_slice %1163 {offsets = [0, 0], sizes = [4, 1], strides = [1, 1]} : vector<4x2xf32> to vector<4x1xf32>
    %1165 = vector.extract_strided_slice %2 {offsets = [0, 0], sizes = [1, 128], strides = [1, 1]} : vector<2x128xf32> to vector<1x128xf32>
    %1166 = vector.broadcast %1164 : vector<4x1xf32> to vector<4x128xf32>
    %1167 = vector.broadcast %1165 : vector<1x128xf32> to vector<4x128xf32>
    %1168 = arith.mulf %1166, %1167 : vector<4x128xf32>
    %1169 = vector.extract_strided_slice %1163 {offsets = [0, 1], sizes = [4, 1], strides = [1, 1]} : vector<4x2xf32> to vector<4x1xf32>
    %1170 = vector.extract_strided_slice %2 {offsets = [1, 0], sizes = [1, 128], strides = [1, 1]} : vector<2x128xf32> to vector<1x128xf32>
    %1171 = vector.broadcast %1169 : vector<4x1xf32> to vector<4x128xf32>
    %1172 = vector.broadcast %1170 : vector<1x128xf32> to vector<4x128xf32>
    %1173 = arith.mulf %1171, %1172 : vector<4x128xf32>
    %1174 = arith.addf %1168, %1173 : vector<4x128xf32>
    %1175 = vector.broadcast %3 : vector<1x128xf32> to vector<4x128xf32>
    %1176 = arith.addf %1174, %1175 : vector<4x128xf32>
    %cst_63 = arith.constant 0.000000e+00 : f32
    %1177 = vector.broadcast %cst_63 : f32 to vector<4x128xf32>
    %1178 = arith.maximumf %1176, %1177 : vector<4x128xf32>
    %1179 = tpu.concatenate %21, %1178 in 0 : vector<2x128xf32>, vector<4x128xf32> -> vector<6x128xf32>
    %cst_64 = arith.constant dense<0.000000e+00> : vector<6x16xf32>
    %1180 = tpu.matmul %1179, %6, %cst_64 {dimension_numbers = #tpu.dot_dimension_numbers<[1], [0], [0], [1], [0, 0, 1, 1], [], []>} : vector<6x128xf32>, vector<128x16xf32>, vector<6x16xf32> -> vector<6x16xf32>
    %1181 = vector.broadcast %7 : vector<1x16xf32> to vector<6x16xf32>
    %1182 = arith.addf %1180, %1181 : vector<6x16xf32>
    %1183 = vector.extract_strided_slice %1182 {offsets = [0, 0], sizes = [2, 8], strides = [1, 1]} : vector<6x16xf32> to vector<2x8xf32>
    %1184 = vector.extract_strided_slice %1182 {offsets = [2, 8], sizes = [4, 8], strides = [1, 1]} : vector<6x16xf32> to vector<4x8xf32>
    %1185 = tpu.concatenate %1183, %1183 in 0 : vector<2x8xf32>, vector<2x8xf32> -> vector<4x8xf32>
    %1186 = tpu.concatenate %1185, %1184 in 1 : vector<4x8xf32>, vector<4x8xf32> -> vector<4x16xf32>
    %cst_65 = arith.constant dense<0.000000e+00> : vector<4x8xf32>
    %1187 = tpu.matmul %1186, %8, %cst_65 {dimension_numbers = #tpu.dot_dimension_numbers<[1], [0], [0], [1], [0, 0, 1, 1], [], []>} : vector<4x16xf32>, vector<16x8xf32>, vector<4x8xf32> -> vector<4x8xf32>
    %1188 = vector.broadcast %9 : vector<1x8xf32> to vector<4x8xf32>
    %1189 = arith.addf %1187, %1188 : vector<4x8xf32>
    %cst_66 = arith.constant 0.000000e+00 : f32
    %1190 = vector.broadcast %cst_66 : f32 to vector<4x8xf32>
    %1191 = arith.maximumf %1189, %1190 : vector<4x8xf32>
    %cst_67 = arith.constant dense<0.000000e+00> : vector<4x128xf32>
    %1192 = tpu.matmul %1191, %4, %cst_67 {dimension_numbers = #tpu.dot_dimension_numbers<[1], [0], [0], [1], [0, 0, 1, 1], [], []>} : vector<4x8xf32>, vector<8x128xf32>, vector<4x128xf32> -> vector<4x128xf32>
    %1193 = vector.broadcast %5 : vector<1x128xf32> to vector<4x128xf32>
    %1194 = arith.addf %1192, %1193 : vector<4x128xf32>
    %1195 = arith.negf %1194 : vector<4x128xf32>
    %1196 = math.exp %1195 : vector<4x128xf32>
    %cst_68 = arith.constant 1.000000e+00 : f32
    %1197 = vector.broadcast %cst_68 : f32 to vector<4x128xf32>
    %1198 = arith.addf %1197, %1196 : vector<4x128xf32>
    %1199 = arith.divf %1197, %1198 : vector<4x128xf32>
    %c0_69 = arith.constant 0 : index
    %c0_70 = arith.constant 0 : index
    %1200 = vector.load %arg5[%c0_69, %c0_70] : memref<4x128xf32, #tpu.memory_space<vmem>>, vector<4x128xf32>
    tpu.vector_store %arg5[%c0_69, %c0_70], %1199 {strides = array<i32>} : memref<4x128xf32, #tpu.memory_space<vmem>>, vector<4x128xf32>,
    return
  }
}

</mosaic_0001>

<llo_original>
// kernel: tpu_custom_call.1
$region0: #{tpu_custom_call.1}
  #allocation0 [shape = 'u32[]', space=smem, size = 0x4, offset = 0x4, fixed_abs, tag = 'smem constant byte address 0x4 - core index']
  #allocation1 [shape = 'u32[72,128]{1,0:T(1,128)}', space=vmem, size = 0x9000, scoped, tag = 'internal scratch']
  %s0 = inlined_call_operand.vmem [shape: f32[2,5], index: 0, kind: input, shape index: {}]
  %s1 = inlined_call_operand.vmem [shape: f32[2,16,4], index: 1, kind: input, shape index: {}]
  %s2 = inlined_call_operand.vmem [shape: f32[18,128], index: 2, kind: input, shape index: {}]
  %s3 = inlined_call_operand.vmem [shape: f32[146,16], index: 3, kind: input, shape index: {}]
  %s4 = inlined_call_operand.vmem [shape: f32[12,8], index: 4, kind: input, shape index: {}]
  %s5 = inlined_call_operand.hbm [shape: f32[4,128], index: 5, kind: output, shape index: {}]
  %s6 = sld [smem:[#allocation0]]
  $region30: #{tpu_custom_call.1} parent=0
    _
  %s8 = ssub.s32 1, %s6
  %s9 = scalar_select 0, %s8, %s6
  $region1: #{tpu_custom_call.1} parent=0
    #allocation2 [shape = 'u8[2048]{0}', space=vmem, size = 0x800, scoped, tag = 'output window, operand 0, single buffered']
    #allocation3 [shape = 's32[1]{0}', space=sflag, size = 0x4, scoped, tag = 'scoped memory for tpu_custom_call.1']
    %10 = vsyncpa [#allocation3], 0
    // Predicated region
    $region2: #{tpu_custom_call.1} parent=1 // pred_check
      _
    $region3: #{tpu_custom_call.1} parent=1 // pred_check_branch
      %12 = sbr.rel (0) target = $region5
    $region4: #{tpu_custom_call.1} parent=1 // pred_region
      _
    $region5: #{tpu_custom_call.1} parent=1 // pred_fallthru
      _
    // Predicated region
    $region6: #{tpu_custom_call.1} parent=1 // pred_check
      _
    $region7: #{tpu_custom_call.1} parent=1 // pred_check_branch
      %14 = sbr.rel (0) target = $region9
    $region8: #{tpu_custom_call.1} parent=1 // pred_region
      _
    $region9: #{tpu_custom_call.1} parent=1 // pred_fallthru
      _
    // Predicated region
    $region10: #{tpu_custom_call.1} parent=1 // pred_check
      _
    $region11: #{tpu_custom_call.1} parent=1 // pred_check_branch
      %16 = sbr.rel (0) target = $region13
    $region12: #{tpu_custom_call.1} parent=1 // pred_region
      _
    $region13: #{tpu_custom_call.1} parent=1 // pred_fallthru
      _
    // Predicated region
    $region14: #{tpu_custom_call.1} parent=1 // pred_check
      _
    $region15: #{tpu_custom_call.1} parent=1 // pred_check_branch
      %18 = sbr.rel (0) target = $region17
    $region16: #{tpu_custom_call.1} parent=1 // pred_region
      _
    $region17: #{tpu_custom_call.1} parent=1 // pred_fallthru
      _
    // Predicated region
    $region18: #{tpu_custom_call.1} parent=1 // pred_check
      _
    $region19: #{tpu_custom_call.1} parent=1 // pred_check_branch
      %20 = sbr.rel (0) target = $region21
    $region20: #{tpu_custom_call.1} parent=1 // pred_region
      _
    $region21: #{tpu_custom_call.1} parent=1 // pred_fallthru
      _
    %v21 = vld [vmem:[%s2] sm:$0x1f]
    %v22 = vld [vmem:[%s2 + $0x5] sm:$0x1]
    %v23 = vld [vmem:[%s2 + $0x6] sm:$0x3]
    %v24 = vld [vmem:[%s2 + $0x8] sm:$0x1]
    %v25 = vld [vmem:[%s2 + $0x9] sm:$0xff]
    %v26 = vld [vmem:[%s2 + $0x11] sm:$0x1]
    %v27 = vld [vmem:[%s3] sm:$0xff]
    %v28 = vld [vmem:[%s3 + $0x8] sm:$0xff]
    %v29 = vld [vmem:[%s3 + $0x10] sm:$0xff]
    %v30 = vld [vmem:[%s3 + $0x18] sm:$0xff]
    %v31 = vld [vmem:[%s3 + $0x20] sm:$0xff]
    %v32 = vld [vmem:[%s3 + $0x28] sm:$0xff]
    %v33 = vld [vmem:[%s3 + $0x30] sm:$0xff]
    %v34 = vld [vmem:[%s3 + $0x38] sm:$0xff]
    %v35 = vld [vmem:[%s3 + $0x40] sm:$0xff]
    %v36 = vld [vmem:[%s3 + $0x48] sm:$0xff]
    %v37 = vld [vmem:[%s3 + $0x50] sm:$0xff]
    %v38 = vld [vmem:[%s3 + $0x58] sm:$0xff]
    %v39 = vld [vmem:[%s3 + $0x60] sm:$0xff]
    %v40 = vld [vmem:[%s3 + $0x68] sm:$0xff]
    %v41 = vld [vmem:[%s3 + $0x70] sm:$0xff]
    %v42 = vld [vmem:[%s3 + $0x78] sm:$0xff]
    %v43 = vld [vmem:[%s3 + $0x80] sm:$0x1]
    %v44 = vld [vmem:[%s3 + $0x81] sm:$0xff]
    %v45 = vld [vmem:[%s3 + $0x89] sm:$0xff]
    %v46 = vld [vmem:[%s3 + $0x91] sm:$0x1]
    %v47 = vld [vmem:[%s4] sm:$0xf]
    %v48 = vld [vmem:[%s4 + $0x4] sm:$0x3]
    %v49 = vld [vmem:[%s4 + $0x6] sm:$0x1]
    %v50 = vld [vmem:[%s4 + $0x7] sm:$0x3]
    %v51 = vld [vmem:[%s4 + $0x9] sm:$0x3]
    %v52 = vld [vmem:[%s4 + $0xb] sm:$0x1]
    %v53 = vld [vmem:[%s0] sm:$0x3]
    %v54 = vperm.slane %v22, 0
    %vm55 = vcmask 39936
    %v57 = vsel %vm55, %v53, 0
    %vm59 = vcmask 1044480
    %v61 = vsel %vm59, %v21, 0
    %63 = vmatpush.msra.mxu0 0.0
    %64 = vmatpush.msra.mxu0 0.0
    %65 = vmatpush.msra.mxu0 0.0
    %66 = vmatpush.msra.mxu0 0.0
    %67 = vmatpush.msra.mxu0 0.0
    %68 = vmatpush.msra.mxu0 0.0
    %69 = vmatpush.msra.mxu0 0.0
    %70 = vmatpush.msra.mxu0 0.0
    %71 = vmatpush.msra.mxu0 0.0
    %72 = vmatpush.msra.mxu0 0.0
    %73 = vmatpush.msra.mxu0 0.0
    %74 = vmatpush.msra.mxu0 0.0
    %75 = vmatpush.msra.mxu0 0.0
    %76 = vmatpush.msra.mxu0 0.0
    %77 = vmatpush.msra.mxu0 0.0
    %78 = vmatpush.msra.mxu0 %v61
    %79 = vmatmul.f32.gmra.mxu0 %v57
    %v80 = vpop.f32.mrf.mxu0
    %v81 = vadd.f32 %v54, %v80
    %82 = vdwg.mxu0
    %v83 = vmax.f32 %v81, 0.0
    %v84 = vld [vmem:[%s1] sm:$0xff]
    %v85 = vld [vmem:[%s1 + $0x8] sm:$0xff]
    %v86 = vld [vmem:[%s1 + $0x10] sm:$0xff]
    %v87 = vld [vmem:[%s1 + $0x18] sm:$0xff]
    %89 = vset.pattern.permute.xlu0 0
    %90 = vperm.xlu0 %89, %v84
    %v91 = vpop.permute.xlu0 %90
    %94 = vset.pattern.permute.xlu0 0
    %95 = vperm.xlu0 %94, %v85
    %v96 = vpop.permute.xlu0 %95
    %99 = vset.pattern.permute.xlu0 0
    %100 = vperm.xlu0 %99, %v86
    %v101 = vpop.permute.xlu0 %100
    %104 = vset.pattern.permute.xlu0 0
    %105 = vperm.xlu0 %104, %v87
    %v106 = vpop.permute.xlu0 %105
    %v108 = vperm.slane %v47, 0
    %v109 = vmul.f32 %v91, %v108
    %v110 = vmul.f32 %v96, %v108
    %v111 = vmul.f32 %v101, %v108
    %v112 = vmul.f32 %v106, %v108
    %v113 = vperm.slane %v49, 0
    %v114 = vadd.f32 %v113, %v109
    %v115 = vadd.f32 %v113, %v110
    %v116 = vadd.f32 %v113, %v111
    %v117 = vadd.f32 %v113, %v112
    %118 = vset.pattern.permute.xlu0 1
    %119 = vperm.xlu0 %118, %v84
    %v120 = vpop.permute.xlu0 %119
    %122 = vset.pattern.permute.xlu0 1
    %123 = vperm.xlu0 %122, %v85
    %v124 = vpop.permute.xlu0 %123
    %126 = vset.pattern.permute.xlu0 1
    %127 = vperm.xlu0 %126, %v86
    %v128 = vpop.permute.xlu0 %127
    %130 = vset.pattern.permute.xlu0 1
    %131 = vperm.xlu0 %130, %v87
    %v132 = vpop.permute.xlu0 %131
    %v134 = vperm.slane %v47, 1
    %v135 = vmul.f32 %v120, %v134
    %v136 = vmul.f32 %v124, %v134
    %v137 = vmul.f32 %v128, %v134
    %v138 = vmul.f32 %v132, %v134
    %v139 = vadd.f32 %v114, %v135
    %v140 = vadd.f32 %v115, %v136
    %v141 = vadd.f32 %v116, %v137
    %v142 = vadd.f32 %v117, %v138
    %143 = vset.pattern.permute.xlu0 2
    %144 = vperm.xlu0 %143, %v84
    %v145 = vpop.permute.xlu0 %144
    %147 = vset.pattern.permute.xlu0 2
    %148 = vperm.xlu0 %147, %v85
    %v149 = vpop.permute.xlu0 %148
    %151 = vset.pattern.permute.xlu0 2
    %152 = vperm.xlu0 %151, %v86
    %v153 = vpop.permute.xlu0 %152
    %155 = vset.pattern.permute.xlu0 2
    %156 = vperm.xlu0 %155, %v87
    %v157 = vpop.permute.xlu0 %156
    %v159 = vperm.slane %v47, 2
    %v160 = vmul.f32 %v145, %v159
    %v161 = vmul.f32 %v149, %v159
    %v162 = vmul.f32 %v153, %v159
    %v163 = vmul.f32 %v157, %v159
    %v164 = vadd.f32 %v139, %v160
    %v165 = vadd.f32 %v140, %v161
    %v166 = vadd.f32 %v141, %v162
    %v167 = vadd.f32 %v142, %v163
    %168 = vset.pattern.permute.xlu0 3
    %169 = vperm.xlu0 %168, %v84
    %v170 = vpop.permute.xlu0 %169
    %172 = vset.pattern.permute.xlu0 3
    %173 = vperm.xlu0 %172, %v85
    %v174 = vpop.permute.xlu0 %173
    %176 = vset.pattern.permute.xlu0 3
    %177 = vperm.xlu0 %176, %v86
    %v178 = vpop.permute.xlu0 %177
    %180 = vset.pattern.permute.xlu0 3
    %181 = vperm.xlu0 %180, %v87
    %v182 = vpop.permute.xlu0 %181
    %v184 = vperm.slane %v47, 3
    %v185 = vmul.f32 %v170, %v184
    %v186 = vmul.f32 %v174, %v184
    %v187 = vmul.f32 %v178, %v184
    %v188 = vmul.f32 %v182, %v184
    %v189 = vadd.f32 %v164, %v185
    %v190 = vadd.f32 %v165, %v186
    %v191 = vadd.f32 %v166, %v187
    %v192 = vadd.f32 %v167, %v188
    %v193 = vperm.slane %v48, 0
    %v194 = vmul.f32 %v193, 0.0
    %v195 = vperm.slane %v48, 1
    %v196 = vmul.f32 %v195, 0.0
    %v197 = vadd.f32 %v194, %v196
    %v198 = vadd.f32 %v189, %v197
    %v199 = vadd.f32 %v191, %v197
    %v200 = vxor.u32 %v198, 2147483648
    %v201 = vxor.u32 %v199, 2147483648
    %v202 = vmul.f32 %v200, 1.442695
    %v203 = vpow.pop %v202
    %v204 = vmul.f32 %v201, 1.442695
    %v205 = vpow.pop %v204
    %v206 = vadd.f32 %v203, 1.0
    %v207 = vadd.f32 %v205, 1.0
    %v208 = vrcp.pop %v206
    %v209 = vmul.f32 %v206, %v208
    %v210 = vsub.f32 1.0, %v209
    %v211 = vmul.f32 %v208, %v210
    %v212 = vadd.f32 %v208, %v211
    %vm213 = vweird.f32 %v206
    %vm214 = vweird.f32 %v208
    %vm215 = vmor %vm213, %vm214
    %v216 = vsel %vm215, %v208, %v212
    %v217 = vand.u32 2147483647, %v206
    %vm218 = vcmp.eq.f32.partialorder %v217, 8.507059e+37
    %v219 = vand.u32 %v206, 2147483648
    %v220 = vor.u32 1.1754944e-38, %v219
    %v221 = vsel %vm218, %v220, %v216
    %v222 = vmul.f32 1.0, %v221
    %v223 = vrcp.pop %v207
    %v224 = vmul.f32 %v207, %v223
    %v225 = vsub.f32 1.0, %v224
    %v226 = vmul.f32 %v223, %v225
    %v227 = vadd.f32 %v223, %v226
    %vm228 = vweird.f32 %v207
    %vm229 = vweird.f32 %v223
    %vm230 = vmor %vm228, %vm229
    %v231 = vsel %vm230, %v223, %v227
    %v232 = vand.u32 2147483647, %v207
    %vm233 = vcmp.eq.f32.partialorder %v232, 8.507059e+37
    %v234 = vand.u32 %v207, 2147483648
    %v235 = vor.u32 1.1754944e-38, %v234
    %v236 = vsel %vm233, %v235, %v231
    %v237 = vmul.f32 1.0, %v236
    %v238 = vtanh.pop %v198
    %v239 = vtanh.pop %v199
    %v240 = vmul.f32 %v222, 0.0
    %v241 = vmul.f32 %v237, 0.0
    %244 = vrot.lane.b32.xlu0 %v238, 124
    %v245 = vpop.permute.xlu0 %244
    %246 = vrot.lane.b32.xlu0 %v239, 124
    %v247 = vpop.permute.xlu0 %246
    %v250 = vmul.f32 %v222, %v245
    %v251 = vmul.f32 %v237, %v247
    %254 = vrot.lane.b32.xlu0 %v250, 2
    %v255 = vpop.permute.xlu0 %254
    %256 = vrot.lane.b32.xlu0 %v251, 2
    %v257 = vpop.permute.xlu0 %256
    %v260 = vadd.f32 %v240, %v255
    %v261 = vadd.f32 %v241, %v257
    %v262 = vtanh.pop %v260
    %v263 = vtanh.pop %v261
    %266 = vrot.lane.b32.xlu0 %v262, 4
    %v267 = vpop.permute.xlu0 %266
    %268 = vrot.lane.b32.xlu0 %v263, 4
    %v269 = vpop.permute.xlu0 %268
    %v272 = vmul.f32 %v222, %v267
    %v273 = vmul.f32 %v237, %v269
    %275 = vset.pattern.permute.xlu0 6
    %276 = vperm.xlu0 %275, %v272
    %v277 = vpop.permute.xlu0 %276
    %280 = vset.pattern.permute.xlu0 6
    %281 = vperm.xlu0 %280, %v273
    %v282 = vpop.permute.xlu0 %281
    %v284 = vperm.slane %v50, 0
    %v285 = vmul.f32 %v277, %v284
    %v286 = vmul.f32 %v282, %v284
    %287 = vset.pattern.permute.xlu0 7
    %288 = vperm.xlu0 %287, %v272
    %v289 = vpop.permute.xlu0 %288
    %291 = vset.pattern.permute.xlu0 7
    %292 = vperm.xlu0 %291, %v273
    %v293 = vpop.permute.xlu0 %292
    %v295 = vperm.slane %v50, 1
    %v296 = vmul.f32 %v289, %v295
    %v297 = vmul.f32 %v293, %v295
    %v298 = vadd.f32 %v285, %v296
    %v299 = vadd.f32 %v286, %v297
    %v300 = vperm.slane %v51, 0
    %v301 = vmul.f32 %v300, 0.0
    %v302 = vperm.slane %v51, 1
    %v303 = vmul.f32 %v302, 0.0
    %v304 = vadd.f32 %v301, %v303
    %v305 = vadd.f32 %v298, %v304
    %v306 = vadd.f32 %v299, %v304
    %v307 = vperm.slane %v52, 0
    %v308 = vadd.f32 %v305, %v307
    %v309 = vadd.f32 %v306, %v307
    %v310 = vxor.u32 %v308, 2147483648
    %v311 = vxor.u32 %v309, 2147483648
    %v312 = vmul.f32 %v310, 1.442695
    %v313 = vpow.pop %v312
    %v314 = vmul.f32 %v311, 1.442695
    %v315 = vpow.pop %v314
    %v316 = vadd.f32 %v313, 1.0
    %v317 = vadd.f32 %v315, 1.0
    %v318 = vrcp.pop %v316
    %v319 = vmul.f32 %v316, %v318
    %v320 = vsub.f32 1.0, %v319
    %v321 = vmul.f32 %v318, %v320
    %v322 = vadd.f32 %v318, %v321
    %vm323 = vweird.f32 %v316
    %vm324 = vweird.f32 %v318
    %vm325 = vmor %vm323, %vm324
    %v326 = vsel %vm325, %v318, %v322
    %v327 = vand.u32 2147483647, %v316
    %vm328 = vcmp.eq.f32.partialorder %v327, 8.507059e+37
    %v329 = vand.u32 %v316, 2147483648
    %v330 = vor.u32 1.1754944e-38, %v329
    %v331 = vsel %vm328, %v330, %v326
    %v332 = vmul.f32 1.0, %v331
    %v333 = vrcp.pop %v317
    %v334 = vmul.f32 %v317, %v333
    %v335 = vsub.f32 1.0, %v334
    %v336 = vmul.f32 %v333, %v335
    %v337 = vadd.f32 %v333, %v336
    %vm338 = vweird.f32 %v317
    %vm339 = vweird.f32 %v333
    %vm340 = vmor %vm338, %vm339
    %v341 = vsel %vm340, %v333, %v337
    %v342 = vand.u32 2147483647, %v317
    %vm343 = vcmp.eq.f32.partialorder %v342, 8.507059e+37
    %v344 = vand.u32 %v317, 2147483648
    %v345 = vor.u32 1.1754944e-38, %v344
    %v346 = vsel %vm343, %v345, %v341
    %v347 = vmul.f32 1.0, %v346
    %v348 = vtanh.pop %v308
    %v349 = vtanh.pop %v309
    %v350 = vmul.f32 %v332, 0.0
    %v351 = vmul.f32 %v347, 0.0
    %354 = vrot.lane.b32.xlu0 %v348, 124
    %v355 = vpop.permute.xlu0 %354
    %356 = vrot.lane.b32.xlu0 %v349, 124
    %v357 = vpop.permute.xlu0 %356
    %v360 = vmul.f32 %v332, %v355
    %v361 = vmul.f32 %v347, %v357
    %364 = vrot.lane.b32.xlu0 %v360, 2
    %v365 = vpop.permute.xlu0 %364
    %366 = vrot.lane.b32.xlu0 %v361, 2
    %v367 = vpop.permute.xlu0 %366
    %v370 = vadd.f32 %v350, %v365
    %v371 = vadd.f32 %v351, %v367
    %v372 = vtanh.pop %v370
    %v373 = vtanh.pop %v371
    %376 = vrot.lane.b32.xlu0 %v372, 4
    %v377 = vpop.permute.xlu0 %376
    %378 = vrot.lane.b32.xlu0 %v373, 4
    %v379 = vpop.permute.xlu0 %378
    %v382 = vmul.f32 %v332, %v377
    %v383 = vmul.f32 %v347, %v379
    %v384 = vmul.f32 %v277, %v193
    %v385 = vmul.f32 %v282, %v193
    %v386 = vmul.f32 %v289, %v195
    %v387 = vmul.f32 %v293, %v195
    %v388 = vadd.f32 %v384, %v386
    %v389 = vadd.f32 %v385, %v387
    %v392 = vrot.slane %v388, 7
    %v393 = vrot.slane %v389, 7
    %v396 = vadd.f32 %v189, %v392
    %v397 = vadd.f32 %v191, %v393
    %v398 = vxor.u32 %v396, 2147483648
    %v399 = vxor.u32 %v397, 2147483648
    %v400 = vmul.f32 %v398, 1.442695
    %v401 = vpow.pop %v400
    %v402 = vmul.f32 %v399, 1.442695
    %v403 = vpow.pop %v402
    %v404 = vadd.f32 %v401, 1.0
    %v405 = vadd.f32 %v403, 1.0
    %v406 = vrcp.pop %v404
    %v407 = vmul.f32 %v404, %v406
    %v408 = vsub.f32 1.0, %v407
    %v409 = vmul.f32 %v406, %v408
    %v410 = vadd.f32 %v406, %v409
    %vm411 = vweird.f32 %v404
    %vm412 = vweird.f32 %v406
    %vm413 = vmor %vm411, %vm412
    %v414 = vsel %vm413, %v406, %v410
    %v415 = vand.u32 2147483647, %v404
    %vm416 = vcmp.eq.f32.partialorder %v415, 8.507059e+37
    %v417 = vand.u32 %v404, 2147483648
    %v418 = vor.u32 1.1754944e-38, %v417
    %v419 = vsel %vm416, %v418, %v414
    %v420 = vmul.f32 1.0, %v419
    %v421 = vrcp.pop %v405
    %v422 = vmul.f32 %v405, %v421
    %v423 = vsub.f32 1.0, %v422
    %v424 = vmul.f32 %v421, %v423
    %v425 = vadd.f32 %v421, %v424
    %vm426 = vweird.f32 %v405
    %vm427 = vweird.f32 %v421
    %vm428 = vmor %vm426, %vm427
    %v429 = vsel %vm428, %v421, %v425
    %v430 = vand.u32 2147483647, %v405
    %vm431 = vcmp.eq.f32.partialorder %v430, 8.507059e+37
    %v432 = vand.u32 %v405, 2147483648
    %v433 = vor.u32 1.1754944e-38, %v432
    %v434 = vsel %vm431, %v433, %v429
    %v435 = vmul.f32 1.0, %v434
    %v436 = vtanh.pop %v396
    %v437 = vtanh.pop %v397
    %v440 = vrot.slane %v260, 7
    %v441 = vrot.slane %v261, 7
    %v444 = vmul.f32 %v420, %v440
    %v445 = vmul.f32 %v435, %v441
    %448 = vrot.lane.b32.xlu0 %v436, 124
    %v449 = vpop.permute.xlu0 %448
    %450 = vrot.lane.b32.xlu0 %v437, 124
    %v451 = vpop.permute.xlu0 %450
    %v454 = vmul.f32 %v420, %v449
    %v455 = vmul.f32 %v435, %v451
    %458 = vrot.lane.b32.xlu0 %v454, 2
    %v459 = vpop.permute.xlu0 %458
    %460 = vrot.lane.b32.xlu0 %v455, 2
    %v461 = vpop.permute.xlu0 %460
    %v464 = vadd.f32 %v444, %v459
    %v465 = vadd.f32 %v445, %v461
    %v466 = vtanh.pop %v464
    %v467 = vtanh.pop %v465
    %470 = vrot.lane.b32.xlu0 %v466, 4
    %v471 = vpop.permute.xlu0 %470
    %472 = vrot.lane.b32.xlu0 %v467, 4
    %v473 = vpop.permute.xlu0 %472
    %v476 = vmul.f32 %v420, %v471
    %v477 = vmul.f32 %v435, %v473
    %479 = vset.pattern.permute.xlu0 6
    %480 = vperm.xlu0 %479, %v476
    %v481 = vpop.permute.xlu0 %480
    %484 = vset.pattern.permute.xlu0 6
    %485 = vperm.xlu0 %484, %v477
    %v486 = vpop.permute.xlu0 %485
    %v488 = vmul.f32 %v481, %v284
    %v489 = vmul.f32 %v486, %v284
    %490 = vset.pattern.permute.xlu0 7
    %491 = vperm.xlu0 %490, %v476
    %v492 = vpop.permute.xlu0 %491
    %494 = vset.pattern.permute.xlu0 7
    %495 = vperm.xlu0 %494, %v477
    %v496 = vpop.permute.xlu0 %495
    %v498 = vmul.f32 %v492, %v295
    %v499 = vmul.f32 %v496, %v295
    %v500 = vadd.f32 %v488, %v498
    %v501 = vadd.f32 %v489, %v499
    %503 = vset.pattern.permute.xlu0 6
    %504 = vperm.xlu0 %503, %v382
    %v505 = vpop.permute.xlu0 %504
    %508 = vset.pattern.permute.xlu0 6
    %509 = vperm.xlu0 %508, %v383
    %v510 = vpop.permute.xlu0 %509
    %v512 = vmul.f32 %v505, %v300
    %v513 = vmul.f32 %v510, %v300
    %514 = vset.pattern.permute.xlu0 7
    %515 = vperm.xlu0 %514, %v382
    %v516 = vpop.permute.xlu0 %515
    %518 = vset.pattern.permute.xlu0 7
    %519 = vperm.xlu0 %518, %v383
    %v520 = vpop.permute.xlu0 %519
    %v522 = vmul.f32 %v516, %v302
    %v523 = vmul.f32 %v520, %v302
    %v524 = vadd.f32 %v512, %v522
    %v525 = vadd.f32 %v513, %v523
    %v528 = vrot.slane %v524, 7
    %v529 = vrot.slane %v525, 7
    %v532 = vadd.f32 %v500, %v528
    %v533 = vadd.f32 %v501, %v529
    %v534 = vadd.f32 %v532, %v307
    %v535 = vadd.f32 %v533, %v307
    %v536 = vxor.u32 %v534, 2147483648
    %v537 = vxor.u32 %v535, 2147483648
    %v538 = vmul.f32 %v536, 1.442695
    %v539 = vpow.pop %v538
    %v540 = vmul.f32 %v537, 1.442695
    %v541 = vpow.pop %v540
    %v542 = vadd.f32 %v539, 1.0
    %v543 = vadd.f32 %v541, 1.0
    %v544 = vrcp.pop %v542
    %v545 = vmul.f32 %v542, %v544
    %v546 = vsub.f32 1.0, %v545
    %v547 = vmul.f32 %v544, %v546
    %v548 = vadd.f32 %v544, %v547
    %vm549 = vweird.f32 %v542
    %vm550 = vweird.f32 %v544
    %vm551 = vmor %vm549, %vm550
    %v552 = vsel %vm551, %v544, %v548
    %v553 = vand.u32 2147483647, %v542
    %vm554 = vcmp.eq.f32.partialorder %v553, 8.507059e+37
    %v555 = vand.u32 %v542, 2147483648
    %v556 = vor.u32 1.1754944e-38, %v555
    %v557 = vsel %vm554, %v556, %v552
    %v558 = vmul.f32 1.0, %v557
    %v559 = vrcp.pop %v543
    %v560 = vmul.f32 %v543, %v559
    %v561 = vsub.f32 1.0, %v560
    %v562 = vmul.f32 %v559, %v561
    %v563 = vadd.f32 %v559, %v562
    %vm564 = vweird.f32 %v543
    %vm565 = vweird.f32 %v559
    %vm566 = vmor %vm564, %vm565
    %v567 = vsel %vm566, %v559, %v563
    %v568 = vand.u32 2147483647, %v543
    %vm569 = vcmp.eq.f32.partialorder %v568, 8.507059e+37
    %v570 = vand.u32 %v543, 2147483648
    %v571 = vor.u32 1.1754944e-38, %v570
    %v572 = vsel %vm569, %v571, %v567
    %v573 = vmul.f32 1.0, %v572
    %v574 = vtanh.pop %v534
    %v575 = vtanh.pop %v535
    %v578 = vrot.slane %v370, 7
    %v579 = vrot.slane %v371, 7
    %v582 = vmul.f32 %v558, %v578
    %v583 = vmul.f32 %v573, %v579
    %586 = vrot.lane.b32.xlu0 %v574, 124
    %v587 = vpop.permute.xlu0 %586
    %588 = vrot.lane.b32.xlu0 %v575, 124
    %v589 = vpop.permute.xlu0 %588
    %v592 = vmul.f32 %v558, %v587
    %v593 = vmul.f32 %v573, %v589
    %596 = vrot.lane.b32.xlu0 %v592, 2
    %v597 = vpop.permute.xlu0 %596
    %598 = vrot.lane.b32.xlu0 %v593, 2
    %v599 = vpop.permute.xlu0 %598
    %v602 = vadd.f32 %v582, %v597
    %v603 = vadd.f32 %v583, %v599
    %v604 = vtanh.pop %v602
    %v605 = vtanh.pop %v603
    %608 = vrot.lane.b32.xlu0 %v604, 4
    %v609 = vpop.permute.xlu0 %608
    %610 = vrot.lane.b32.xlu0 %v605, 4
    %v611 = vpop.permute.xlu0 %610
    %v614 = vmul.f32 %v558, %v609
    %v615 = vmul.f32 %v573, %v611
    %v616 = vmul.f32 %v481, %v193
    %v617 = vmul.f32 %v486, %v193
    %v618 = vmul.f32 %v492, %v195
    %v619 = vmul.f32 %v496, %v195
    %v620 = vadd.f32 %v616, %v618
    %v621 = vadd.f32 %v617, %v619
    %v624 = vrot.slane %v620, 7
    %v625 = vrot.slane %v621, 7
    %v628 = vadd.f32 %v189, %v624
    %v629 = vadd.f32 %v191, %v625
    %v630 = vxor.u32 %v628, 2147483648
    %v631 = vxor.u32 %v629, 2147483648
    %v632 = vmul.f32 %v630, 1.442695
    %v633 = vpow.pop %v632
    %v634 = vmul.f32 %v631, 1.442695
    %v635 = vpow.pop %v634
    %v636 = vadd.f32 %v633, 1.0
    %v637 = vadd.f32 %v635, 1.0
    %v638 = vrcp.pop %v636
    %v639 = vmul.f32 %v636, %v638
    %v640 = vsub.f32 1.0, %v639
    %v641 = vmul.f32 %v638, %v640
    %v642 = vadd.f32 %v638, %v641
    %vm643 = vweird.f32 %v636
    %vm644 = vweird.f32 %v638
    %vm645 = vmor %vm643, %vm644
    %v646 = vsel %vm645, %v638, %v642
    %v647 = vand.u32 2147483647, %v636
    %vm648 = vcmp.eq.f32.partialorder %v647, 8.507059e+37
    %v649 = vand.u32 %v636, 2147483648
    %v650 = vor.u32 1.1754944e-38, %v649
    %v651 = vsel %vm648, %v650, %v646
    %v652 = vmul.f32 1.0, %v651
    %v653 = vrcp.pop %v637
    %v654 = vmul.f32 %v637, %v653
    %v655 = vsub.f32 1.0, %v654
    %v656 = vmul.f32 %v653, %v655
    %v657 = vadd.f32 %v653, %v656
    %vm658 = vweird.f32 %v637
    %vm659 = vweird.f32 %v653
    %vm660 = vmor %vm658, %vm659
    %v661 = vsel %vm660, %v653, %v657
    %v662 = vand.u32 2147483647, %v637
    %vm663 = vcmp.eq.f32.partialorder %v662, 8.507059e+37
    %v664 = vand.u32 %v637, 2147483648
    %v665 = vor.u32 1.1754944e-38, %v664
    %v666 = vsel %vm663, %v665, %v661
    %v667 = vmul.f32 1.0, %v666
    %v668 = vtanh.pop %v628
    %v669 = vtanh.pop %v629
    %v672 = vrot.slane %v464, 7
    %v673 = vrot.slane %v465, 7
    %v676 = vmul.f32 %v652, %v672
    %v677 = vmul.f32 %v667, %v673
    %680 = vrot.lane.b32.xlu0 %v668, 124
    %v681 = vpop.permute.xlu0 %680
    %682 = vrot.lane.b32.xlu0 %v669, 124
    %v683 = vpop.permute.xlu0 %682
    %v686 = vmul.f32 %v652, %v681
    %v687 = vmul.f32 %v667, %v683
    %690 = vrot.lane.b32.xlu0 %v686, 2
    %v691 = vpop.permute.xlu0 %690
    %692 = vrot.lane.b32.xlu0 %v687, 2
    %v693 = vpop.permute.xlu0 %692
    %v696 = vadd.f32 %v676, %v691
    %v697 = vadd.f32 %v677, %v693
    %v698 = vtanh.pop %v696
    %v699 = vtanh.pop %v697
    %702 = vrot.lane.b32.xlu0 %v698, 4
    %v703 = vpop.permute.xlu0 %702
    %704 = vrot.lane.b32.xlu0 %v699, 4
    %v705 = vpop.permute.xlu0 %704
    %v708 = vmul.f32 %v652, %v703
    %v709 = vmul.f32 %v667, %v705
    %711 = vset.pattern.permute.xlu0 6
    %712 = vperm.xlu0 %711, %v708
    %v713 = vpop.permute.xlu0 %712
    %716 = vset.pattern.permute.xlu0 6
    %717 = vperm.xlu0 %716, %v709
    %v718 = vpop.permute.xlu0 %717
    %v720 = vmul.f32 %v713, %v284
    %v721 = vmul.f32 %v718, %v284
    %722 = vset.pattern.permute.xlu0 7
    %723 = vperm.xlu0 %722, %v708
    %v724 = vpop.permute.xlu0 %723
    %726 = vset.pattern.permute.xlu0 7
    %727 = vperm.xlu0 %726, %v709
    %v728 = vpop.permute.xlu0 %727
    %v730 = vmul.f32 %v724, %v295
    %v731 = vmul.f32 %v728, %v295
    %v732 = vadd.f32 %v720, %v730
    %v733 = vadd.f32 %v721, %v731
    %735 = vset.pattern.permute.xlu0 6
    %736 = vperm.xlu0 %735, %v614
    %v737 = vpop.permute.xlu0 %736
    %740 = vset.pattern.permute.xlu0 6
    %741 = vperm.xlu0 %740, %v615
    %v742 = vpop.permute.xlu0 %741
    %v744 = vmul.f32 %v737, %v300
    %v745 = vmul.f32 %v742, %v300
    %746 = vset.pattern.permute.xlu0 7
    %747 = vperm.xlu0 %746, %v614
    %v748 = vpop.permute.xlu0 %747
    %750 = vset.pattern.permute.xlu0 7
    %751 = vperm.xlu0 %750, %v615
    %v752 = vpop.permute.xlu0 %751
    %v754 = vmul.f32 %v748, %v302
    %v755 = vmul.f32 %v752, %v302
    %v756 = vadd.f32 %v744, %v754
    %v757 = vadd.f32 %v745, %v755
    %v760 = vrot.slane %v756, 7
    %v761 = vrot.slane %v757, 7
    %v764 = vadd.f32 %v732, %v760
    %v765 = vadd.f32 %v733, %v761
    %v766 = vadd.f32 %v764, %v307
    %v767 = vadd.f32 %v765, %v307
    %v768 = vxor.u32 %v766, 2147483648
    %v769 = vxor.u32 %v767, 2147483648
    %v770 = vmul.f32 %v768, 1.442695
    %v771 = vpow.pop %v770
    %v772 = vmul.f32 %v769, 1.442695
    %v773 = vpow.pop %v772
    %v774 = vadd.f32 %v771, 1.0
    %v775 = vadd.f32 %v773, 1.0
    %v776 = vrcp.pop %v774
    %v777 = vmul.f32 %v774, %v776
    %v778 = vsub.f32 1.0, %v777
    %v779 = vmul.f32 %v776, %v778
    %v780 = vadd.f32 %v776, %v779
    %vm781 = vweird.f32 %v774
    %vm782 = vweird.f32 %v776
    %vm783 = vmor %vm781, %vm782
    %v784 = vsel %vm783, %v776, %v780
    %v785 = vand.u32 2147483647, %v774
    %vm786 = vcmp.eq.f32.partialorder %v785, 8.507059e+37
    %v787 = vand.u32 %v774, 2147483648
    %v788 = vor.u32 1.1754944e-38, %v787
    %v789 = vsel %vm786, %v788, %v784
    %v790 = vmul.f32 1.0, %v789
    %v791 = vrcp.pop %v775
    %v792 = vmul.f32 %v775, %v791
    %v793 = vsub.f32 1.0, %v792
    %v794 = vmul.f32 %v791, %v793
    %v795 = vadd.f32 %v791, %v794
    %vm796 = vweird.f32 %v775
    %vm797 = vweird.f32 %v791
    %vm798 = vmor %vm796, %vm797
    %v799 = vsel %vm798, %v791, %v795
    %v800 = vand.u32 2147483647, %v775
    %vm801 = vcmp.eq.f32.partialorder %v800, 8.507059e+37
    %v802 = vand.u32 %v775, 2147483648
    %v803 = vor.u32 1.1754944e-38, %v802
    %v804 = vsel %vm801, %v803, %v799
    %v805 = vmul.f32 1.0, %v804
    %v806 = vtanh.pop %v766
    %v807 = vtanh.pop %v767
    %v810 = vrot.slane %v602, 7
    %v811 = vrot.slane %v603, 7
    %v814 = vmul.f32 %v790, %v810
    %v815 = vmul.f32 %v805, %v811
    %818 = vrot.lane.b32.xlu0 %v806, 124
    %v819 = vpop.permute.xlu0 %818
    %820 = vrot.lane.b32.xlu0 %v807, 124
    %v821 = vpop.permute.xlu0 %820
    %v824 = vmul.f32 %v790, %v819
    %v825 = vmul.f32 %v805, %v821
    %828 = vrot.lane.b32.xlu0 %v824, 2
    %v829 = vpop.permute.xlu0 %828
    %830 = vrot.lane.b32.xlu0 %v825, 2
    %v831 = vpop.permute.xlu0 %830
    %v834 = vadd.f32 %v814, %v829
    %v835 = vadd.f32 %v815, %v831
    %v836 = vtanh.pop %v834
    %v837 = vtanh.pop %v835
    %840 = vrot.lane.b32.xlu0 %v836, 4
    %v841 = vpop.permute.xlu0 %840
    %842 = vrot.lane.b32.xlu0 %v837, 4
    %v843 = vpop.permute.xlu0 %842
    %v846 = vmul.f32 %v790, %v841
    %v847 = vmul.f32 %v805, %v843
    %v848 = vmul.f32 %v713, %v193
    %v849 = vmul.f32 %v718, %v193
    %v850 = vmul.f32 %v724, %v195
    %v851 = vmul.f32 %v728, %v195
    %v852 = vadd.f32 %v848, %v850
    %v853 = vadd.f32 %v849, %v851
    %v856 = vrot.slane %v852, 7
    %v857 = vrot.slane %v853, 7
    %v860 = vadd.f32 %v189, %v856
    %v861 = vadd.f32 %v191, %v857
    %v862 = vxor.u32 %v860, 2147483648
    %v863 = vxor.u32 %v861, 2147483648
    %v864 = vmul.f32 %v862, 1.442695
    %v865 = vpow.pop %v864
    %v866 = vmul.f32 %v863, 1.442695
    %v867 = vpow.pop %v866
    %v868 = vadd.f32 %v865, 1.0
    %v869 = vadd.f32 %v867, 1.0
    %v870 = vrcp.pop %v868
    %v871 = vmul.f32 %v868, %v870
    %v872 = vsub.f32 1.0, %v871
    %v873 = vmul.f32 %v870, %v872
    %v874 = vadd.f32 %v870, %v873
    %vm875 = vweird.f32 %v868
    %vm876 = vweird.f32 %v870
    %vm877 = vmor %vm875, %vm876
    %v878 = vsel %vm877, %v870, %v874
    %v879 = vand.u32 2147483647, %v868
    %vm880 = vcmp.eq.f32.partialorder %v879, 8.507059e+37
    %v881 = vand.u32 %v868, 2147483648
    %v882 = vor.u32 1.1754944e-38, %v881
    %v883 = vsel %vm880, %v882, %v878
    %v884 = vmul.f32 1.0, %v883
    %v885 = vrcp.pop %v869
    %v886 = vmul.f32 %v869, %v885
    %v887 = vsub.f32 1.0, %v886
    %v888 = vmul.f32 %v885, %v887
    %v889 = vadd.f32 %v885, %v888
    %vm890 = vweird.f32 %v869
    %vm891 = vweird.f32 %v885
    %vm892 = vmor %vm890, %vm891
    %v893 = vsel %vm892, %v885, %v889
    %v894 = vand.u32 2147483647, %v869
    %vm895 = vcmp.eq.f32.partialorder %v894, 8.507059e+37
    %v896 = vand.u32 %v869, 2147483648
    %v897 = vor.u32 1.1754944e-38, %v896
    %v898 = vsel %vm895, %v897, %v893
    %v899 = vmul.f32 1.0, %v898
    %v900 = vtanh.pop %v860
    %v901 = vtanh.pop %v861
    %v904 = vrot.slane %v696, 7
    %v905 = vrot.slane %v697, 7
    %v908 = vmul.f32 %v884, %v904
    %v909 = vmul.f32 %v899, %v905
    %912 = vrot.lane.b32.xlu0 %v900, 124
    %v913 = vpop.permute.xlu0 %912
    %914 = vrot.lane.b32.xlu0 %v901, 124
    %v915 = vpop.permute.xlu0 %914
    %v918 = vmul.f32 %v884, %v913
    %v919 = vmul.f32 %v899, %v915
    %922 = vrot.lane.b32.xlu0 %v918, 2
    %v923 = vpop.permute.xlu0 %922
    %924 = vrot.lane.b32.xlu0 %v919, 2
    %v925 = vpop.permute.xlu0 %924
    %v928 = vadd.f32 %v908, %v923
    %v929 = vadd.f32 %v909, %v925
    %v930 = vtanh.pop %v928
    %v931 = vtanh.pop %v929
    %934 = vrot.lane.b32.xlu0 %v930, 4
    %v935 = vpop.permute.xlu0 %934
    %936 = vrot.lane.b32.xlu0 %v931, 4
    %v937 = vpop.permute.xlu0 %936
    %v940 = vmul.f32 %v884, %v935
    %v941 = vmul.f32 %v899, %v937
    %943 = vset.pattern.permute.xlu0 6
    %944 = vperm.xlu0 %943, %v940
    %v945 = vpop.permute.xlu0 %944
    %948 = vset.pattern.permute.xlu0 6
    %949 = vperm.xlu0 %948, %v941
    %v950 = vpop.permute.xlu0 %949
    %v952 = vmul.f32 %v945, %v284
    %v953 = vmul.f32 %v950, %v284
    %954 = vset.pattern.permute.xlu0 7
    %955 = vperm.xlu0 %954, %v940
    %v956 = vpop.permute.xlu0 %955
    %958 = vset.pattern.permute.xlu0 7
    %959 = vperm.xlu0 %958, %v941
    %v960 = vpop.permute.xlu0 %959
    %v962 = vmul.f32 %v956, %v295
    %v963 = vmul.f32 %v960, %v295
    %v964 = vadd.f32 %v952, %v962
    %v965 = vadd.f32 %v953, %v963
    %967 = vset.pattern.permute.xlu0 6
    %968 = vperm.xlu0 %967, %v846
    %v969 = vpop.permute.xlu0 %968
    %972 = vset.pattern.permute.xlu0 6
    %973 = vperm.xlu0 %972, %v847
    %v974 = vpop.permute.xlu0 %973
    %v976 = vmul.f32 %v969, %v300
    %v977 = vmul.f32 %v974, %v300
    %978 = vset.pattern.permute.xlu0 7
    %979 = vperm.xlu0 %978, %v846
    %v980 = vpop.permute.xlu0 %979
    %982 = vset.pattern.permute.xlu0 7
    %983 = vperm.xlu0 %982, %v847
    %v984 = vpop.permute.xlu0 %983
    %v986 = vmul.f32 %v980, %v302
    %v987 = vmul.f32 %v984, %v302
    %v988 = vadd.f32 %v976, %v986
    %v989 = vadd.f32 %v977, %v987
    %v992 = vrot.slane %v988, 7
    %v993 = vrot.slane %v989, 7
    %v996 = vadd.f32 %v964, %v992
    %v997 = vadd.f32 %v965, %v993
    %v998 = vadd.f32 %v996, %v307
    %v999 = vadd.f32 %v997, %v307
    %v1000 = vxor.u32 %v998, 2147483648
    %v1001 = vxor.u32 %v999, 2147483648
    %v1002 = vmul.f32 %v1000, 1.442695
    %v1003 = vpow.pop %v1002
    %v1004 = vmul.f32 %v1001, 1.442695
    %v1005 = vpow.pop %v1004
    %v1006 = vadd.f32 %v1003, 1.0
    %v1007 = vadd.f32 %v1005, 1.0
    %v1008 = vrcp.pop %v1006
    %v1009 = vmul.f32 %v1006, %v1008
    %v1010 = vsub.f32 1.0, %v1009
    %v1011 = vmul.f32 %v1008, %v1010
    %v1012 = vadd.f32 %v1008, %v1011
    %vm1013 = vweird.f32 %v1006
    %vm1014 = vweird.f32 %v1008
    %vm1015 = vmor %vm1013, %vm1014
    %v1016 = vsel %vm1015, %v1008, %v1012
    %v1017 = vand.u32 2147483647, %v1006
    %vm1018 = vcmp.eq.f32.partialorder %v1017, 8.507059e+37
    %v1019 = vand.u32 %v1006, 2147483648
    %v1020 = vor.u32 1.1754944e-38, %v1019
    %v1021 = vsel %vm1018, %v1020, %v1016
    %v1022 = vmul.f32 1.0, %v1021
    %v1023 = vrcp.pop %v1007
    %v1024 = vmul.f32 %v1007, %v1023
    %v1025 = vsub.f32 1.0, %v1024
    %v1026 = vmul.f32 %v1023, %v1025
    %v1027 = vadd.f32 %v1023, %v1026
    %vm1028 = vweird.f32 %v1007
    %vm1029 = vweird.f32 %v1023
    %vm1030 = vmor %vm1028, %vm1029
    %v1031 = vsel %vm1030, %v1023, %v1027
    %v1032 = vand.u32 2147483647, %v1007
    %vm1033 = vcmp.eq.f32.partialorder %v1032, 8.507059e+37
    %v1034 = vand.u32 %v1007, 2147483648
    %v1035 = vor.u32 1.1754944e-38, %v1034
    %v1036 = vsel %vm1033, %v1035, %v1031
    %v1037 = vmul.f32 1.0, %v1036
    %v1038 = vtanh.pop %v998
    %v1039 = vtanh.pop %v999
    %v1042 = vrot.slane %v834, 7
    %v1043 = vrot.slane %v835, 7
    %v1046 = vmul.f32 %v1022, %v1042
    %v1047 = vmul.f32 %v1037, %v1043
    %1050 = vrot.lane.b32.xlu0 %v1038, 124
    %v1051 = vpop.permute.xlu0 %1050
    %1052 = vrot.lane.b32.xlu0 %v1039, 124
    %v1053 = vpop.permute.xlu0 %1052
    %v1056 = vmul.f32 %v1022, %v1051
    %v1057 = vmul.f32 %v1037, %v1053
    %1060 = vrot.lane.b32.xlu0 %v1056, 2
    %v1061 = vpop.permute.xlu0 %1060
    %1062 = vrot.lane.b32.xlu0 %v1057, 2
    %v1063 = vpop.permute.xlu0 %1062
    %v1066 = vadd.f32 %v1046, %v1061
    %v1067 = vadd.f32 %v1047, %v1063
    %v1068 = vtanh.pop %v1066
    %v1069 = vtanh.pop %v1067
    %1072 = vrot.lane.b32.xlu0 %v1068, 4
    %v1073 = vpop.permute.xlu0 %1072
    %1074 = vrot.lane.b32.xlu0 %v1069, 4
    %v1075 = vpop.permute.xlu0 %1074
    %v1078 = vmul.f32 %v1022, %v1073
    %v1079 = vmul.f32 %v1037, %v1075
    %v1080 = vmul.f32 %v945, %v193
    %v1081 = vmul.f32 %v950, %v193
    %v1082 = vmul.f32 %v956, %v195
    %v1083 = vmul.f32 %v960, %v195
    %v1084 = vadd.f32 %v1080, %v1082
    %v1085 = vadd.f32 %v1081, %v1083
    %v1088 = vrot.slane %v1084, 7
    %v1089 = vrot.slane %v1085, 7
    %v1092 = vadd.f32 %v189, %v1088
    %v1093 = vadd.f32 %v191, %v1089
    %v1094 = vxor.u32 %v1092, 2147483648
    %v1095 = vxor.u32 %v1093, 2147483648
    %v1096 = vmul.f32 %v1094, 1.442695
    %v1097 = vpow.pop %v1096
    %v1098 = vmul.f32 %v1095, 1.442695
    %v1099 = vpow.pop %v1098
    %v1100 = vadd.f32 %v1097, 1.0
    %v1101 = vadd.f32 %v1099, 1.0
    %v1102 = vrcp.pop %v1100
    %v1103 = vmul.f32 %v1100, %v1102
    %v1104 = vsub.f32 1.0, %v1103
    %v1105 = vmul.f32 %v1102, %v1104
    %v1106 = vadd.f32 %v1102, %v1105
    %vm1107 = vweird.f32 %v1100
    %vm1108 = vweird.f32 %v1102
    %vm1109 = vmor %vm1107, %vm1108
    %v1110 = vsel %vm1109, %v1102, %v1106
    %v1111 = vand.u32 2147483647, %v1100
    %vm1112 = vcmp.eq.f32.partialorder %v1111, 8.507059e+37
    %v1113 = vand.u32 %v1100, 2147483648
    %v1114 = vor.u32 1.1754944e-38, %v1113
    %v1115 = vsel %vm1112, %v1114, %v1110
    %v1116 = vmul.f32 1.0, %v1115
    %v1117 = vrcp.pop %v1101
    %v1118 = vmul.f32 %v1101, %v1117
    %v1119 = vsub.f32 1.0, %v1118
    %v1120 = vmul.f32 %v1117, %v1119
    %v1121 = vadd.f32 %v1117, %v1120
    %vm1122 = vweird.f32 %v1101
    %vm1123 = vweird.f32 %v1117
    %vm1124 = vmor %vm1122, %vm1123
    %v1125 = vsel %vm1124, %v1117, %v1121
    %v1126 = vand.u32 2147483647, %v1101
    %vm1127 = vcmp.eq.f32.partialorder %v1126, 8.507059e+37
    %v1128 = vand.u32 %v1101, 2147483648
    %v1129 = vor.u32 1.1754944e-38, %v1128
    %v1130 = vsel %vm1127, %v1129, %v1125
    %v1131 = vmul.f32 1.0, %v1130
    %v1132 = vtanh.pop %v1092
    %v1133 = vtanh.pop %v1093
    %v1136 = vrot.slane %v928, 7
    %v1137 = vrot.slane %v929, 7
    %v1140 = vmul.f32 %v1116, %v1136
    %v1141 = vmul.f32 %v1131, %v1137
    %1144 = vrot.lane.b32.xlu0 %v1132, 124
    %v1145 = vpop.permute.xlu0 %1144
    %1146 = vrot.lane.b32.xlu0 %v1133, 124
    %v1147 = vpop.permute.xlu0 %1146
    %v1150 = vmul.f32 %v1116, %v1145
    %v1151 = vmul.f32 %v1131, %v1147
    %1154 = vrot.lane.b32.xlu0 %v1150, 2
    %v1155 = vpop.permute.xlu0 %1154
    %1156 = vrot.lane.b32.xlu0 %v1151, 2
    %v1157 = vpop.permute.xlu0 %1156
    %v1160 = vadd.f32 %v1140, %v1155
    %v1161 = vadd.f32 %v1141, %v1157
    %v1162 = vtanh.pop %v1160
    %v1163 = vtanh.pop %v1161
    %1166 = vrot.lane.b32.xlu0 %v1162, 4
    %v1167 = vpop.permute.xlu0 %1166
    %1168 = vrot.lane.b32.xlu0 %v1163, 4
    %v1169 = vpop.permute.xlu0 %1168
    %v1172 = vmul.f32 %v1116, %v1167
    %v1173 = vmul.f32 %v1131, %v1169
    %1175 = vset.pattern.permute.xlu0 6
    %1176 = vperm.xlu0 %1175, %v1172
    %v1177 = vpop.permute.xlu0 %1176
    %1180 = vset.pattern.permute.xlu0 6
    %1181 = vperm.xlu0 %1180, %v1173
    %v1182 = vpop.permute.xlu0 %1181
    %v1184 = vmul.f32 %v1177, %v284
    %v1185 = vmul.f32 %v1182, %v284
    %1186 = vset.pattern.permute.xlu0 7
    %1187 = vperm.xlu0 %1186, %v1172
    %v1188 = vpop.permute.xlu0 %1187
    %1190 = vset.pattern.permute.xlu0 7
    %1191 = vperm.xlu0 %1190, %v1173
    %v1192 = vpop.permute.xlu0 %1191
    %v1194 = vmul.f32 %v1188, %v295
    %v1195 = vmul.f32 %v1192, %v295
    %v1196 = vadd.f32 %v1184, %v1194
    %v1197 = vadd.f32 %v1185, %v1195
    %1199 = vset.pattern.permute.xlu0 6
    %1200 = vperm.xlu0 %1199, %v1078
    %v1201 = vpop.permute.xlu0 %1200
    %1204 = vset.pattern.permute.xlu0 6
    %1205 = vperm.xlu0 %1204, %v1079
    %v1206 = vpop.permute.xlu0 %1205
    %v1208 = vmul.f32 %v1201, %v300
    %v1209 = vmul.f32 %v1206, %v300
    %1210 = vset.pattern.permute.xlu0 7
    %1211 = vperm.xlu0 %1210, %v1078
    %v1212 = vpop.permute.xlu0 %1211
    %1214 = vset.pattern.permute.xlu0 7
    %1215 = vperm.xlu0 %1214, %v1079
    %v1216 = vpop.permute.xlu0 %1215
    %v1218 = vmul.f32 %v1212, %v302
    %v1219 = vmul.f32 %v1216, %v302
    %v1220 = vadd.f32 %v1208, %v1218
    %v1221 = vadd.f32 %v1209, %v1219
    %v1224 = vrot.slane %v1220, 7
    %v1225 = vrot.slane %v1221, 7
    %v1228 = vadd.f32 %v1196, %v1224
    %v1229 = vadd.f32 %v1197, %v1225
    %v1230 = vadd.f32 %v1228, %v307
    %v1231 = vadd.f32 %v1229, %v307
    %v1232 = vxor.u32 %v1230, 2147483648
    %v1233 = vxor.u32 %v1231, 2147483648
    %v1234 = vmul.f32 %v1232, 1.442695
    %v1235 = vpow.pop %v1234
    %v1236 = vmul.f32 %v1233, 1.442695
    %v1237 = vpow.pop %v1236
    %v1238 = vadd.f32 %v1235, 1.0
    %v1239 = vadd.f32 %v1237, 1.0
    %v1240 = vrcp.pop %v1238
    %v1241 = vmul.f32 %v1238, %v1240
    %v1242 = vsub.f32 1.0, %v1241
    %v1243 = vmul.f32 %v1240, %v1242
    %v1244 = vadd.f32 %v1240, %v1243
    %vm1245 = vweird.f32 %v1238
    %vm1246 = vweird.f32 %v1240
    %vm1247 = vmor %vm1245, %vm1246
    %v1248 = vsel %vm1247, %v1240, %v1244
    %v1249 = vand.u32 2147483647, %v1238
    %vm1250 = vcmp.eq.f32.partialorder %v1249, 8.507059e+37
    %v1251 = vand.u32 %v1238, 2147483648
    %v1252 = vor.u32 1.1754944e-38, %v1251
    %v1253 = vsel %vm1250, %v1252, %v1248
    %v1254 = vmul.f32 1.0, %v1253
    %v1255 = vrcp.pop %v1239
    %v1256 = vmul.f32 %v1239, %v1255
    %v1257 = vsub.f32 1.0, %v1256
    %v1258 = vmul.f32 %v1255, %v1257
    %v1259 = vadd.f32 %v1255, %v1258
    %vm1260 = vweird.f32 %v1239
    %vm1261 = vweird.f32 %v1255
    %vm1262 = vmor %vm1260, %vm1261
    %v1263 = vsel %vm1262, %v1255, %v1259
    %v1264 = vand.u32 2147483647, %v1239
    %vm1265 = vcmp.eq.f32.partialorder %v1264, 8.507059e+37
    %v1266 = vand.u32 %v1239, 2147483648
    %v1267 = vor.u32 1.1754944e-38, %v1266
    %v1268 = vsel %vm1265, %v1267, %v1263
    %v1269 = vmul.f32 1.0, %v1268
    %v1270 = vtanh.pop %v1230
    %v1271 = vtanh.pop %v1231
    %v1274 = vrot.slane %v1066, 7
    %v1275 = vrot.slane %v1067, 7
    %v1278 = vmul.f32 %v1254, %v1274
    %v1279 = vmul.f32 %v1269, %v1275
    %1282 = vrot.lane.b32.xlu0 %v1270, 124
    %v1283 = vpop.permute.xlu0 %1282
    %1284 = vrot.lane.b32.xlu0 %v1271, 124
    %v1285 = vpop.permute.xlu0 %1284
    %v1288 = vmul.f32 %v1254, %v1283
    %v1289 = vmul.f32 %v1269, %v1285
    %1292 = vrot.lane.b32.xlu0 %v1288, 2
    %v1293 = vpop.permute.xlu0 %1292
    %1294 = vrot.lane.b32.xlu0 %v1289, 2
    %v1295 = vpop.permute.xlu0 %1294
    %v1298 = vadd.f32 %v1278, %v1293
    %v1299 = vadd.f32 %v1279, %v1295
    %v1300 = vtanh.pop %v1298
    %v1301 = vtanh.pop %v1299
    %1304 = vrot.lane.b32.xlu0 %v1300, 4
    %v1305 = vpop.permute.xlu0 %1304
    %1306 = vrot.lane.b32.xlu0 %v1301, 4
    %v1307 = vpop.permute.xlu0 %1306
    %v1310 = vmul.f32 %v1254, %v1305
    %v1311 = vmul.f32 %v1269, %v1307
    %v1312 = vmul.f32 %v1177, %v193
    %v1313 = vmul.f32 %v1182, %v193
    %v1314 = vmul.f32 %v1188, %v195
    %v1315 = vmul.f32 %v1192, %v195
    %v1316 = vadd.f32 %v1312, %v1314
    %v1317 = vadd.f32 %v1313, %v1315
    %v1320 = vrot.slane %v1316, 7
    %v1321 = vrot.slane %v1317, 7
    %v1324 = vadd.f32 %v189, %v1320
    %v1325 = vadd.f32 %v191, %v1321
    %v1326 = vxor.u32 %v1324, 2147483648
    %v1327 = vxor.u32 %v1325, 2147483648
    %v1328 = vmul.f32 %v1326, 1.442695
    %v1329 = vpow.pop %v1328
    %v1330 = vmul.f32 %v1327, 1.442695
    %v1331 = vpow.pop %v1330
    %v1332 = vadd.f32 %v1329, 1.0
    %v1333 = vadd.f32 %v1331, 1.0
    %v1334 = vrcp.pop %v1332
    %v1335 = vmul.f32 %v1332, %v1334
    %v1336 = vsub.f32 1.0, %v1335
    %v1337 = vmul.f32 %v1334, %v1336
    %v1338 = vadd.f32 %v1334, %v1337
    %vm1339 = vweird.f32 %v1332
    %vm1340 = vweird.f32 %v1334
    %vm1341 = vmor %vm1339, %vm1340
    %v1342 = vsel %vm1341, %v1334, %v1338
    %v1343 = vand.u32 2147483647, %v1332
    %vm1344 = vcmp.eq.f32.partialorder %v1343, 8.507059e+37
    %v1345 = vand.u32 %v1332, 2147483648
    %v1346 = vor.u32 1.1754944e-38, %v1345
    %v1347 = vsel %vm1344, %v1346, %v1342
    %v1348 = vmul.f32 1.0, %v1347
    %v1349 = vrcp.pop %v1333
    %v1350 = vmul.f32 %v1333, %v1349
    %v1351 = vsub.f32 1.0, %v1350
    %v1352 = vmul.f32 %v1349, %v1351
    %v1353 = vadd.f32 %v1349, %v1352
    %vm1354 = vweird.f32 %v1333
    %vm1355 = vweird.f32 %v1349
    %vm1356 = vmor %vm1354, %vm1355
    %v1357 = vsel %vm1356, %v1349, %v1353
    %v1358 = vand.u32 2147483647, %v1333
    %vm1359 = vcmp.eq.f32.partialorder %v1358, 8.507059e+37
    %v1360 = vand.u32 %v1333, 2147483648
    %v1361 = vor.u32 1.1754944e-38, %v1360
    %v1362 = vsel %vm1359, %v1361, %v1357
    %v1363 = vmul.f32 1.0, %v1362
    %v1364 = vtanh.pop %v1324
    %v1365 = vtanh.pop %v1325
    %v1368 = vrot.slane %v1160, 7
    %v1369 = vrot.slane %v1161, 7
    %v1372 = vmul.f32 %v1348, %v1368
    %v1373 = vmul.f32 %v1363, %v1369
    %1376 = vrot.lane.b32.xlu0 %v1364, 124
    %v1377 = vpop.permute.xlu0 %1376
    %1378 = vrot.lane.b32.xlu0 %v1365, 124
    %v1379 = vpop.permute.xlu0 %1378
    %v1382 = vmul.f32 %v1348, %v1377
    %v1383 = vmul.f32 %v1363, %v1379
    %1386 = vrot.lane.b32.xlu0 %v1382, 2
    %v1387 = vpop.permute.xlu0 %1386
    %1388 = vrot.lane.b32.xlu0 %v1383, 2
    %v1389 = vpop.permute.xlu0 %1388
    %v1392 = vadd.f32 %v1372, %v1387
    %v1393 = vadd.f32 %v1373, %v1389
    %v1394 = vtanh.pop %v1392
    %v1395 = vtanh.pop %v1393
    %1398 = vrot.lane.b32.xlu0 %v1394, 4
    %v1399 = vpop.permute.xlu0 %1398
    %1400 = vrot.lane.b32.xlu0 %v1395, 4
    %v1401 = vpop.permute.xlu0 %1400
    %v1404 = vmul.f32 %v1348, %v1399
    %v1405 = vmul.f32 %v1363, %v1401
    %1407 = vset.pattern.permute.xlu0 6
    %1408 = vperm.xlu0 %1407, %v1404
    %v1409 = vpop.permute.xlu0 %1408
    %1412 = vset.pattern.permute.xlu0 6
    %1413 = vperm.xlu0 %1412, %v1405
    %v1414 = vpop.permute.xlu0 %1413
    %v1416 = vmul.f32 %v1409, %v284
    %v1417 = vmul.f32 %v1414, %v284
    %1418 = vset.pattern.permute.xlu0 7
    %1419 = vperm.xlu0 %1418, %v1404
    %v1420 = vpop.permute.xlu0 %1419
    %1422 = vset.pattern.permute.xlu0 7
    %1423 = vperm.xlu0 %1422, %v1405
    %v1424 = vpop.permute.xlu0 %1423
    %v1426 = vmul.f32 %v1420, %v295
    %v1427 = vmul.f32 %v1424, %v295
    %v1428 = vadd.f32 %v1416, %v1426
    %v1429 = vadd.f32 %v1417, %v1427
    %1431 = vset.pattern.permute.xlu0 6
    %1432 = vperm.xlu0 %1431, %v1310
    %v1433 = vpop.permute.xlu0 %1432
    %1436 = vset.pattern.permute.xlu0 6
    %1437 = vperm.xlu0 %1436, %v1311
    %v1438 = vpop.permute.xlu0 %1437
    %v1440 = vmul.f32 %v1433, %v300
    %v1441 = vmul.f32 %v1438, %v300
    %1442 = vset.pattern.permute.xlu0 7
    %1443 = vperm.xlu0 %1442, %v1310
    %v1444 = vpop.permute.xlu0 %1443
    %1446 = vset.pattern.permute.xlu0 7
    %1447 = vperm.xlu0 %1446, %v1311
    %v1448 = vpop.permute.xlu0 %1447
    %v1450 = vmul.f32 %v1444, %v302
    %v1451 = vmul.f32 %v1448, %v302
    %v1452 = vadd.f32 %v1440, %v1450
    %v1453 = vadd.f32 %v1441, %v1451
    %v1456 = vrot.slane %v1452, 7
    %v1457 = vrot.slane %v1453, 7
    %v1460 = vadd.f32 %v1428, %v1456
    %v1461 = vadd.f32 %v1429, %v1457
    %v1462 = vadd.f32 %v1460, %v307
    %v1463 = vadd.f32 %v1461, %v307
    %v1464 = vxor.u32 %v1462, 2147483648
    %v1465 = vxor.u32 %v1463, 2147483648
    %v1466 = vmul.f32 %v1464, 1.442695
    %v1467 = vpow.pop %v1466
    %v1468 = vmul.f32 %v1465, 1.442695
    %v1469 = vpow.pop %v1468
    %v1470 = vadd.f32 %v1467, 1.0
    %v1471 = vadd.f32 %v1469, 1.0
    %v1472 = vrcp.pop %v1470
    %v1473 = vmul.f32 %v1470, %v1472
    %v1474 = vsub.f32 1.0, %v1473
    %v1475 = vmul.f32 %v1472, %v1474
    %v1476 = vadd.f32 %v1472, %v1475
    %vm1477 = vweird.f32 %v1470
    %vm1478 = vweird.f32 %v1472
    %vm1479 = vmor %vm1477, %vm1478
    %v1480 = vsel %vm1479, %v1472, %v1476
    %v1481 = vand.u32 2147483647, %v1470
    %vm1482 = vcmp.eq.f32.partialorder %v1481, 8.507059e+37
    %v1483 = vand.u32 %v1470, 2147483648
    %v1484 = vor.u32 1.1754944e-38, %v1483
    %v1485 = vsel %vm1482, %v1484, %v1480
    %v1486 = vmul.f32 1.0, %v1485
    %v1487 = vrcp.pop %v1471
    %v1488 = vmul.f32 %v1471, %v1487
    %v1489 = vsub.f32 1.0, %v1488
    %v1490 = vmul.f32 %v1487, %v1489
    %v1491 = vadd.f32 %v1487, %v1490
    %vm1492 = vweird.f32 %v1471
    %vm1493 = vweird.f32 %v1487
    %vm1494 = vmor %vm1492, %vm1493
    %v1495 = vsel %vm1494, %v1487, %v1491
    %v1496 = vand.u32 2147483647, %v1471
    %vm1497 = vcmp.eq.f32.partialorder %v1496, 8.507059e+37
    %v1498 = vand.u32 %v1471, 2147483648
    %v1499 = vor.u32 1.1754944e-38, %v1498
    %v1500 = vsel %vm1497, %v1499, %v1495
    %v1501 = vmul.f32 1.0, %v1500
    %v1502 = vtanh.pop %v1462
    %v1503 = vtanh.pop %v1463
    %v1506 = vrot.slane %v1298, 7
    %v1507 = vrot.slane %v1299, 7
    %v1510 = vmul.f32 %v1486, %v1506
    %v1511 = vmul.f32 %v1501, %v1507
    %1514 = vrot.lane.b32.xlu0 %v1502, 124
    %v1515 = vpop.permute.xlu0 %1514
    %1516 = vrot.lane.b32.xlu0 %v1503, 124
    %v1517 = vpop.permute.xlu0 %1516
    %v1520 = vmul.f32 %v1486, %v1515
    %v1521 = vmul.f32 %v1501, %v1517
    %1524 = vrot.lane.b32.xlu0 %v1520, 2
    %v1525 = vpop.permute.xlu0 %1524
    %1526 = vrot.lane.b32.xlu0 %v1521, 2
    %v1527 = vpop.permute.xlu0 %1526
    %v1530 = vadd.f32 %v1510, %v1525
    %v1531 = vadd.f32 %v1511, %v1527
    %v1532 = vtanh.pop %v1530
    %v1533 = vtanh.pop %v1531
    %1536 = vrot.lane.b32.xlu0 %v1532, 4
    %v1537 = vpop.permute.xlu0 %1536
    %1538 = vrot.lane.b32.xlu0 %v1533, 4
    %v1539 = vpop.permute.xlu0 %1538
    %v1542 = vmul.f32 %v1486, %v1537
    %v1543 = vmul.f32 %v1501, %v1539
    %v1544 = vmul.f32 %v1409, %v193
    %v1545 = vmul.f32 %v1414, %v193
    %v1546 = vmul.f32 %v1420, %v195
    %v1547 = vmul.f32 %v1424, %v195
    %v1548 = vadd.f32 %v1544, %v1546
    %v1549 = vadd.f32 %v1545, %v1547
    %v1552 = vrot.slane %v1548, 7
    %v1553 = vrot.slane %v1549, 7
    %v1556 = vadd.f32 %v189, %v1552
    %v1557 = vadd.f32 %v191, %v1553
    %v1558 = vxor.u32 %v1556, 2147483648
    %v1559 = vxor.u32 %v1557, 2147483648
    %v1560 = vmul.f32 %v1558, 1.442695
    %v1561 = vpow.pop %v1560
    %v1562 = vmul.f32 %v1559, 1.442695
    %v1563 = vpow.pop %v1562
    %v1564 = vadd.f32 %v1561, 1.0
    %v1565 = vadd.f32 %v1563, 1.0
    %v1566 = vrcp.pop %v1564
    %v1567 = vmul.f32 %v1564, %v1566
    %v1568 = vsub.f32 1.0, %v1567
    %v1569 = vmul.f32 %v1566, %v1568
    %v1570 = vadd.f32 %v1566, %v1569
    %vm1571 = vweird.f32 %v1564
    %vm1572 = vweird.f32 %v1566
    %vm1573 = vmor %vm1571, %vm1572
    %v1574 = vsel %vm1573, %v1566, %v1570
    %v1575 = vand.u32 2147483647, %v1564
    %vm1576 = vcmp.eq.f32.partialorder %v1575, 8.507059e+37
    %v1577 = vand.u32 %v1564, 2147483648
    %v1578 = vor.u32 1.1754944e-38, %v1577
    %v1579 = vsel %vm1576, %v1578, %v1574
    %v1580 = vmul.f32 1.0, %v1579
    %v1581 = vrcp.pop %v1565
    %v1582 = vmul.f32 %v1565, %v1581
    %v1583 = vsub.f32 1.0, %v1582
    %v1584 = vmul.f32 %v1581, %v1583
    %v1585 = vadd.f32 %v1581, %v1584
    %vm1586 = vweird.f32 %v1565
    %vm1587 = vweird.f32 %v1581
    %vm1588 = vmor %vm1586, %vm1587
    %v1589 = vsel %vm1588, %v1581, %v1585
    %v1590 = vand.u32 2147483647, %v1565
    %vm1591 = vcmp.eq.f32.partialorder %v1590, 8.507059e+37
    %v1592 = vand.u32 %v1565, 2147483648
    %v1593 = vor.u32 1.1754944e-38, %v1592
    %v1594 = vsel %vm1591, %v1593, %v1589
    %v1595 = vmul.f32 1.0, %v1594
    %v1596 = vtanh.pop %v1556
    %v1597 = vtanh.pop %v1557
    %v1600 = vrot.slane %v1392, 7
    %v1601 = vrot.slane %v1393, 7
    %v1604 = vmul.f32 %v1580, %v1600
    %v1605 = vmul.f32 %v1595, %v1601
    %1608 = vrot.lane.b32.xlu0 %v1596, 124
    %v1609 = vpop.permute.xlu0 %1608
    %1610 = vrot.lane.b32.xlu0 %v1597, 124
    %v1611 = vpop.permute.xlu0 %1610
    %v1614 = vmul.f32 %v1580, %v1609
    %v1615 = vmul.f32 %v1595, %v1611
    %1618 = vrot.lane.b32.xlu0 %v1614, 2
    %v1619 = vpop.permute.xlu0 %1618
    %1620 = vrot.lane.b32.xlu0 %v1615, 2
    %v1621 = vpop.permute.xlu0 %1620
    %v1624 = vadd.f32 %v1604, %v1619
    %v1625 = vadd.f32 %v1605, %v1621
    %v1626 = vtanh.pop %v1624
    %v1627 = vtanh.pop %v1625
    %1630 = vrot.lane.b32.xlu0 %v1626, 4
    %v1631 = vpop.permute.xlu0 %1630
    %1632 = vrot.lane.b32.xlu0 %v1627, 4
    %v1633 = vpop.permute.xlu0 %1632
    %v1636 = vmul.f32 %v1580, %v1631
    %v1637 = vmul.f32 %v1595, %v1633
    %1639 = vset.pattern.permute.xlu0 6
    %1640 = vperm.xlu0 %1639, %v1636
    %v1641 = vpop.permute.xlu0 %1640
    %1644 = vset.pattern.permute.xlu0 6
    %1645 = vperm.xlu0 %1644, %v1637
    %v1646 = vpop.permute.xlu0 %1645
    %v1648 = vmul.f32 %v1641, %v284
    %v1649 = vmul.f32 %v1646, %v284
    %1650 = vset.pattern.permute.xlu0 7
    %1651 = vperm.xlu0 %1650, %v1636
    %v1652 = vpop.permute.xlu0 %1651
    %1654 = vset.pattern.permute.xlu0 7
    %1655 = vperm.xlu0 %1654, %v1637
    %v1656 = vpop.permute.xlu0 %1655
    %v1658 = vmul.f32 %v1652, %v295
    %v1659 = vmul.f32 %v1656, %v295
    %v1660 = vadd.f32 %v1648, %v1658
    %v1661 = vadd.f32 %v1649, %v1659
    %1663 = vset.pattern.permute.xlu0 6
    %1664 = vperm.xlu0 %1663, %v1542
    %v1665 = vpop.permute.xlu0 %1664
    %1668 = vset.pattern.permute.xlu0 6
    %1669 = vperm.xlu0 %1668, %v1543
    %v1670 = vpop.permute.xlu0 %1669
    %v1672 = vmul.f32 %v1665, %v300
    %v1673 = vmul.f32 %v1670, %v300
    %1674 = vset.pattern.permute.xlu0 7
    %1675 = vperm.xlu0 %1674, %v1542
    %v1676 = vpop.permute.xlu0 %1675
    %1678 = vset.pattern.permute.xlu0 7
    %1679 = vperm.xlu0 %1678, %v1543
    %v1680 = vpop.permute.xlu0 %1679
    %v1682 = vmul.f32 %v1676, %v302
    %v1683 = vmul.f32 %v1680, %v302
    %v1684 = vadd.f32 %v1672, %v1682
    %v1685 = vadd.f32 %v1673, %v1683
    %v1688 = vrot.slane %v1684, 7
    %v1689 = vrot.slane %v1685, 7
    %v1692 = vadd.f32 %v1660, %v1688
    %v1693 = vadd.f32 %v1661, %v1689
    %v1694 = vadd.f32 %v1692, %v307
    %v1695 = vadd.f32 %v1693, %v307
    %v1696 = vxor.u32 %v1694, 2147483648
    %v1697 = vxor.u32 %v1695, 2147483648
    %v1698 = vmul.f32 %v1696, 1.442695
    %v1699 = vpow.pop %v1698
    %v1700 = vmul.f32 %v1697, 1.442695
    %v1701 = vpow.pop %v1700
    %v1702 = vadd.f32 %v1699, 1.0
    %v1703 = vadd.f32 %v1701, 1.0
    %v1704 = vrcp.pop %v1702
    %v1705 = vmul.f32 %v1702, %v1704
    %v1706 = vsub.f32 1.0, %v1705
    %v1707 = vmul.f32 %v1704, %v1706
    %v1708 = vadd.f32 %v1704, %v1707
    %vm1709 = vweird.f32 %v1702
    %vm1710 = vweird.f32 %v1704
    %vm1711 = vmor %vm1709, %vm1710
    %v1712 = vsel %vm1711, %v1704, %v1708
    %v1713 = vand.u32 2147483647, %v1702
    %vm1714 = vcmp.eq.f32.partialorder %v1713, 8.507059e+37
    %v1715 = vand.u32 %v1702, 2147483648
    %v1716 = vor.u32 1.1754944e-38, %v1715
    %v1717 = vsel %vm1714, %v1716, %v1712
    %v1718 = vmul.f32 1.0, %v1717
    %v1719 = vrcp.pop %v1703
    %v1720 = vmul.f32 %v1703, %v1719
    %v1721 = vsub.f32 1.0, %v1720
    %v1722 = vmul.f32 %v1719, %v1721
    %v1723 = vadd.f32 %v1719, %v1722
    %vm1724 = vweird.f32 %v1703
    %vm1725 = vweird.f32 %v1719
    %vm1726 = vmor %vm1724, %vm1725
    %v1727 = vsel %vm1726, %v1719, %v1723
    %v1728 = vand.u32 2147483647, %v1703
    %vm1729 = vcmp.eq.f32.partialorder %v1728, 8.507059e+37
    %v1730 = vand.u32 %v1703, 2147483648
    %v1731 = vor.u32 1.1754944e-38, %v1730
    %v1732 = vsel %vm1729, %v1731, %v1727
    %v1733 = vmul.f32 1.0, %v1732
    %v1734 = vtanh.pop %v1694
    %v1735 = vtanh.pop %v1695
    %v1738 = vrot.slane %v1530, 7
    %v1739 = vrot.slane %v1531, 7
    %v1742 = vmul.f32 %v1718, %v1738
    %v1743 = vmul.f32 %v1733, %v1739
    %1746 = vrot.lane.b32.xlu0 %v1734, 124
    %v1747 = vpop.permute.xlu0 %1746
    %1748 = vrot.lane.b32.xlu0 %v1735, 124
    %v1749 = vpop.permute.xlu0 %1748
    %v1752 = vmul.f32 %v1718, %v1747
    %v1753 = vmul.f32 %v1733, %v1749
    %1756 = vrot.lane.b32.xlu0 %v1752, 2
    %v1757 = vpop.permute.xlu0 %1756
    %1758 = vrot.lane.b32.xlu0 %v1753, 2
    %v1759 = vpop.permute.xlu0 %1758
    %v1762 = vadd.f32 %v1742, %v1757
    %v1763 = vadd.f32 %v1743, %v1759
    %v1764 = vtanh.pop %v1762
    %v1765 = vtanh.pop %v1763
    %1768 = vrot.lane.b32.xlu0 %v1764, 4
    %v1769 = vpop.permute.xlu0 %1768
    %1770 = vrot.lane.b32.xlu0 %v1765, 4
    %v1771 = vpop.permute.xlu0 %1770
    %v1774 = vmul.f32 %v1718, %v1769
    %v1775 = vmul.f32 %v1733, %v1771
    %v1776 = vmul.f32 %v1641, %v193
    %v1777 = vmul.f32 %v1646, %v193
    %v1778 = vmul.f32 %v1652, %v195
    %v1779 = vmul.f32 %v1656, %v195
    %v1780 = vadd.f32 %v1776, %v1778
    %v1781 = vadd.f32 %v1777, %v1779
    %v1784 = vrot.slane %v1780, 7
    %v1785 = vrot.slane %v1781, 7
    %v1788 = vadd.f32 %v189, %v1784
    %v1789 = vadd.f32 %v191, %v1785
    %v1790 = vxor.u32 %v1788, 2147483648
    %v1791 = vxor.u32 %v1789, 2147483648
    %v1792 = vmul.f32 %v1790, 1.442695
    %v1793 = vpow.pop %v1792
    %v1794 = vmul.f32 %v1791, 1.442695
    %v1795 = vpow.pop %v1794
    %v1796 = vadd.f32 %v1793, 1.0
    %v1797 = vadd.f32 %v1795, 1.0
    %v1798 = vrcp.pop %v1796
    %v1799 = vmul.f32 %v1796, %v1798
    %v1800 = vsub.f32 1.0, %v1799
    %v1801 = vmul.f32 %v1798, %v1800
    %v1802 = vadd.f32 %v1798, %v1801
    %vm1803 = vweird.f32 %v1796
    %vm1804 = vweird.f32 %v1798
    %vm1805 = vmor %vm1803, %vm1804
    %v1806 = vsel %vm1805, %v1798, %v1802
    %v1807 = vand.u32 2147483647, %v1796
    %vm1808 = vcmp.eq.f32.partialorder %v1807, 8.507059e+37
    %v1809 = vand.u32 %v1796, 2147483648
    %v1810 = vor.u32 1.1754944e-38, %v1809
    %v1811 = vsel %vm1808, %v1810, %v1806
    %v1812 = vmul.f32 1.0, %v1811
    %v1813 = vrcp.pop %v1797
    %v1814 = vmul.f32 %v1797, %v1813
    %v1815 = vsub.f32 1.0, %v1814
    %v1816 = vmul.f32 %v1813, %v1815
    %v1817 = vadd.f32 %v1813, %v1816
    %vm1818 = vweird.f32 %v1797
    %vm1819 = vweird.f32 %v1813
    %vm1820 = vmor %vm1818, %vm1819
    %v1821 = vsel %vm1820, %v1813, %v1817
    %v1822 = vand.u32 2147483647, %v1797
    %vm1823 = vcmp.eq.f32.partialorder %v1822, 8.507059e+37
    %v1824 = vand.u32 %v1797, 2147483648
    %v1825 = vor.u32 1.1754944e-38, %v1824
    %v1826 = vsel %vm1823, %v1825, %v1821
    %v1827 = vmul.f32 1.0, %v1826
    %v1828 = vtanh.pop %v1788
    %v1829 = vtanh.pop %v1789
    %v1832 = vrot.slane %v1624, 7
    %v1833 = vrot.slane %v1625, 7
    %v1836 = vmul.f32 %v1812, %v1832
    %v1837 = vmul.f32 %v1827, %v1833
    %1840 = vrot.lane.b32.xlu0 %v1828, 124
    %v1841 = vpop.permute.xlu0 %1840
    %1842 = vrot.lane.b32.xlu0 %v1829, 124
    %v1843 = vpop.permute.xlu0 %1842
    %v1846 = vmul.f32 %v1812, %v1841
    %v1847 = vmul.f32 %v1827, %v1843
    %1850 = vrot.lane.b32.xlu0 %v1846, 2
    %v1851 = vpop.permute.xlu0 %1850
    %1852 = vrot.lane.b32.xlu0 %v1847, 2
    %v1853 = vpop.permute.xlu0 %1852
    %v1856 = vadd.f32 %v1836, %v1851
    %v1857 = vadd.f32 %v1837, %v1853
    %v1858 = vtanh.pop %v1856
    %v1859 = vtanh.pop %v1857
    %1862 = vrot.lane.b32.xlu0 %v1858, 4
    %v1863 = vpop.permute.xlu0 %1862
    %1864 = vrot.lane.b32.xlu0 %v1859, 4
    %v1865 = vpop.permute.xlu0 %1864
    %v1868 = vmul.f32 %v1812, %v1863
    %v1869 = vmul.f32 %v1827, %v1865
    %1871 = vset.pattern.permute.xlu0 6
    %1872 = vperm.xlu0 %1871, %v1868
    %v1873 = vpop.permute.xlu0 %1872
    %1876 = vset.pattern.permute.xlu0 6
    %1877 = vperm.xlu0 %1876, %v1869
    %v1878 = vpop.permute.xlu0 %1877
    %v1880 = vmul.f32 %v1873, %v284
    %v1881 = vmul.f32 %v1878, %v284
    %1882 = vset.pattern.permute.xlu0 7
    %1883 = vperm.xlu0 %1882, %v1868
    %v1884 = vpop.permute.xlu0 %1883
    %1886 = vset.pattern.permute.xlu0 7
    %1887 = vperm.xlu0 %1886, %v1869
    %v1888 = vpop.permute.xlu0 %1887
    %v1890 = vmul.f32 %v1884, %v295
    %v1891 = vmul.f32 %v1888, %v295
    %v1892 = vadd.f32 %v1880, %v1890
    %v1893 = vadd.f32 %v1881, %v1891
    %1895 = vset.pattern.permute.xlu0 6
    %1896 = vperm.xlu0 %1895, %v1774
    %v1897 = vpop.permute.xlu0 %1896
    %1900 = vset.pattern.permute.xlu0 6
    %1901 = vperm.xlu0 %1900, %v1775
    %v1902 = vpop.permute.xlu0 %1901
    %v1904 = vmul.f32 %v1897, %v300
    %v1905 = vmul.f32 %v1902, %v300
    %1906 = vset.pattern.permute.xlu0 7
    %1907 = vperm.xlu0 %1906, %v1774
    %v1908 = vpop.permute.xlu0 %1907
    %1910 = vset.pattern.permute.xlu0 7
    %1911 = vperm.xlu0 %1910, %v1775
    %v1912 = vpop.permute.xlu0 %1911
    %v1914 = vmul.f32 %v1908, %v302
    %v1915 = vmul.f32 %v1912, %v302
    %v1916 = vadd.f32 %v1904, %v1914
    %v1917 = vadd.f32 %v1905, %v1915
    %v1920 = vrot.slane %v1916, 7
    %v1921 = vrot.slane %v1917, 7
    %v1924 = vadd.f32 %v1892, %v1920
    %v1925 = vadd.f32 %v1893, %v1921
    %v1926 = vadd.f32 %v1924, %v307
    %v1927 = vadd.f32 %v1925, %v307
    %v1928 = vxor.u32 %v1926, 2147483648
    %v1929 = vxor.u32 %v1927, 2147483648
    %v1930 = vmul.f32 %v1928, 1.442695
    %v1931 = vpow.pop %v1930
    %v1932 = vmul.f32 %v1929, 1.442695
    %v1933 = vpow.pop %v1932
    %v1934 = vadd.f32 %v1931, 1.0
    %v1935 = vadd.f32 %v1933, 1.0
    %v1936 = vrcp.pop %v1934
    %v1937 = vmul.f32 %v1934, %v1936
    %v1938 = vsub.f32 1.0, %v1937
    %v1939 = vmul.f32 %v1936, %v1938
    %v1940 = vadd.f32 %v1936, %v1939
    %vm1941 = vweird.f32 %v1934
    %vm1942 = vweird.f32 %v1936
    %vm1943 = vmor %vm1941, %vm1942
    %v1944 = vsel %vm1943, %v1936, %v1940
    %v1945 = vand.u32 2147483647, %v1934
    %vm1946 = vcmp.eq.f32.partialorder %v1945, 8.507059e+37
    %v1947 = vand.u32 %v1934, 2147483648
    %v1948 = vor.u32 1.1754944e-38, %v1947
    %v1949 = vsel %vm1946, %v1948, %v1944
    %v1950 = vmul.f32 1.0, %v1949
    %v1951 = vrcp.pop %v1935
    %v1952 = vmul.f32 %v1935, %v1951
    %v1953 = vsub.f32 1.0, %v1952
    %v1954 = vmul.f32 %v1951, %v1953
    %v1955 = vadd.f32 %v1951, %v1954
    %vm1956 = vweird.f32 %v1935
    %vm1957 = vweird.f32 %v1951
    %vm1958 = vmor %vm1956, %vm1957
    %v1959 = vsel %vm1958, %v1951, %v1955
    %v1960 = vand.u32 2147483647, %v1935
    %vm1961 = vcmp.eq.f32.partialorder %v1960, 8.507059e+37
    %v1962 = vand.u32 %v1935, 2147483648
    %v1963 = vor.u32 1.1754944e-38, %v1962
    %v1964 = vsel %vm1961, %v1963, %v1959
    %v1965 = vmul.f32 1.0, %v1964
    %v1966 = vtanh.pop %v1926
    %v1967 = vtanh.pop %v1927
    %v1970 = vrot.slane %v1762, 7
    %v1971 = vrot.slane %v1763, 7
    %v1974 = vmul.f32 %v1950, %v1970
    %v1975 = vmul.f32 %v1965, %v1971
    %1978 = vrot.lane.b32.xlu0 %v1966, 124
    %v1979 = vpop.permute.xlu0 %1978
    %1980 = vrot.lane.b32.xlu0 %v1967, 124
    %v1981 = vpop.permute.xlu0 %1980
    %v1984 = vmul.f32 %v1950, %v1979
    %v1985 = vmul.f32 %v1965, %v1981
    %1988 = vrot.lane.b32.xlu0 %v1984, 2
    %v1989 = vpop.permute.xlu0 %1988
    %1990 = vrot.lane.b32.xlu0 %v1985, 2
    %v1991 = vpop.permute.xlu0 %1990
    %v1994 = vadd.f32 %v1974, %v1989
    %v1995 = vadd.f32 %v1975, %v1991
    %v1996 = vtanh.pop %v1994
    %v1997 = vtanh.pop %v1995
    %2000 = vrot.lane.b32.xlu0 %v1996, 4
    %v2001 = vpop.permute.xlu0 %2000
    %2002 = vrot.lane.b32.xlu0 %v1997, 4
    %v2003 = vpop.permute.xlu0 %2002
    %v2006 = vmul.f32 %v1950, %v2001
    %v2007 = vmul.f32 %v1965, %v2003
    %v2008 = vmul.f32 %v1873, %v193
    %v2009 = vmul.f32 %v1878, %v193
    %v2010 = vmul.f32 %v1884, %v195
    %v2011 = vmul.f32 %v1888, %v195
    %v2012 = vadd.f32 %v2008, %v2010
    %v2013 = vadd.f32 %v2009, %v2011
    %v2016 = vrot.slane %v2012, 7
    %v2017 = vrot.slane %v2013, 7
    %v2020 = vadd.f32 %v190, %v2016
    %v2021 = vadd.f32 %v192, %v2017
    %v2022 = vxor.u32 %v2020, 2147483648
    %v2023 = vxor.u32 %v2021, 2147483648
    %v2024 = vmul.f32 %v2022, 1.442695
    %v2025 = vpow.pop %v2024
    %v2026 = vmul.f32 %v2023, 1.442695
    %v2027 = vpow.pop %v2026
    %v2028 = vadd.f32 %v2025, 1.0
    %v2029 = vadd.f32 %v2027, 1.0
    %v2030 = vrcp.pop %v2028
    %v2031 = vmul.f32 %v2028, %v2030
    %v2032 = vsub.f32 1.0, %v2031
    %v2033 = vmul.f32 %v2030, %v2032
    %v2034 = vadd.f32 %v2030, %v2033
    %vm2035 = vweird.f32 %v2028
    %vm2036 = vweird.f32 %v2030
    %vm2037 = vmor %vm2035, %vm2036
    %v2038 = vsel %vm2037, %v2030, %v2034
    %v2039 = vand.u32 2147483647, %v2028
    %vm2040 = vcmp.eq.f32.partialorder %v2039, 8.507059e+37
    %v2041 = vand.u32 %v2028, 2147483648
    %v2042 = vor.u32 1.1754944e-38, %v2041
    %v2043 = vsel %vm2040, %v2042, %v2038
    %v2044 = vmul.f32 1.0, %v2043
    %v2045 = vrcp.pop %v2029
    %v2046 = vmul.f32 %v2029, %v2045
    %v2047 = vsub.f32 1.0, %v2046
    %v2048 = vmul.f32 %v2045, %v2047
    %v2049 = vadd.f32 %v2045, %v2048
    %vm2050 = vweird.f32 %v2029
    %vm2051 = vweird.f32 %v2045
    %vm2052 = vmor %vm2050, %vm2051
    %v2053 = vsel %vm2052, %v2045, %v2049
    %v2054 = vand.u32 2147483647, %v2029
    %vm2055 = vcmp.eq.f32.partialorder %v2054, 8.507059e+37
    %v2056 = vand.u32 %v2029, 2147483648
    %v2057 = vor.u32 1.1754944e-38, %v2056
    %v2058 = vsel %vm2055, %v2057, %v2053
    %v2059 = vmul.f32 1.0, %v2058
    %v2060 = vtanh.pop %v2020
    %v2061 = vtanh.pop %v2021
    %v2064 = vrot.slane %v1856, 7
    %v2065 = vrot.slane %v1857, 7
    %v2068 = vmul.f32 %v2044, %v2064
    %v2069 = vmul.f32 %v2059, %v2065
    %2072 = vrot.lane.b32.xlu0 %v2060, 124
    %v2073 = vpop.permute.xlu0 %2072
    %2074 = vrot.lane.b32.xlu0 %v2061, 124
    %v2075 = vpop.permute.xlu0 %2074
    %v2078 = vmul.f32 %v2044, %v2073
    %v2079 = vmul.f32 %v2059, %v2075
    %2082 = vrot.lane.b32.xlu0 %v2078, 2
    %v2083 = vpop.permute.xlu0 %2082
    %2084 = vrot.lane.b32.xlu0 %v2079, 2
    %v2085 = vpop.permute.xlu0 %2084
    %v2088 = vadd.f32 %v2068, %v2083
    %v2089 = vadd.f32 %v2069, %v2085
    %v2090 = vtanh.pop %v2088
    %v2091 = vtanh.pop %v2089
    %2094 = vrot.lane.b32.xlu0 %v2090, 4
    %v2095 = vpop.permute.xlu0 %2094
    %2096 = vrot.lane.b32.xlu0 %v2091, 4
    %v2097 = vpop.permute.xlu0 %2096
    %v2100 = vmul.f32 %v2044, %v2095
    %v2101 = vmul.f32 %v2059, %v2097
    %2103 = vset.pattern.permute.xlu0 6
    %2104 = vperm.xlu0 %2103, %v2100
    %v2105 = vpop.permute.xlu0 %2104
    %2108 = vset.pattern.permute.xlu0 6
    %2109 = vperm.xlu0 %2108, %v2101
    %v2110 = vpop.permute.xlu0 %2109
    %v2112 = vmul.f32 %v2105, %v284
    %v2113 = vmul.f32 %v2110, %v284
    %2114 = vset.pattern.permute.xlu0 7
    %2115 = vperm.xlu0 %2114, %v2100
    %v2116 = vpop.permute.xlu0 %2115
    %2118 = vset.pattern.permute.xlu0 7
    %2119 = vperm.xlu0 %2118, %v2101
    %v2120 = vpop.permute.xlu0 %2119
    %v2122 = vmul.f32 %v2116, %v295
    %v2123 = vmul.f32 %v2120, %v295
    %v2124 = vadd.f32 %v2112, %v2122
    %v2125 = vadd.f32 %v2113, %v2123
    %2127 = vset.pattern.permute.xlu0 6
    %2128 = vperm.xlu0 %2127, %v2006
    %v2129 = vpop.permute.xlu0 %2128
    %2132 = vset.pattern.permute.xlu0 6
    %2133 = vperm.xlu0 %2132, %v2007
    %v2134 = vpop.permute.xlu0 %2133
    %v2136 = vmul.f32 %v2129, %v300
    %v2137 = vmul.f32 %v2134, %v300
    %2138 = vset.pattern.permute.xlu0 7
    %2139 = vperm.xlu0 %2138, %v2006
    %v2140 = vpop.permute.xlu0 %2139
    %2142 = vset.pattern.permute.xlu0 7
    %2143 = vperm.xlu0 %2142, %v2007
    %v2144 = vpop.permute.xlu0 %2143
    %v2146 = vmul.f32 %v2140, %v302
    %v2147 = vmul.f32 %v2144, %v302
    %v2148 = vadd.f32 %v2136, %v2146
    %v2149 = vadd.f32 %v2137, %v2147
    %v2152 = vrot.slane %v2148, 7
    %v2153 = vrot.slane %v2149, 7
    %v2156 = vadd.f32 %v2124, %v2152
    %v2157 = vadd.f32 %v2125, %v2153
    %v2158 = vadd.f32 %v2156, %v307
    %v2159 = vadd.f32 %v2157, %v307
    %v2160 = vxor.u32 %v2158, 2147483648
    %v2161 = vxor.u32 %v2159, 2147483648
    %v2162 = vmul.f32 %v2160, 1.442695
    %v2163 = vpow.pop %v2162
    %v2164 = vmul.f32 %v2161, 1.442695
    %v2165 = vpow.pop %v2164
    %v2166 = vadd.f32 %v2163, 1.0
    %v2167 = vadd.f32 %v2165, 1.0
    %v2168 = vrcp.pop %v2166
    %v2169 = vmul.f32 %v2166, %v2168
    %v2170 = vsub.f32 1.0, %v2169
    %v2171 = vmul.f32 %v2168, %v2170
    %v2172 = vadd.f32 %v2168, %v2171
    %vm2173 = vweird.f32 %v2166
    %vm2174 = vweird.f32 %v2168
    %vm2175 = vmor %vm2173, %vm2174
    %v2176 = vsel %vm2175, %v2168, %v2172
    %v2177 = vand.u32 2147483647, %v2166
    %vm2178 = vcmp.eq.f32.partialorder %v2177, 8.507059e+37
    %v2179 = vand.u32 %v2166, 2147483648
    %v2180 = vor.u32 1.1754944e-38, %v2179
    %v2181 = vsel %vm2178, %v2180, %v2176
    %v2182 = vmul.f32 1.0, %v2181
    %v2183 = vrcp.pop %v2167
    %v2184 = vmul.f32 %v2167, %v2183
    %v2185 = vsub.f32 1.0, %v2184
    %v2186 = vmul.f32 %v2183, %v2185
    %v2187 = vadd.f32 %v2183, %v2186
    %vm2188 = vweird.f32 %v2167
    %vm2189 = vweird.f32 %v2183
    %vm2190 = vmor %vm2188, %vm2189
    %v2191 = vsel %vm2190, %v2183, %v2187
    %v2192 = vand.u32 2147483647, %v2167
    %vm2193 = vcmp.eq.f32.partialorder %v2192, 8.507059e+37
    %v2194 = vand.u32 %v2167, 2147483648
    %v2195 = vor.u32 1.1754944e-38, %v2194
    %v2196 = vsel %vm2193, %v2195, %v2191
    %v2197 = vmul.f32 1.0, %v2196
    %v2198 = vtanh.pop %v2158
    %v2199 = vtanh.pop %v2159
    %v2202 = vrot.slane %v1994, 7
    %v2203 = vrot.slane %v1995, 7
    %v2206 = vmul.f32 %v2182, %v2202
    %v2207 = vmul.f32 %v2197, %v2203
    %2210 = vrot.lane.b32.xlu0 %v2198, 124
    %v2211 = vpop.permute.xlu0 %2210
    %2212 = vrot.lane.b32.xlu0 %v2199, 124
    %v2213 = vpop.permute.xlu0 %2212
    %v2216 = vmul.f32 %v2182, %v2211
    %v2217 = vmul.f32 %v2197, %v2213
    %2220 = vrot.lane.b32.xlu0 %v2216, 2
    %v2221 = vpop.permute.xlu0 %2220
    %2222 = vrot.lane.b32.xlu0 %v2217, 2
    %v2223 = vpop.permute.xlu0 %2222
    %v2226 = vadd.f32 %v2206, %v2221
    %v2227 = vadd.f32 %v2207, %v2223
    %v2228 = vtanh.pop %v2226
    %v2229 = vtanh.pop %v2227
    %2232 = vrot.lane.b32.xlu0 %v2228, 4
    %v2233 = vpop.permute.xlu0 %2232
    %2234 = vrot.lane.b32.xlu0 %v2229, 4
    %v2235 = vpop.permute.xlu0 %2234
    %v2238 = vmul.f32 %v2182, %v2233
    %v2239 = vmul.f32 %v2197, %v2235
    %v2240 = vmul.f32 %v2105, %v193
    %v2241 = vmul.f32 %v2110, %v193
    %v2242 = vmul.f32 %v2116, %v195
    %v2243 = vmul.f32 %v2120, %v195
    %v2244 = vadd.f32 %v2240, %v2242
    %v2245 = vadd.f32 %v2241, %v2243
    %v2248 = vrot.slane %v2244, 7
    %v2249 = vrot.slane %v2245, 7
    %v2252 = vadd.f32 %v190, %v2248
    %v2253 = vadd.f32 %v192, %v2249
    %v2254 = vxor.u32 %v2252, 2147483648
    %v2255 = vxor.u32 %v2253, 2147483648
    %v2256 = vmul.f32 %v2254, 1.442695
    %v2257 = vpow.pop %v2256
    %v2258 = vmul.f32 %v2255, 1.442695
    %v2259 = vpow.pop %v2258
    %v2260 = vadd.f32 %v2257, 1.0
    %v2261 = vadd.f32 %v2259, 1.0
    %v2262 = vrcp.pop %v2260
    %v2263 = vmul.f32 %v2260, %v2262
    %v2264 = vsub.f32 1.0, %v2263
    %v2265 = vmul.f32 %v2262, %v2264
    %v2266 = vadd.f32 %v2262, %v2265
    %vm2267 = vweird.f32 %v2260
    %vm2268 = vweird.f32 %v2262
    %vm2269 = vmor %vm2267, %vm2268
    %v2270 = vsel %vm2269, %v2262, %v2266
    %v2271 = vand.u32 2147483647, %v2260
    %vm2272 = vcmp.eq.f32.partialorder %v2271, 8.507059e+37
    %v2273 = vand.u32 %v2260, 2147483648
    %v2274 = vor.u32 1.1754944e-38, %v2273
    %v2275 = vsel %vm2272, %v2274, %v2270
    %v2276 = vmul.f32 1.0, %v2275
    %v2277 = vrcp.pop %v2261
    %v2278 = vmul.f32 %v2261, %v2277
    %v2279 = vsub.f32 1.0, %v2278
    %v2280 = vmul.f32 %v2277, %v2279
    %v2281 = vadd.f32 %v2277, %v2280
    %vm2282 = vweird.f32 %v2261
    %vm2283 = vweird.f32 %v2277
    %vm2284 = vmor %vm2282, %vm2283
    %v2285 = vsel %vm2284, %v2277, %v2281
    %v2286 = vand.u32 2147483647, %v2261
    %vm2287 = vcmp.eq.f32.partialorder %v2286, 8.507059e+37
    %v2288 = vand.u32 %v2261, 2147483648
    %v2289 = vor.u32 1.1754944e-38, %v2288
    %v2290 = vsel %vm2287, %v2289, %v2285
    %v2291 = vmul.f32 1.0, %v2290
    %v2292 = vtanh.pop %v2252
    %v2293 = vtanh.pop %v2253
    %v2296 = vrot.slane %v2088, 7
    %v2297 = vrot.slane %v2089, 7
    %v2300 = vmul.f32 %v2276, %v2296
    %v2301 = vmul.f32 %v2291, %v2297
    %2304 = vrot.lane.b32.xlu0 %v2292, 124
    %v2305 = vpop.permute.xlu0 %2304
    %2306 = vrot.lane.b32.xlu0 %v2293, 124
    %v2307 = vpop.permute.xlu0 %2306
    %v2310 = vmul.f32 %v2276, %v2305
    %v2311 = vmul.f32 %v2291, %v2307
    %2314 = vrot.lane.b32.xlu0 %v2310, 2
    %v2315 = vpop.permute.xlu0 %2314
    %2316 = vrot.lane.b32.xlu0 %v2311, 2
    %v2317 = vpop.permute.xlu0 %2316
    %v2320 = vadd.f32 %v2300, %v2315
    %v2321 = vadd.f32 %v2301, %v2317
    %v2322 = vtanh.pop %v2320
    %v2323 = vtanh.pop %v2321
    %2326 = vrot.lane.b32.xlu0 %v2322, 4
    %v2327 = vpop.permute.xlu0 %2326
    %2328 = vrot.lane.b32.xlu0 %v2323, 4
    %v2329 = vpop.permute.xlu0 %2328
    %v2332 = vmul.f32 %v2276, %v2327
    %v2333 = vmul.f32 %v2291, %v2329
    %2335 = vset.pattern.permute.xlu0 6
    %2336 = vperm.xlu0 %2335, %v2332
    %v2337 = vpop.permute.xlu0 %2336
    %2340 = vset.pattern.permute.xlu0 6
    %2341 = vperm.xlu0 %2340, %v2333
    %v2342 = vpop.permute.xlu0 %2341
    %v2344 = vmul.f32 %v2337, %v284
    %v2345 = vmul.f32 %v2342, %v284
    %2346 = vset.pattern.permute.xlu0 7
    %2347 = vperm.xlu0 %2346, %v2332
    %v2348 = vpop.permute.xlu0 %2347
    %2350 = vset.pattern.permute.xlu0 7
    %2351 = vperm.xlu0 %2350, %v2333
    %v2352 = vpop.permute.xlu0 %2351
    %v2354 = vmul.f32 %v2348, %v295
    %v2355 = vmul.f32 %v2352, %v295
    %v2356 = vadd.f32 %v2344, %v2354
    %v2357 = vadd.f32 %v2345, %v2355
    %2359 = vset.pattern.permute.xlu0 6
    %2360 = vperm.xlu0 %2359, %v2238
    %v2361 = vpop.permute.xlu0 %2360
    %2364 = vset.pattern.permute.xlu0 6
    %2365 = vperm.xlu0 %2364, %v2239
    %v2366 = vpop.permute.xlu0 %2365
    %v2368 = vmul.f32 %v2361, %v300
    %v2369 = vmul.f32 %v2366, %v300
    %2370 = vset.pattern.permute.xlu0 7
    %2371 = vperm.xlu0 %2370, %v2238
    %v2372 = vpop.permute.xlu0 %2371
    %2374 = vset.pattern.permute.xlu0 7
    %2375 = vperm.xlu0 %2374, %v2239
    %v2376 = vpop.permute.xlu0 %2375
    %v2378 = vmul.f32 %v2372, %v302
    %v2379 = vmul.f32 %v2376, %v302
    %v2380 = vadd.f32 %v2368, %v2378
    %v2381 = vadd.f32 %v2369, %v2379
    %v2384 = vrot.slane %v2380, 7
    %v2385 = vrot.slane %v2381, 7
    %v2388 = vadd.f32 %v2356, %v2384
    %v2389 = vadd.f32 %v2357, %v2385
    %v2390 = vadd.f32 %v2388, %v307
    %v2391 = vadd.f32 %v2389, %v307
    %v2392 = vxor.u32 %v2390, 2147483648
    %v2393 = vxor.u32 %v2391, 2147483648
    %v2394 = vmul.f32 %v2392, 1.442695
    %v2395 = vpow.pop %v2394
    %v2396 = vmul.f32 %v2393, 1.442695
    %v2397 = vpow.pop %v2396
    %v2398 = vadd.f32 %v2395, 1.0
    %v2399 = vadd.f32 %v2397, 1.0
    %v2400 = vrcp.pop %v2398
    %v2401 = vmul.f32 %v2398, %v2400
    %v2402 = vsub.f32 1.0, %v2401
    %v2403 = vmul.f32 %v2400, %v2402
    %v2404 = vadd.f32 %v2400, %v2403
    %vm2405 = vweird.f32 %v2398
    %vm2406 = vweird.f32 %v2400
    %vm2407 = vmor %vm2405, %vm2406
    %v2408 = vsel %vm2407, %v2400, %v2404
    %v2409 = vand.u32 2147483647, %v2398
    %vm2410 = vcmp.eq.f32.partialorder %v2409, 8.507059e+37
    %v2411 = vand.u32 %v2398, 2147483648
    %v2412 = vor.u32 1.1754944e-38, %v2411
    %v2413 = vsel %vm2410, %v2412, %v2408
    %v2414 = vmul.f32 1.0, %v2413
    %v2415 = vrcp.pop %v2399
    %v2416 = vmul.f32 %v2399, %v2415
    %v2417 = vsub.f32 1.0, %v2416
    %v2418 = vmul.f32 %v2415, %v2417
    %v2419 = vadd.f32 %v2415, %v2418
    %vm2420 = vweird.f32 %v2399
    %vm2421 = vweird.f32 %v2415
    %vm2422 = vmor %vm2420, %vm2421
    %v2423 = vsel %vm2422, %v2415, %v2419
    %v2424 = vand.u32 2147483647, %v2399
    %vm2425 = vcmp.eq.f32.partialorder %v2424, 8.507059e+37
    %v2426 = vand.u32 %v2399, 2147483648
    %v2427 = vor.u32 1.1754944e-38, %v2426
    %v2428 = vsel %vm2425, %v2427, %v2423
    %v2429 = vmul.f32 1.0, %v2428
    %v2430 = vtanh.pop %v2390
    %v2431 = vtanh.pop %v2391
    %v2434 = vrot.slane %v2226, 7
    %v2435 = vrot.slane %v2227, 7
    %v2438 = vmul.f32 %v2414, %v2434
    %v2439 = vmul.f32 %v2429, %v2435
    %2442 = vrot.lane.b32.xlu0 %v2430, 124
    %v2443 = vpop.permute.xlu0 %2442
    %2444 = vrot.lane.b32.xlu0 %v2431, 124
    %v2445 = vpop.permute.xlu0 %2444
    %v2448 = vmul.f32 %v2414, %v2443
    %v2449 = vmul.f32 %v2429, %v2445
    %2452 = vrot.lane.b32.xlu0 %v2448, 2
    %v2453 = vpop.permute.xlu0 %2452
    %2454 = vrot.lane.b32.xlu0 %v2449, 2
    %v2455 = vpop.permute.xlu0 %2454
    %v2458 = vadd.f32 %v2438, %v2453
    %v2459 = vadd.f32 %v2439, %v2455
    %v2460 = vtanh.pop %v2458
    %v2461 = vtanh.pop %v2459
    %2464 = vrot.lane.b32.xlu0 %v2460, 4
    %v2465 = vpop.permute.xlu0 %2464
    %2466 = vrot.lane.b32.xlu0 %v2461, 4
    %v2467 = vpop.permute.xlu0 %2466
    %v2470 = vmul.f32 %v2414, %v2465
    %v2471 = vmul.f32 %v2429, %v2467
    %v2472 = vmul.f32 %v2337, %v193
    %v2473 = vmul.f32 %v2342, %v193
    %v2474 = vmul.f32 %v2348, %v195
    %v2475 = vmul.f32 %v2352, %v195
    %v2476 = vadd.f32 %v2472, %v2474
    %v2477 = vadd.f32 %v2473, %v2475
    %v2480 = vrot.slane %v2476, 7
    %v2481 = vrot.slane %v2477, 7
    %v2484 = vadd.f32 %v190, %v2480
    %v2485 = vadd.f32 %v192, %v2481
    %v2486 = vxor.u32 %v2484, 2147483648
    %v2487 = vxor.u32 %v2485, 2147483648
    %v2488 = vmul.f32 %v2486, 1.442695
    %v2489 = vpow.pop %v2488
    %v2490 = vmul.f32 %v2487, 1.442695
    %v2491 = vpow.pop %v2490
    %v2492 = vadd.f32 %v2489, 1.0
    %v2493 = vadd.f32 %v2491, 1.0
    %v2494 = vrcp.pop %v2492
    %v2495 = vmul.f32 %v2492, %v2494
    %v2496 = vsub.f32 1.0, %v2495
    %v2497 = vmul.f32 %v2494, %v2496
    %v2498 = vadd.f32 %v2494, %v2497
    %vm2499 = vweird.f32 %v2492
    %vm2500 = vweird.f32 %v2494
    %vm2501 = vmor %vm2499, %vm2500
    %v2502 = vsel %vm2501, %v2494, %v2498
    %v2503 = vand.u32 2147483647, %v2492
    %vm2504 = vcmp.eq.f32.partialorder %v2503, 8.507059e+37
    %v2505 = vand.u32 %v2492, 2147483648
    %v2506 = vor.u32 1.1754944e-38, %v2505
    %v2507 = vsel %vm2504, %v2506, %v2502
    %v2508 = vmul.f32 1.0, %v2507
    %v2509 = vrcp.pop %v2493
    %v2510 = vmul.f32 %v2493, %v2509
    %v2511 = vsub.f32 1.0, %v2510
    %v2512 = vmul.f32 %v2509, %v2511
    %v2513 = vadd.f32 %v2509, %v2512
    %vm2514 = vweird.f32 %v2493
    %vm2515 = vweird.f32 %v2509
    %vm2516 = vmor %vm2514, %vm2515
    %v2517 = vsel %vm2516, %v2509, %v2513
    %v2518 = vand.u32 2147483647, %v2493
    %vm2519 = vcmp.eq.f32.partialorder %v2518, 8.507059e+37
    %v2520 = vand.u32 %v2493, 2147483648
    %v2521 = vor.u32 1.1754944e-38, %v2520
    %v2522 = vsel %vm2519, %v2521, %v2517
    %v2523 = vmul.f32 1.0, %v2522
    %v2524 = vtanh.pop %v2484
    %v2525 = vtanh.pop %v2485
    %v2528 = vrot.slane %v2320, 7
    %v2529 = vrot.slane %v2321, 7
    %v2532 = vmul.f32 %v2508, %v2528
    %v2533 = vmul.f32 %v2523, %v2529
    %2536 = vrot.lane.b32.xlu0 %v2524, 124
    %v2537 = vpop.permute.xlu0 %2536
    %2538 = vrot.lane.b32.xlu0 %v2525, 124
    %v2539 = vpop.permute.xlu0 %2538
    %v2542 = vmul.f32 %v2508, %v2537
    %v2543 = vmul.f32 %v2523, %v2539
    %2546 = vrot.lane.b32.xlu0 %v2542, 2
    %v2547 = vpop.permute.xlu0 %2546
    %2548 = vrot.lane.b32.xlu0 %v2543, 2
    %v2549 = vpop.permute.xlu0 %2548
    %v2552 = vadd.f32 %v2532, %v2547
    %v2553 = vadd.f32 %v2533, %v2549
    %v2554 = vtanh.pop %v2552
    %v2555 = vtanh.pop %v2553
    %2558 = vrot.lane.b32.xlu0 %v2554, 4
    %v2559 = vpop.permute.xlu0 %2558
    %2560 = vrot.lane.b32.xlu0 %v2555, 4
    %v2561 = vpop.permute.xlu0 %2560
    %v2564 = vmul.f32 %v2508, %v2559
    %v2565 = vmul.f32 %v2523, %v2561
    %2567 = vset.pattern.permute.xlu0 6
    %2568 = vperm.xlu0 %2567, %v2564
    %v2569 = vpop.permute.xlu0 %2568
    %2572 = vset.pattern.permute.xlu0 6
    %2573 = vperm.xlu0 %2572, %v2565
    %v2574 = vpop.permute.xlu0 %2573
    %v2576 = vmul.f32 %v2569, %v284
    %v2577 = vmul.f32 %v2574, %v284
    %2578 = vset.pattern.permute.xlu0 7
    %2579 = vperm.xlu0 %2578, %v2564
    %v2580 = vpop.permute.xlu0 %2579
    %2582 = vset.pattern.permute.xlu0 7
    %2583 = vperm.xlu0 %2582, %v2565
    %v2584 = vpop.permute.xlu0 %2583
    %v2586 = vmul.f32 %v2580, %v295
    %v2587 = vmul.f32 %v2584, %v295
    %v2588 = vadd.f32 %v2576, %v2586
    %v2589 = vadd.f32 %v2577, %v2587
    %2591 = vset.pattern.permute.xlu0 6
    %2592 = vperm.xlu0 %2591, %v2470
    %v2593 = vpop.permute.xlu0 %2592
    %2596 = vset.pattern.permute.xlu0 6
    %2597 = vperm.xlu0 %2596, %v2471
    %v2598 = vpop.permute.xlu0 %2597
    %v2600 = vmul.f32 %v2593, %v300
    %v2601 = vmul.f32 %v2598, %v300
    %2602 = vset.pattern.permute.xlu0 7
    %2603 = vperm.xlu0 %2602, %v2470
    %v2604 = vpop.permute.xlu0 %2603
    %2606 = vset.pattern.permute.xlu0 7
    %2607 = vperm.xlu0 %2606, %v2471
    %v2608 = vpop.permute.xlu0 %2607
    %v2610 = vmul.f32 %v2604, %v302
    %v2611 = vmul.f32 %v2608, %v302
    %v2612 = vadd.f32 %v2600, %v2610
    %v2613 = vadd.f32 %v2601, %v2611
    %v2616 = vrot.slane %v2612, 7
    %v2617 = vrot.slane %v2613, 7
    %v2620 = vadd.f32 %v2588, %v2616
    %v2621 = vadd.f32 %v2589, %v2617
    %v2622 = vadd.f32 %v2620, %v307
    %v2623 = vadd.f32 %v2621, %v307
    %v2624 = vxor.u32 %v2622, 2147483648
    %v2625 = vxor.u32 %v2623, 2147483648
    %v2626 = vmul.f32 %v2624, 1.442695
    %v2627 = vpow.pop %v2626
    %v2628 = vmul.f32 %v2625, 1.442695
    %v2629 = vpow.pop %v2628
    %v2630 = vadd.f32 %v2627, 1.0
    %v2631 = vadd.f32 %v2629, 1.0
    %v2632 = vrcp.pop %v2630
    %v2633 = vmul.f32 %v2630, %v2632
    %v2634 = vsub.f32 1.0, %v2633
    %v2635 = vmul.f32 %v2632, %v2634
    %v2636 = vadd.f32 %v2632, %v2635
    %vm2637 = vweird.f32 %v2630
    %vm2638 = vweird.f32 %v2632
    %vm2639 = vmor %vm2637, %vm2638
    %v2640 = vsel %vm2639, %v2632, %v2636
    %v2641 = vand.u32 2147483647, %v2630
    %vm2642 = vcmp.eq.f32.partialorder %v2641, 8.507059e+37
    %v2643 = vand.u32 %v2630, 2147483648
    %v2644 = vor.u32 1.1754944e-38, %v2643
    %v2645 = vsel %vm2642, %v2644, %v2640
    %v2646 = vmul.f32 1.0, %v2645
    %v2647 = vrcp.pop %v2631
    %v2648 = vmul.f32 %v2631, %v2647
    %v2649 = vsub.f32 1.0, %v2648
    %v2650 = vmul.f32 %v2647, %v2649
    %v2651 = vadd.f32 %v2647, %v2650
    %vm2652 = vweird.f32 %v2631
    %vm2653 = vweird.f32 %v2647
    %vm2654 = vmor %vm2652, %vm2653
    %v2655 = vsel %vm2654, %v2647, %v2651
    %v2656 = vand.u32 2147483647, %v2631
    %vm2657 = vcmp.eq.f32.partialorder %v2656, 8.507059e+37
    %v2658 = vand.u32 %v2631, 2147483648
    %v2659 = vor.u32 1.1754944e-38, %v2658
    %v2660 = vsel %vm2657, %v2659, %v2655
    %v2661 = vmul.f32 1.0, %v2660
    %v2662 = vtanh.pop %v2622
    %v2663 = vtanh.pop %v2623
    %v2666 = vrot.slane %v2458, 7
    %v2667 = vrot.slane %v2459, 7
    %v2670 = vmul.f32 %v2646, %v2666
    %v2671 = vmul.f32 %v2661, %v2667
    %2674 = vrot.lane.b32.xlu0 %v2662, 124
    %v2675 = vpop.permute.xlu0 %2674
    %2676 = vrot.lane.b32.xlu0 %v2663, 124
    %v2677 = vpop.permute.xlu0 %2676
    %v2680 = vmul.f32 %v2646, %v2675
    %v2681 = vmul.f32 %v2661, %v2677
    %2684 = vrot.lane.b32.xlu0 %v2680, 2
    %v2685 = vpop.permute.xlu0 %2684
    %2686 = vrot.lane.b32.xlu0 %v2681, 2
    %v2687 = vpop.permute.xlu0 %2686
    %v2690 = vadd.f32 %v2670, %v2685
    %v2691 = vadd.f32 %v2671, %v2687
    %v2692 = vtanh.pop %v2690
    %v2693 = vtanh.pop %v2691
    %2696 = vrot.lane.b32.xlu0 %v2692, 4
    %v2697 = vpop.permute.xlu0 %2696
    %2698 = vrot.lane.b32.xlu0 %v2693, 4
    %v2699 = vpop.permute.xlu0 %2698
    %v2702 = vmul.f32 %v2646, %v2697
    %v2703 = vmul.f32 %v2661, %v2699
    %v2704 = vmul.f32 %v2569, %v193
    %v2705 = vmul.f32 %v2574, %v193
    %v2706 = vmul.f32 %v2580, %v195
    %v2707 = vmul.f32 %v2584, %v195
    %v2708 = vadd.f32 %v2704, %v2706
    %v2709 = vadd.f32 %v2705, %v2707
    %v2712 = vrot.slane %v2708, 7
    %v2713 = vrot.slane %v2709, 7
    %v2716 = vadd.f32 %v190, %v2712
    %v2717 = vadd.f32 %v192, %v2713
    %v2718 = vxor.u32 %v2716, 2147483648
    %v2719 = vxor.u32 %v2717, 2147483648
    %v2720 = vmul.f32 %v2718, 1.442695
    %v2721 = vpow.pop %v2720
    %v2722 = vmul.f32 %v2719, 1.442695
    %v2723 = vpow.pop %v2722
    %v2724 = vadd.f32 %v2721, 1.0
    %v2725 = vadd.f32 %v2723, 1.0
    %v2726 = vrcp.pop %v2724
    %v2727 = vmul.f32 %v2724, %v2726
    %v2728 = vsub.f32 1.0, %v2727
    %v2729 = vmul.f32 %v2726, %v2728
    %v2730 = vadd.f32 %v2726, %v2729
    %vm2731 = vweird.f32 %v2724
    %vm2732 = vweird.f32 %v2726
    %vm2733 = vmor %vm2731, %vm2732
    %v2734 = vsel %vm2733, %v2726, %v2730
    %v2735 = vand.u32 2147483647, %v2724
    %vm2736 = vcmp.eq.f32.partialorder %v2735, 8.507059e+37
    %v2737 = vand.u32 %v2724, 2147483648
    %v2738 = vor.u32 1.1754944e-38, %v2737
    %v2739 = vsel %vm2736, %v2738, %v2734
    %v2740 = vmul.f32 1.0, %v2739
    %v2741 = vrcp.pop %v2725
    %v2742 = vmul.f32 %v2725, %v2741
    %v2743 = vsub.f32 1.0, %v2742
    %v2744 = vmul.f32 %v2741, %v2743
    %v2745 = vadd.f32 %v2741, %v2744
    %vm2746 = vweird.f32 %v2725
    %vm2747 = vweird.f32 %v2741
    %vm2748 = vmor %vm2746, %vm2747
    %v2749 = vsel %vm2748, %v2741, %v2745
    %v2750 = vand.u32 2147483647, %v2725
    %vm2751 = vcmp.eq.f32.partialorder %v2750, 8.507059e+37
    %v2752 = vand.u32 %v2725, 2147483648
    %v2753 = vor.u32 1.1754944e-38, %v2752
    %v2754 = vsel %vm2751, %v2753, %v2749
    %v2755 = vmul.f32 1.0, %v2754
    %v2756 = vtanh.pop %v2716
    %v2757 = vtanh.pop %v2717
    %v2760 = vrot.slane %v2552, 7
    %v2761 = vrot.slane %v2553, 7
    %v2764 = vmul.f32 %v2740, %v2760
    %v2765 = vmul.f32 %v2755, %v2761
    %2768 = vrot.lane.b32.xlu0 %v2756, 124
    %v2769 = vpop.permute.xlu0 %2768
    %2770 = vrot.lane.b32.xlu0 %v2757, 124
    %v2771 = vpop.permute.xlu0 %2770
    %v2774 = vmul.f32 %v2740, %v2769
    %v2775 = vmul.f32 %v2755, %v2771
    %2778 = vrot.lane.b32.xlu0 %v2774, 2
    %v2779 = vpop.permute.xlu0 %2778
    %2780 = vrot.lane.b32.xlu0 %v2775, 2
    %v2781 = vpop.permute.xlu0 %2780
    %v2784 = vadd.f32 %v2764, %v2779
    %v2785 = vadd.f32 %v2765, %v2781
    %v2786 = vtanh.pop %v2784
    %v2787 = vtanh.pop %v2785
    %2790 = vrot.lane.b32.xlu0 %v2786, 4
    %v2791 = vpop.permute.xlu0 %2790
    %2792 = vrot.lane.b32.xlu0 %v2787, 4
    %v2793 = vpop.permute.xlu0 %2792
    %v2796 = vmul.f32 %v2740, %v2791
    %v2797 = vmul.f32 %v2755, %v2793
    %2799 = vset.pattern.permute.xlu0 6
    %2800 = vperm.xlu0 %2799, %v2796
    %v2801 = vpop.permute.xlu0 %2800
    %2804 = vset.pattern.permute.xlu0 6
    %2805 = vperm.xlu0 %2804, %v2797
    %v2806 = vpop.permute.xlu0 %2805
    %v2808 = vmul.f32 %v2801, %v284
    %v2809 = vmul.f32 %v2806, %v284
    %2810 = vset.pattern.permute.xlu0 7
    %2811 = vperm.xlu0 %2810, %v2796
    %v2812 = vpop.permute.xlu0 %2811
    %2814 = vset.pattern.permute.xlu0 7
    %2815 = vperm.xlu0 %2814, %v2797
    %v2816 = vpop.permute.xlu0 %2815
    %v2818 = vmul.f32 %v2812, %v295
    %v2819 = vmul.f32 %v2816, %v295
    %v2820 = vadd.f32 %v2808, %v2818
    %v2821 = vadd.f32 %v2809, %v2819
    %2823 = vset.pattern.permute.xlu0 6
    %2824 = vperm.xlu0 %2823, %v2702
    %v2825 = vpop.permute.xlu0 %2824
    %2828 = vset.pattern.permute.xlu0 6
    %2829 = vperm.xlu0 %2828, %v2703
    %v2830 = vpop.permute.xlu0 %2829
    %v2832 = vmul.f32 %v2825, %v300
    %v2833 = vmul.f32 %v2830, %v300
    %2834 = vset.pattern.permute.xlu0 7
    %2835 = vperm.xlu0 %2834, %v2702
    %v2836 = vpop.permute.xlu0 %2835
    %2838 = vset.pattern.permute.xlu0 7
    %2839 = vperm.xlu0 %2838, %v2703
    %v2840 = vpop.permute.xlu0 %2839
    %v2842 = vmul.f32 %v2836, %v302
    %v2843 = vmul.f32 %v2840, %v302
    %v2844 = vadd.f32 %v2832, %v2842
    %v2845 = vadd.f32 %v2833, %v2843
    %v2848 = vrot.slane %v2844, 7
    %v2849 = vrot.slane %v2845, 7
    %v2852 = vadd.f32 %v2820, %v2848
    %v2853 = vadd.f32 %v2821, %v2849
    %v2854 = vadd.f32 %v2852, %v307
    %v2855 = vadd.f32 %v2853, %v307
    %v2856 = vxor.u32 %v2854, 2147483648
    %v2857 = vxor.u32 %v2855, 2147483648
    %v2858 = vmul.f32 %v2856, 1.442695
    %v2859 = vpow.pop %v2858
    %v2860 = vmul.f32 %v2857, 1.442695
    %v2861 = vpow.pop %v2860
    %v2862 = vadd.f32 %v2859, 1.0
    %v2863 = vadd.f32 %v2861, 1.0
    %v2864 = vrcp.pop %v2862
    %v2865 = vmul.f32 %v2862, %v2864
    %v2866 = vsub.f32 1.0, %v2865
    %v2867 = vmul.f32 %v2864, %v2866
    %v2868 = vadd.f32 %v2864, %v2867
    %vm2869 = vweird.f32 %v2862
    %vm2870 = vweird.f32 %v2864
    %vm2871 = vmor %vm2869, %vm2870
    %v2872 = vsel %vm2871, %v2864, %v2868
    %v2873 = vand.u32 2147483647, %v2862
    %vm2874 = vcmp.eq.f32.partialorder %v2873, 8.507059e+37
    %v2875 = vand.u32 %v2862, 2147483648
    %v2876 = vor.u32 1.1754944e-38, %v2875
    %v2877 = vsel %vm2874, %v2876, %v2872
    %v2878 = vmul.f32 1.0, %v2877
    %v2879 = vrcp.pop %v2863
    %v2880 = vmul.f32 %v2863, %v2879
    %v2881 = vsub.f32 1.0, %v2880
    %v2882 = vmul.f32 %v2879, %v2881
    %v2883 = vadd.f32 %v2879, %v2882
    %vm2884 = vweird.f32 %v2863
    %vm2885 = vweird.f32 %v2879
    %vm2886 = vmor %vm2884, %vm2885
    %v2887 = vsel %vm2886, %v2879, %v2883
    %v2888 = vand.u32 2147483647, %v2863
    %vm2889 = vcmp.eq.f32.partialorder %v2888, 8.507059e+37
    %v2890 = vand.u32 %v2863, 2147483648
    %v2891 = vor.u32 1.1754944e-38, %v2890
    %v2892 = vsel %vm2889, %v2891, %v2887
    %v2893 = vmul.f32 1.0, %v2892
    %v2894 = vtanh.pop %v2854
    %v2895 = vtanh.pop %v2855
    %v2898 = vrot.slane %v2690, 7
    %v2899 = vrot.slane %v2691, 7
    %v2902 = vmul.f32 %v2878, %v2898
    %v2903 = vmul.f32 %v2893, %v2899
    %2906 = vrot.lane.b32.xlu0 %v2894, 124
    %v2907 = vpop.permute.xlu0 %2906
    %2908 = vrot.lane.b32.xlu0 %v2895, 124
    %v2909 = vpop.permute.xlu0 %2908
    %v2912 = vmul.f32 %v2878, %v2907
    %v2913 = vmul.f32 %v2893, %v2909
    %2916 = vrot.lane.b32.xlu0 %v2912, 2
    %v2917 = vpop.permute.xlu0 %2916
    %2918 = vrot.lane.b32.xlu0 %v2913, 2
    %v2919 = vpop.permute.xlu0 %2918
    %v2922 = vadd.f32 %v2902, %v2917
    %v2923 = vadd.f32 %v2903, %v2919
    %v2924 = vtanh.pop %v2922
    %v2925 = vtanh.pop %v2923
    %2928 = vrot.lane.b32.xlu0 %v2924, 4
    %v2929 = vpop.permute.xlu0 %2928
    %2930 = vrot.lane.b32.xlu0 %v2925, 4
    %v2931 = vpop.permute.xlu0 %2930
    %v2934 = vmul.f32 %v2878, %v2929
    %v2935 = vmul.f32 %v2893, %v2931
    %v2936 = vmul.f32 %v2801, %v193
    %v2937 = vmul.f32 %v2806, %v193
    %v2938 = vmul.f32 %v2812, %v195
    %v2939 = vmul.f32 %v2816, %v195
    %v2940 = vadd.f32 %v2936, %v2938
    %v2941 = vadd.f32 %v2937, %v2939
    %v2944 = vrot.slane %v2940, 7
    %v2945 = vrot.slane %v2941, 7
    %v2948 = vadd.f32 %v190, %v2944
    %v2949 = vadd.f32 %v192, %v2945
    %v2950 = vxor.u32 %v2948, 2147483648
    %v2951 = vxor.u32 %v2949, 2147483648
    %v2952 = vmul.f32 %v2950, 1.442695
    %v2953 = vpow.pop %v2952
    %v2954 = vmul.f32 %v2951, 1.442695
    %v2955 = vpow.pop %v2954
    %v2956 = vadd.f32 %v2953, 1.0
    %v2957 = vadd.f32 %v2955, 1.0
    %v2958 = vrcp.pop %v2956
    %v2959 = vmul.f32 %v2956, %v2958
    %v2960 = vsub.f32 1.0, %v2959
    %v2961 = vmul.f32 %v2958, %v2960
    %v2962 = vadd.f32 %v2958, %v2961
    %vm2963 = vweird.f32 %v2956
    %vm2964 = vweird.f32 %v2958
    %vm2965 = vmor %vm2963, %vm2964
    %v2966 = vsel %vm2965, %v2958, %v2962
    %v2967 = vand.u32 2147483647, %v2956
    %vm2968 = vcmp.eq.f32.partialorder %v2967, 8.507059e+37
    %v2969 = vand.u32 %v2956, 2147483648
    %v2970 = vor.u32 1.1754944e-38, %v2969
    %v2971 = vsel %vm2968, %v2970, %v2966
    %v2972 = vmul.f32 1.0, %v2971
    %v2973 = vrcp.pop %v2957
    %v2974 = vmul.f32 %v2957, %v2973
    %v2975 = vsub.f32 1.0, %v2974
    %v2976 = vmul.f32 %v2973, %v2975
    %v2977 = vadd.f32 %v2973, %v2976
    %vm2978 = vweird.f32 %v2957
    %vm2979 = vweird.f32 %v2973
    %vm2980 = vmor %vm2978, %vm2979
    %v2981 = vsel %vm2980, %v2973, %v2977
    %v2982 = vand.u32 2147483647, %v2957
    %vm2983 = vcmp.eq.f32.partialorder %v2982, 8.507059e+37
    %v2984 = vand.u32 %v2957, 2147483648
    %v2985 = vor.u32 1.1754944e-38, %v2984
    %v2986 = vsel %vm2983, %v2985, %v2981
    %v2987 = vmul.f32 1.0, %v2986
    %v2988 = vtanh.pop %v2948
    %v2989 = vtanh.pop %v2949
    %v2992 = vrot.slane %v2784, 7
    %v2993 = vrot.slane %v2785, 7
    %v2996 = vmul.f32 %v2972, %v2992
    %v2997 = vmul.f32 %v2987, %v2993
    %3000 = vrot.lane.b32.xlu0 %v2988, 124
    %v3001 = vpop.permute.xlu0 %3000
    %3002 = vrot.lane.b32.xlu0 %v2989, 124
    %v3003 = vpop.permute.xlu0 %3002
    %v3006 = vmul.f32 %v2972, %v3001
    %v3007 = vmul.f32 %v2987, %v3003
    %3010 = vrot.lane.b32.xlu0 %v3006, 2
    %v3011 = vpop.permute.xlu0 %3010
    %3012 = vrot.lane.b32.xlu0 %v3007, 2
    %v3013 = vpop.permute.xlu0 %3012
    %v3016 = vadd.f32 %v2996, %v3011
    %v3017 = vadd.f32 %v2997, %v3013
    %v3018 = vtanh.pop %v3016
    %v3019 = vtanh.pop %v3017
    %3022 = vrot.lane.b32.xlu0 %v3018, 4
    %v3023 = vpop.permute.xlu0 %3022
    %3024 = vrot.lane.b32.xlu0 %v3019, 4
    %v3025 = vpop.permute.xlu0 %3024
    %v3028 = vmul.f32 %v2972, %v3023
    %v3029 = vmul.f32 %v2987, %v3025
    %3031 = vset.pattern.permute.xlu0 6
    %3032 = vperm.xlu0 %3031, %v3028
    %v3033 = vpop.permute.xlu0 %3032
    %3036 = vset.pattern.permute.xlu0 6
    %3037 = vperm.xlu0 %3036, %v3029
    %v3038 = vpop.permute.xlu0 %3037
    %v3040 = vmul.f32 %v3033, %v284
    %v3041 = vmul.f32 %v3038, %v284
    %3042 = vset.pattern.permute.xlu0 7
    %3043 = vperm.xlu0 %3042, %v3028
    %v3044 = vpop.permute.xlu0 %3043
    %3046 = vset.pattern.permute.xlu0 7
    %3047 = vperm.xlu0 %3046, %v3029
    %v3048 = vpop.permute.xlu0 %3047
    %v3050 = vmul.f32 %v3044, %v295
    %v3051 = vmul.f32 %v3048, %v295
    %v3052 = vadd.f32 %v3040, %v3050
    %v3053 = vadd.f32 %v3041, %v3051
    %3055 = vset.pattern.permute.xlu0 6
    %3056 = vperm.xlu0 %3055, %v2934
    %v3057 = vpop.permute.xlu0 %3056
    %3060 = vset.pattern.permute.xlu0 6
    %3061 = vperm.xlu0 %3060, %v2935
    %v3062 = vpop.permute.xlu0 %3061
    %v3064 = vmul.f32 %v3057, %v300
    %v3065 = vmul.f32 %v3062, %v300
    %3066 = vset.pattern.permute.xlu0 7
    %3067 = vperm.xlu0 %3066, %v2934
    %v3068 = vpop.permute.xlu0 %3067
    %3070 = vset.pattern.permute.xlu0 7
    %3071 = vperm.xlu0 %3070, %v2935
    %v3072 = vpop.permute.xlu0 %3071
    %v3074 = vmul.f32 %v3068, %v302
    %v3075 = vmul.f32 %v3072, %v302
    %v3076 = vadd.f32 %v3064, %v3074
    %v3077 = vadd.f32 %v3065, %v3075
    %v3080 = vrot.slane %v3076, 7
    %v3081 = vrot.slane %v3077, 7
    %v3084 = vadd.f32 %v3052, %v3080
    %v3085 = vadd.f32 %v3053, %v3081
    %v3086 = vadd.f32 %v3084, %v307
    %v3087 = vadd.f32 %v3085, %v307
    %v3088 = vxor.u32 %v3086, 2147483648
    %v3089 = vxor.u32 %v3087, 2147483648
    %v3090 = vmul.f32 %v3088, 1.442695
    %v3091 = vpow.pop %v3090
    %v3092 = vmul.f32 %v3089, 1.442695
    %v3093 = vpow.pop %v3092
    %v3094 = vadd.f32 %v3091, 1.0
    %v3095 = vadd.f32 %v3093, 1.0
    %v3096 = vrcp.pop %v3094
    %v3097 = vmul.f32 %v3094, %v3096
    %v3098 = vsub.f32 1.0, %v3097
    %v3099 = vmul.f32 %v3096, %v3098
    %v3100 = vadd.f32 %v3096, %v3099
    %vm3101 = vweird.f32 %v3094
    %vm3102 = vweird.f32 %v3096
    %vm3103 = vmor %vm3101, %vm3102
    %v3104 = vsel %vm3103, %v3096, %v3100
    %v3105 = vand.u32 2147483647, %v3094
    %vm3106 = vcmp.eq.f32.partialorder %v3105, 8.507059e+37
    %v3107 = vand.u32 %v3094, 2147483648
    %v3108 = vor.u32 1.1754944e-38, %v3107
    %v3109 = vsel %vm3106, %v3108, %v3104
    %v3110 = vmul.f32 1.0, %v3109
    %v3111 = vrcp.pop %v3095
    %v3112 = vmul.f32 %v3095, %v3111
    %v3113 = vsub.f32 1.0, %v3112
    %v3114 = vmul.f32 %v3111, %v3113
    %v3115 = vadd.f32 %v3111, %v3114
    %vm3116 = vweird.f32 %v3095
    %vm3117 = vweird.f32 %v3111
    %vm3118 = vmor %vm3116, %vm3117
    %v3119 = vsel %vm3118, %v3111, %v3115
    %v3120 = vand.u32 2147483647, %v3095
    %vm3121 = vcmp.eq.f32.partialorder %v3120, 8.507059e+37
    %v3122 = vand.u32 %v3095, 2147483648
    %v3123 = vor.u32 1.1754944e-38, %v3122
    %v3124 = vsel %vm3121, %v3123, %v3119
    %v3125 = vmul.f32 1.0, %v3124
    %v3126 = vtanh.pop %v3086
    %v3127 = vtanh.pop %v3087
    %v3130 = vrot.slane %v2922, 7
    %v3131 = vrot.slane %v2923, 7
    %v3134 = vmul.f32 %v3110, %v3130
    %v3135 = vmul.f32 %v3125, %v3131
    %3138 = vrot.lane.b32.xlu0 %v3126, 124
    %v3139 = vpop.permute.xlu0 %3138
    %3140 = vrot.lane.b32.xlu0 %v3127, 124
    %v3141 = vpop.permute.xlu0 %3140
    %v3144 = vmul.f32 %v3110, %v3139
    %v3145 = vmul.f32 %v3125, %v3141
    %3148 = vrot.lane.b32.xlu0 %v3144, 2
    %v3149 = vpop.permute.xlu0 %3148
    %3150 = vrot.lane.b32.xlu0 %v3145, 2
    %v3151 = vpop.permute.xlu0 %3150
    %v3154 = vadd.f32 %v3134, %v3149
    %v3155 = vadd.f32 %v3135, %v3151
    %v3156 = vtanh.pop %v3154
    %v3157 = vtanh.pop %v3155
    %3160 = vrot.lane.b32.xlu0 %v3156, 4
    %v3161 = vpop.permute.xlu0 %3160
    %3162 = vrot.lane.b32.xlu0 %v3157, 4
    %v3163 = vpop.permute.xlu0 %3162
    %v3166 = vmul.f32 %v3110, %v3161
    %v3167 = vmul.f32 %v3125, %v3163
    %v3168 = vmul.f32 %v3033, %v193
    %v3169 = vmul.f32 %v3038, %v193
    %v3170 = vmul.f32 %v3044, %v195
    %v3171 = vmul.f32 %v3048, %v195
    %v3172 = vadd.f32 %v3168, %v3170
    %v3173 = vadd.f32 %v3169, %v3171
    %v3176 = vrot.slane %v3172, 7
    %v3177 = vrot.slane %v3173, 7
    %v3180 = vadd.f32 %v190, %v3176
    %v3181 = vadd.f32 %v192, %v3177
    %v3182 = vxor.u32 %v3180, 2147483648
    %v3183 = vxor.u32 %v3181, 2147483648
    %v3184 = vmul.f32 %v3182, 1.442695
    %v3185 = vpow.pop %v3184
    %v3186 = vmul.f32 %v3183, 1.442695
    %v3187 = vpow.pop %v3186
    %v3188 = vadd.f32 %v3185, 1.0
    %v3189 = vadd.f32 %v3187, 1.0
    %v3190 = vrcp.pop %v3188
    %v3191 = vmul.f32 %v3188, %v3190
    %v3192 = vsub.f32 1.0, %v3191
    %v3193 = vmul.f32 %v3190, %v3192
    %v3194 = vadd.f32 %v3190, %v3193
    %vm3195 = vweird.f32 %v3188
    %vm3196 = vweird.f32 %v3190
    %vm3197 = vmor %vm3195, %vm3196
    %v3198 = vsel %vm3197, %v3190, %v3194
    %v3199 = vand.u32 2147483647, %v3188
    %vm3200 = vcmp.eq.f32.partialorder %v3199, 8.507059e+37
    %v3201 = vand.u32 %v3188, 2147483648
    %v3202 = vor.u32 1.1754944e-38, %v3201
    %v3203 = vsel %vm3200, %v3202, %v3198
    %v3204 = vmul.f32 1.0, %v3203
    %v3205 = vrcp.pop %v3189
    %v3206 = vmul.f32 %v3189, %v3205
    %v3207 = vsub.f32 1.0, %v3206
    %v3208 = vmul.f32 %v3205, %v3207
    %v3209 = vadd.f32 %v3205, %v3208
    %vm3210 = vweird.f32 %v3189
    %vm3211 = vweird.f32 %v3205
    %vm3212 = vmor %vm3210, %vm3211
    %v3213 = vsel %vm3212, %v3205, %v3209
    %v3214 = vand.u32 2147483647, %v3189
    %vm3215 = vcmp.eq.f32.partialorder %v3214, 8.507059e+37
    %v3216 = vand.u32 %v3189, 2147483648
    %v3217 = vor.u32 1.1754944e-38, %v3216
    %v3218 = vsel %vm3215, %v3217, %v3213
    %v3219 = vmul.f32 1.0, %v3218
    %v3220 = vtanh.pop %v3180
    %v3221 = vtanh.pop %v3181
    %v3224 = vrot.slane %v3016, 7
    %v3225 = vrot.slane %v3017, 7
    %v3228 = vmul.f32 %v3204, %v3224
    %v3229 = vmul.f32 %v3219, %v3225
    %3232 = vrot.lane.b32.xlu0 %v3220, 124
    %v3233 = vpop.permute.xlu0 %3232
    %3234 = vrot.lane.b32.xlu0 %v3221, 124
    %v3235 = vpop.permute.xlu0 %3234
    %v3238 = vmul.f32 %v3204, %v3233
    %v3239 = vmul.f32 %v3219, %v3235
    %3242 = vrot.lane.b32.xlu0 %v3238, 2
    %v3243 = vpop.permute.xlu0 %3242
    %3244 = vrot.lane.b32.xlu0 %v3239, 2
    %v3245 = vpop.permute.xlu0 %3244
    %v3248 = vadd.f32 %v3228, %v3243
    %v3249 = vadd.f32 %v3229, %v3245
    %v3250 = vtanh.pop %v3248
    %v3251 = vtanh.pop %v3249
    %3254 = vrot.lane.b32.xlu0 %v3250, 4
    %v3255 = vpop.permute.xlu0 %3254
    %3256 = vrot.lane.b32.xlu0 %v3251, 4
    %v3257 = vpop.permute.xlu0 %3256
    %v3260 = vmul.f32 %v3204, %v3255
    %v3261 = vmul.f32 %v3219, %v3257
    %3263 = vset.pattern.permute.xlu0 6
    %3264 = vperm.xlu0 %3263, %v3260
    %v3265 = vpop.permute.xlu0 %3264
    %3268 = vset.pattern.permute.xlu0 6
    %3269 = vperm.xlu0 %3268, %v3261
    %v3270 = vpop.permute.xlu0 %3269
    %v3272 = vmul.f32 %v3265, %v284
    %v3273 = vmul.f32 %v3270, %v284
    %3274 = vset.pattern.permute.xlu0 7
    %3275 = vperm.xlu0 %3274, %v3260
    %v3276 = vpop.permute.xlu0 %3275
    %3278 = vset.pattern.permute.xlu0 7
    %3279 = vperm.xlu0 %3278, %v3261
    %v3280 = vpop.permute.xlu0 %3279
    %v3282 = vmul.f32 %v3276, %v295
    %v3283 = vmul.f32 %v3280, %v295
    %v3284 = vadd.f32 %v3272, %v3282
    %v3285 = vadd.f32 %v3273, %v3283
    %3287 = vset.pattern.permute.xlu0 6
    %3288 = vperm.xlu0 %3287, %v3166
    %v3289 = vpop.permute.xlu0 %3288
    %3292 = vset.pattern.permute.xlu0 6
    %3293 = vperm.xlu0 %3292, %v3167
    %v3294 = vpop.permute.xlu0 %3293
    %v3296 = vmul.f32 %v3289, %v300
    %v3297 = vmul.f32 %v3294, %v300
    %3298 = vset.pattern.permute.xlu0 7
    %3299 = vperm.xlu0 %3298, %v3166
    %v3300 = vpop.permute.xlu0 %3299
    %3302 = vset.pattern.permute.xlu0 7
    %3303 = vperm.xlu0 %3302, %v3167
    %v3304 = vpop.permute.xlu0 %3303
    %v3306 = vmul.f32 %v3300, %v302
    %v3307 = vmul.f32 %v3304, %v302
    %v3308 = vadd.f32 %v3296, %v3306
    %v3309 = vadd.f32 %v3297, %v3307
    %v3312 = vrot.slane %v3308, 7
    %v3313 = vrot.slane %v3309, 7
    %v3316 = vadd.f32 %v3284, %v3312
    %v3317 = vadd.f32 %v3285, %v3313
    %v3318 = vadd.f32 %v3316, %v307
    %v3319 = vadd.f32 %v3317, %v307
    %v3320 = vxor.u32 %v3318, 2147483648
    %v3321 = vxor.u32 %v3319, 2147483648
    %v3322 = vmul.f32 %v3320, 1.442695
    %v3323 = vpow.pop %v3322
    %v3324 = vmul.f32 %v3321, 1.442695
    %v3325 = vpow.pop %v3324
    %v3326 = vadd.f32 %v3323, 1.0
    %v3327 = vadd.f32 %v3325, 1.0
    %v3328 = vrcp.pop %v3326
    %v3329 = vmul.f32 %v3326, %v3328
    %v3330 = vsub.f32 1.0, %v3329
    %v3331 = vmul.f32 %v3328, %v3330
    %v3332 = vadd.f32 %v3328, %v3331
    %vm3333 = vweird.f32 %v3326
    %vm3334 = vweird.f32 %v3328
    %vm3335 = vmor %vm3333, %vm3334
    %v3336 = vsel %vm3335, %v3328, %v3332
    %v3337 = vand.u32 2147483647, %v3326
    %vm3338 = vcmp.eq.f32.partialorder %v3337, 8.507059e+37
    %v3339 = vand.u32 %v3326, 2147483648
    %v3340 = vor.u32 1.1754944e-38, %v3339
    %v3341 = vsel %vm3338, %v3340, %v3336
    %v3342 = vmul.f32 1.0, %v3341
    %v3343 = vrcp.pop %v3327
    %v3344 = vmul.f32 %v3327, %v3343
    %v3345 = vsub.f32 1.0, %v3344
    %v3346 = vmul.f32 %v3343, %v3345
    %v3347 = vadd.f32 %v3343, %v3346
    %vm3348 = vweird.f32 %v3327
    %vm3349 = vweird.f32 %v3343
    %vm3350 = vmor %vm3348, %vm3349
    %v3351 = vsel %vm3350, %v3343, %v3347
    %v3352 = vand.u32 2147483647, %v3327
    %vm3353 = vcmp.eq.f32.partialorder %v3352, 8.507059e+37
    %v3354 = vand.u32 %v3327, 2147483648
    %v3355 = vor.u32 1.1754944e-38, %v3354
    %v3356 = vsel %vm3353, %v3355, %v3351
    %v3357 = vmul.f32 1.0, %v3356
    %v3358 = vtanh.pop %v3318
    %v3359 = vtanh.pop %v3319
    %v3362 = vrot.slane %v3154, 7
    %v3363 = vrot.slane %v3155, 7
    %v3366 = vmul.f32 %v3342, %v3362
    %v3367 = vmul.f32 %v3357, %v3363
    %3370 = vrot.lane.b32.xlu0 %v3358, 124
    %v3371 = vpop.permute.xlu0 %3370
    %3372 = vrot.lane.b32.xlu0 %v3359, 124
    %v3373 = vpop.permute.xlu0 %3372
    %v3376 = vmul.f32 %v3342, %v3371
    %v3377 = vmul.f32 %v3357, %v3373
    %3380 = vrot.lane.b32.xlu0 %v3376, 2
    %v3381 = vpop.permute.xlu0 %3380
    %3382 = vrot.lane.b32.xlu0 %v3377, 2
    %v3383 = vpop.permute.xlu0 %3382
    %v3386 = vadd.f32 %v3366, %v3381
    %v3387 = vadd.f32 %v3367, %v3383
    %v3388 = vtanh.pop %v3386
    %v3389 = vtanh.pop %v3387
    %3392 = vrot.lane.b32.xlu0 %v3388, 4
    %v3393 = vpop.permute.xlu0 %3392
    %3394 = vrot.lane.b32.xlu0 %v3389, 4
    %v3395 = vpop.permute.xlu0 %3394
    %v3398 = vmul.f32 %v3342, %v3393
    %v3399 = vmul.f32 %v3357, %v3395
    %v3400 = vmul.f32 %v3265, %v193
    %v3401 = vmul.f32 %v3270, %v193
    %v3402 = vmul.f32 %v3276, %v195
    %v3403 = vmul.f32 %v3280, %v195
    %v3404 = vadd.f32 %v3400, %v3402
    %v3405 = vadd.f32 %v3401, %v3403
    %v3408 = vrot.slane %v3404, 7
    %v3409 = vrot.slane %v3405, 7
    %v3412 = vadd.f32 %v190, %v3408
    %v3413 = vadd.f32 %v192, %v3409
    %v3414 = vxor.u32 %v3412, 2147483648
    %v3415 = vxor.u32 %v3413, 2147483648
    %v3416 = vmul.f32 %v3414, 1.442695
    %v3417 = vpow.pop %v3416
    %v3418 = vmul.f32 %v3415, 1.442695
    %v3419 = vpow.pop %v3418
    %v3420 = vadd.f32 %v3417, 1.0
    %v3421 = vadd.f32 %v3419, 1.0
    %v3422 = vrcp.pop %v3420
    %v3423 = vmul.f32 %v3420, %v3422
    %v3424 = vsub.f32 1.0, %v3423
    %v3425 = vmul.f32 %v3422, %v3424
    %v3426 = vadd.f32 %v3422, %v3425
    %vm3427 = vweird.f32 %v3420
    %vm3428 = vweird.f32 %v3422
    %vm3429 = vmor %vm3427, %vm3428
    %v3430 = vsel %vm3429, %v3422, %v3426
    %v3431 = vand.u32 2147483647, %v3420
    %vm3432 = vcmp.eq.f32.partialorder %v3431, 8.507059e+37
    %v3433 = vand.u32 %v3420, 2147483648
    %v3434 = vor.u32 1.1754944e-38, %v3433
    %v3435 = vsel %vm3432, %v3434, %v3430
    %v3436 = vmul.f32 1.0, %v3435
    %v3437 = vrcp.pop %v3421
    %v3438 = vmul.f32 %v3421, %v3437
    %v3439 = vsub.f32 1.0, %v3438
    %v3440 = vmul.f32 %v3437, %v3439
    %v3441 = vadd.f32 %v3437, %v3440
    %vm3442 = vweird.f32 %v3421
    %vm3443 = vweird.f32 %v3437
    %vm3444 = vmor %vm3442, %vm3443
    %v3445 = vsel %vm3444, %v3437, %v3441
    %v3446 = vand.u32 2147483647, %v3421
    %vm3447 = vcmp.eq.f32.partialorder %v3446, 8.507059e+37
    %v3448 = vand.u32 %v3421, 2147483648
    %v3449 = vor.u32 1.1754944e-38, %v3448
    %v3450 = vsel %vm3447, %v3449, %v3445
    %v3451 = vmul.f32 1.0, %v3450
    %v3452 = vtanh.pop %v3412
    %v3453 = vtanh.pop %v3413
    %v3456 = vrot.slane %v3248, 7
    %v3457 = vrot.slane %v3249, 7
    %v3460 = vmul.f32 %v3436, %v3456
    %v3461 = vmul.f32 %v3451, %v3457
    %3464 = vrot.lane.b32.xlu0 %v3452, 124
    %v3465 = vpop.permute.xlu0 %3464
    %3466 = vrot.lane.b32.xlu0 %v3453, 124
    %v3467 = vpop.permute.xlu0 %3466
    %v3470 = vmul.f32 %v3436, %v3465
    %v3471 = vmul.f32 %v3451, %v3467
    %3474 = vrot.lane.b32.xlu0 %v3470, 2
    %v3475 = vpop.permute.xlu0 %3474
    %3476 = vrot.lane.b32.xlu0 %v3471, 2
    %v3477 = vpop.permute.xlu0 %3476
    %v3480 = vadd.f32 %v3460, %v3475
    %v3481 = vadd.f32 %v3461, %v3477
    %v3482 = vtanh.pop %v3480
    %v3483 = vtanh.pop %v3481
    %3486 = vrot.lane.b32.xlu0 %v3482, 4
    %v3487 = vpop.permute.xlu0 %3486
    %3488 = vrot.lane.b32.xlu0 %v3483, 4
    %v3489 = vpop.permute.xlu0 %3488
    %v3492 = vmul.f32 %v3436, %v3487
    %v3493 = vmul.f32 %v3451, %v3489
    %3495 = vset.pattern.permute.xlu0 6
    %3496 = vperm.xlu0 %3495, %v3492
    %v3497 = vpop.permute.xlu0 %3496
    %3500 = vset.pattern.permute.xlu0 6
    %3501 = vperm.xlu0 %3500, %v3493
    %v3502 = vpop.permute.xlu0 %3501
    %v3504 = vmul.f32 %v3497, %v284
    %v3505 = vmul.f32 %v3502, %v284
    %3506 = vset.pattern.permute.xlu0 7
    %3507 = vperm.xlu0 %3506, %v3492
    %v3508 = vpop.permute.xlu0 %3507
    %3510 = vset.pattern.permute.xlu0 7
    %3511 = vperm.xlu0 %3510, %v3493
    %v3512 = vpop.permute.xlu0 %3511
    %v3514 = vmul.f32 %v3508, %v295
    %v3515 = vmul.f32 %v3512, %v295
    %v3516 = vadd.f32 %v3504, %v3514
    %v3517 = vadd.f32 %v3505, %v3515
    %3519 = vset.pattern.permute.xlu0 6
    %3520 = vperm.xlu0 %3519, %v3398
    %v3521 = vpop.permute.xlu0 %3520
    %3524 = vset.pattern.permute.xlu0 6
    %3525 = vperm.xlu0 %3524, %v3399
    %v3526 = vpop.permute.xlu0 %3525
    %v3528 = vmul.f32 %v3521, %v300
    %v3529 = vmul.f32 %v3526, %v300
    %3530 = vset.pattern.permute.xlu0 7
    %3531 = vperm.xlu0 %3530, %v3398
    %v3532 = vpop.permute.xlu0 %3531
    %3534 = vset.pattern.permute.xlu0 7
    %3535 = vperm.xlu0 %3534, %v3399
    %v3536 = vpop.permute.xlu0 %3535
    %v3538 = vmul.f32 %v3532, %v302
    %v3539 = vmul.f32 %v3536, %v302
    %v3540 = vadd.f32 %v3528, %v3538
    %v3541 = vadd.f32 %v3529, %v3539
    %v3544 = vrot.slane %v3540, 7
    %v3545 = vrot.slane %v3541, 7
    %v3548 = vadd.f32 %v3516, %v3544
    %v3549 = vadd.f32 %v3517, %v3545
    %v3550 = vadd.f32 %v3548, %v307
    %v3551 = vadd.f32 %v3549, %v307
    %v3552 = vxor.u32 %v3550, 2147483648
    %v3553 = vxor.u32 %v3551, 2147483648
    %v3554 = vmul.f32 %v3552, 1.442695
    %v3555 = vpow.pop %v3554
    %v3556 = vmul.f32 %v3553, 1.442695
    %v3557 = vpow.pop %v3556
    %v3558 = vadd.f32 %v3555, 1.0
    %v3559 = vadd.f32 %v3557, 1.0
    %v3560 = vrcp.pop %v3558
    %v3561 = vmul.f32 %v3558, %v3560
    %v3562 = vsub.f32 1.0, %v3561
    %v3563 = vmul.f32 %v3560, %v3562
    %v3564 = vadd.f32 %v3560, %v3563
    %vm3565 = vweird.f32 %v3558
    %vm3566 = vweird.f32 %v3560
    %vm3567 = vmor %vm3565, %vm3566
    %v3568 = vsel %vm3567, %v3560, %v3564
    %v3569 = vand.u32 2147483647, %v3558
    %vm3570 = vcmp.eq.f32.partialorder %v3569, 8.507059e+37
    %v3571 = vand.u32 %v3558, 2147483648
    %v3572 = vor.u32 1.1754944e-38, %v3571
    %v3573 = vsel %vm3570, %v3572, %v3568
    %v3574 = vmul.f32 1.0, %v3573
    %v3575 = vrcp.pop %v3559
    %v3576 = vmul.f32 %v3559, %v3575
    %v3577 = vsub.f32 1.0, %v3576
    %v3578 = vmul.f32 %v3575, %v3577
    %v3579 = vadd.f32 %v3575, %v3578
    %vm3580 = vweird.f32 %v3559
    %vm3581 = vweird.f32 %v3575
    %vm3582 = vmor %vm3580, %vm3581
    %v3583 = vsel %vm3582, %v3575, %v3579
    %v3584 = vand.u32 2147483647, %v3559
    %vm3585 = vcmp.eq.f32.partialorder %v3584, 8.507059e+37
    %v3586 = vand.u32 %v3559, 2147483648
    %v3587 = vor.u32 1.1754944e-38, %v3586
    %v3588 = vsel %vm3585, %v3587, %v3583
    %v3589 = vmul.f32 1.0, %v3588
    %v3590 = vtanh.pop %v3550
    %v3591 = vtanh.pop %v3551
    %v3594 = vrot.slane %v3386, 7
    %v3595 = vrot.slane %v3387, 7
    %v3598 = vmul.f32 %v3574, %v3594
    %v3599 = vmul.f32 %v3589, %v3595
    %3602 = vrot.lane.b32.xlu0 %v3590, 124
    %v3603 = vpop.permute.xlu0 %3602
    %3604 = vrot.lane.b32.xlu0 %v3591, 124
    %v3605 = vpop.permute.xlu0 %3604
    %v3608 = vmul.f32 %v3574, %v3603
    %v3609 = vmul.f32 %v3589, %v3605
    %3612 = vrot.lane.b32.xlu0 %v3608, 2
    %v3613 = vpop.permute.xlu0 %3612
    %3614 = vrot.lane.b32.xlu0 %v3609, 2
    %v3615 = vpop.permute.xlu0 %3614
    %v3618 = vadd.f32 %v3598, %v3613
    %v3619 = vadd.f32 %v3599, %v3615
    %v3620 = vtanh.pop %v3618
    %v3621 = vtanh.pop %v3619
    %3624 = vrot.lane.b32.xlu0 %v3620, 4
    %v3625 = vpop.permute.xlu0 %3624
    %3626 = vrot.lane.b32.xlu0 %v3621, 4
    %v3627 = vpop.permute.xlu0 %3626
    %v3630 = vmul.f32 %v3574, %v3625
    %v3631 = vmul.f32 %v3589, %v3627
    %v3632 = vmul.f32 %v3497, %v193
    %v3633 = vmul.f32 %v3502, %v193
    %v3634 = vmul.f32 %v3508, %v195
    %v3635 = vmul.f32 %v3512, %v195
    %v3636 = vadd.f32 %v3632, %v3634
    %v3637 = vadd.f32 %v3633, %v3635
    %v3640 = vrot.slane %v3636, 7
    %v3641 = vrot.slane %v3637, 7
    %v3644 = vadd.f32 %v190, %v3640
    %v3645 = vadd.f32 %v192, %v3641
    %v3646 = vxor.u32 %v3644, 2147483648
    %v3647 = vxor.u32 %v3645, 2147483648
    %v3648 = vmul.f32 %v3646, 1.442695
    %v3649 = vpow.pop %v3648
    %v3650 = vmul.f32 %v3647, 1.442695
    %v3651 = vpow.pop %v3650
    %v3652 = vadd.f32 %v3649, 1.0
    %v3653 = vadd.f32 %v3651, 1.0
    %v3654 = vrcp.pop %v3652
    %v3655 = vmul.f32 %v3652, %v3654
    %v3656 = vsub.f32 1.0, %v3655
    %v3657 = vmul.f32 %v3654, %v3656
    %v3658 = vadd.f32 %v3654, %v3657
    %vm3659 = vweird.f32 %v3652
    %vm3660 = vweird.f32 %v3654
    %vm3661 = vmor %vm3659, %vm3660
    %v3662 = vsel %vm3661, %v3654, %v3658
    %v3663 = vand.u32 2147483647, %v3652
    %vm3664 = vcmp.eq.f32.partialorder %v3663, 8.507059e+37
    %v3665 = vand.u32 %v3652, 2147483648
    %v3666 = vor.u32 1.1754944e-38, %v3665
    %v3667 = vsel %vm3664, %v3666, %v3662
    %v3668 = vmul.f32 1.0, %v3667
    %v3669 = vrcp.pop %v3653
    %v3670 = vmul.f32 %v3653, %v3669
    %v3671 = vsub.f32 1.0, %v3670
    %v3672 = vmul.f32 %v3669, %v3671
    %v3673 = vadd.f32 %v3669, %v3672
    %vm3674 = vweird.f32 %v3653
    %vm3675 = vweird.f32 %v3669
    %vm3676 = vmor %vm3674, %vm3675
    %v3677 = vsel %vm3676, %v3669, %v3673
    %v3678 = vand.u32 2147483647, %v3653
    %vm3679 = vcmp.eq.f32.partialorder %v3678, 8.507059e+37
    %v3680 = vand.u32 %v3653, 2147483648
    %v3681 = vor.u32 1.1754944e-38, %v3680
    %v3682 = vsel %vm3679, %v3681, %v3677
    %v3683 = vmul.f32 1.0, %v3682
    %v3684 = vtanh.pop %v3644
    %v3685 = vtanh.pop %v3645
    %v3688 = vrot.slane %v3480, 7
    %v3689 = vrot.slane %v3481, 7
    %v3692 = vmul.f32 %v3668, %v3688
    %v3693 = vmul.f32 %v3683, %v3689
    %3696 = vrot.lane.b32.xlu0 %v3684, 124
    %v3697 = vpop.permute.xlu0 %3696
    %3698 = vrot.lane.b32.xlu0 %v3685, 124
    %v3699 = vpop.permute.xlu0 %3698
    %v3702 = vmul.f32 %v3668, %v3697
    %v3703 = vmul.f32 %v3683, %v3699
    %3706 = vrot.lane.b32.xlu0 %v3702, 2
    %v3707 = vpop.permute.xlu0 %3706
    %3708 = vrot.lane.b32.xlu0 %v3703, 2
    %v3709 = vpop.permute.xlu0 %3708
    %v3712 = vadd.f32 %v3692, %v3707
    %v3713 = vadd.f32 %v3693, %v3709
    %v3714 = vtanh.pop %v3712
    %v3715 = vtanh.pop %v3713
    %3718 = vrot.lane.b32.xlu0 %v3714, 4
    %v3719 = vpop.permute.xlu0 %3718
    %3720 = vrot.lane.b32.xlu0 %v3715, 4
    %v3721 = vpop.permute.xlu0 %3720
    %v3724 = vmul.f32 %v3668, %v3719
    %v3725 = vmul.f32 %v3683, %v3721
    %3727 = vset.pattern.permute.xlu0 6
    %3728 = vperm.xlu0 %3727, %v3724
    %v3729 = vpop.permute.xlu0 %3728
    %3732 = vset.pattern.permute.xlu0 6
    %3733 = vperm.xlu0 %3732, %v3725
    %v3734 = vpop.permute.xlu0 %3733
    %v3736 = vmul.f32 %v3729, %v284
    %v3737 = vmul.f32 %v3734, %v284
    %3738 = vset.pattern.permute.xlu0 7
    %3739 = vperm.xlu0 %3738, %v3724
    %v3740 = vpop.permute.xlu0 %3739
    %3742 = vset.pattern.permute.xlu0 7
    %3743 = vperm.xlu0 %3742, %v3725
    %v3744 = vpop.permute.xlu0 %3743
    %v3746 = vmul.f32 %v3740, %v295
    %v3747 = vmul.f32 %v3744, %v295
    %v3748 = vadd.f32 %v3736, %v3746
    %v3749 = vadd.f32 %v3737, %v3747
    %3751 = vset.pattern.permute.xlu0 6
    %3752 = vperm.xlu0 %3751, %v3630
    %v3753 = vpop.permute.xlu0 %3752
    %3756 = vset.pattern.permute.xlu0 6
    %3757 = vperm.xlu0 %3756, %v3631
    %v3758 = vpop.permute.xlu0 %3757
    %v3760 = vmul.f32 %v3753, %v300
    %v3761 = vmul.f32 %v3758, %v300
    %3762 = vset.pattern.permute.xlu0 7
    %3763 = vperm.xlu0 %3762, %v3630
    %v3764 = vpop.permute.xlu0 %3763
    %3766 = vset.pattern.permute.xlu0 7
    %3767 = vperm.xlu0 %3766, %v3631
    %v3768 = vpop.permute.xlu0 %3767
    %v3770 = vmul.f32 %v3764, %v302
    %v3771 = vmul.f32 %v3768, %v302
    %v3772 = vadd.f32 %v3760, %v3770
    %v3773 = vadd.f32 %v3761, %v3771
    %v3776 = vrot.slane %v3772, 7
    %v3777 = vrot.slane %v3773, 7
    %v3780 = vadd.f32 %v3748, %v3776
    %v3781 = vadd.f32 %v3749, %v3777
    %v3782 = vadd.f32 %v3780, %v307
    %v3783 = vadd.f32 %v3781, %v307
    %v3784 = vxor.u32 %v3782, 2147483648
    %v3785 = vxor.u32 %v3783, 2147483648
    %v3786 = vmul.f32 %v3784, 1.442695
    %v3787 = vpow.pop %v3786
    %v3788 = vmul.f32 %v3785, 1.442695
    %v3789 = vpow.pop %v3788
    %v3790 = vadd.f32 %v3787, 1.0
    %v3791 = vadd.f32 %v3789, 1.0
    %v3792 = vrcp.pop %v3790
    %v3793 = vmul.f32 %v3790, %v3792
    %v3794 = vsub.f32 1.0, %v3793
    %v3795 = vmul.f32 %v3792, %v3794
    %v3796 = vadd.f32 %v3792, %v3795
    %vm3797 = vweird.f32 %v3790
    %vm3798 = vweird.f32 %v3792
    %vm3799 = vmor %vm3797, %vm3798
    %v3800 = vsel %vm3799, %v3792, %v3796
    %v3801 = vand.u32 2147483647, %v3790
    %vm3802 = vcmp.eq.f32.partialorder %v3801, 8.507059e+37
    %v3803 = vand.u32 %v3790, 2147483648
    %v3804 = vor.u32 1.1754944e-38, %v3803
    %v3805 = vsel %vm3802, %v3804, %v3800
    %v3806 = vmul.f32 1.0, %v3805
    %v3807 = vrcp.pop %v3791
    %v3808 = vmul.f32 %v3791, %v3807
    %v3809 = vsub.f32 1.0, %v3808
    %v3810 = vmul.f32 %v3807, %v3809
    %v3811 = vadd.f32 %v3807, %v3810
    %vm3812 = vweird.f32 %v3791
    %vm3813 = vweird.f32 %v3807
    %vm3814 = vmor %vm3812, %vm3813
    %v3815 = vsel %vm3814, %v3807, %v3811
    %v3816 = vand.u32 2147483647, %v3791
    %vm3817 = vcmp.eq.f32.partialorder %v3816, 8.507059e+37
    %v3818 = vand.u32 %v3791, 2147483648
    %v3819 = vor.u32 1.1754944e-38, %v3818
    %v3820 = vsel %vm3817, %v3819, %v3815
    %v3821 = vmul.f32 1.0, %v3820
    %v3822 = vtanh.pop %v3782
    %v3823 = vtanh.pop %v3783
    %v3826 = vrot.slane %v3618, 7
    %v3827 = vrot.slane %v3619, 7
    %v3830 = vmul.f32 %v3806, %v3826
    %v3831 = vmul.f32 %v3821, %v3827
    %3834 = vrot.lane.b32.xlu0 %v3822, 124
    %v3835 = vpop.permute.xlu0 %3834
    %3836 = vrot.lane.b32.xlu0 %v3823, 124
    %v3837 = vpop.permute.xlu0 %3836
    %v3840 = vmul.f32 %v3806, %v3835
    %v3841 = vmul.f32 %v3821, %v3837
    %3844 = vrot.lane.b32.xlu0 %v3840, 2
    %v3845 = vpop.permute.xlu0 %3844
    %3846 = vrot.lane.b32.xlu0 %v3841, 2
    %v3847 = vpop.permute.xlu0 %3846
    %v3850 = vadd.f32 %v3830, %v3845
    %v3851 = vadd.f32 %v3831, %v3847
    %v3852 = vtanh.pop %v3850
    %v3853 = vtanh.pop %v3851
    %3856 = vrot.lane.b32.xlu0 %v3852, 4
    %v3857 = vpop.permute.xlu0 %3856
    %3858 = vrot.lane.b32.xlu0 %v3853, 4
    %v3859 = vpop.permute.xlu0 %3858
    %v3862 = vmul.f32 %v3806, %v3857
    %v3863 = vmul.f32 %v3821, %v3859
    %v3864 = vrot.slane %v3724, 7
    %v3865 = vrot.slane %v3725, 6
    %vm3866 = vcmask 1041409
    %v3867 = vsel %vm3866, %v3865, %v3864
    %v3871 = vrot.slane %v3862, 5
    %v3872 = vrot.slane %v3863, 4
    %vm3873 = vcmask 1043459
    %v3874 = vsel %vm3873, %v3872, %v3871
    %vm3876 = vcmask 1041408
    %v3877 = vsel %vm3876, %v3867, %v3874
    %v3878 = vmax.f32 %v3877, 0.0
    %3880 = vset.pattern.permute.xlu0 6
    %3881 = vperm.xlu0 %3880, %v3878
    %v3882 = vpop.permute.xlu0 %3881
    %v3884 = vperm.slane %v23, 0
    %v3885 = vmul.f32 %v3882, %v3884
    %3886 = vset.pattern.permute.xlu0 7
    %3887 = vperm.xlu0 %3886, %v3878
    %v3888 = vpop.permute.xlu0 %3887
    %v3890 = vperm.slane %v23, 1
    %v3891 = vmul.f32 %v3888, %v3890
    %v3892 = vadd.f32 %v3885, %v3891
    %v3893 = vperm.slane %v24, 0
    %v3894 = vadd.f32 %v3892, %v3893
    %v3895 = vmax.f32 %v3894, 0.0
    %v3897 = vrot.slane %v3895, 6
    %v3899 = vsel %vm3876, %v83, %v3897
    %v3900 = vperm.slane %v43, 0
    %3901 = vmatpush.msra.mxu0 %v42
    %3902 = vmatpush.msra.mxu0 %v41
    %3903 = vmatpush.msra.mxu0 %v40
    %3904 = vmatpush.msra.mxu0 %v39
    %3905 = vmatpush.msra.mxu0 %v38
    %3906 = vmatpush.msra.mxu0 %v37
    %3907 = vmatpush.msra.mxu0 %v36
    %3908 = vmatpush.msra.mxu0 %v35
    %3909 = vmatpush.msra.mxu0 %v34
    %3910 = vmatpush.msra.mxu0 %v33
    %3911 = vmatpush.msra.mxu0 %v32
    %3912 = vmatpush.msra.mxu0 %v31
    %3913 = vmatpush.msra.mxu0 %v30
    %3914 = vmatpush.msra.mxu0 %v29
    %3915 = vmatpush.msra.mxu0 %v28
    %3916 = vmatpush.msra.mxu0 %v27
    %3917 = vmatmul.f32.gmra.mxu0 %v3899
    %v3918 = vpop.f32.mrf.mxu0
    %v3919 = vadd.f32 %v3900, %v3918
    %3920 = vdwg.mxu0
    %v3922 = vrot.slane %v3919, 6
    %v3924 = vsel %vm3876, %v3919, %v3922
    %v3925 = vrot.slane %v3919, 2
    %vm3927 = vcmask 64512
    %v3928 = vsel %vm3927, %v3924, %v3925
    %v3929 = vperm.slane %v46, 0
    %vm3930 = vcmask 130048
    %v3932 = vsel %vm3930, %v3928, 0
    %3934 = vmatpush.msra.mxu0 0.0
    %3935 = vmatpush.msra.mxu0 0.0
    %3936 = vmatpush.msra.mxu0 0.0
    %3937 = vmatpush.msra.mxu0 0.0
    %3938 = vmatpush.msra.mxu0 0.0
    %3939 = vmatpush.msra.mxu0 0.0
    %3940 = vmatpush.msra.mxu0 0.0
    %3941 = vmatpush.msra.mxu0 0.0
    %3942 = vmatpush.msra.mxu0 0.0
    %3943 = vmatpush.msra.mxu0 0.0
    %3944 = vmatpush.msra.mxu0 0.0
    %3945 = vmatpush.msra.mxu0 0.0
    %3946 = vmatpush.msra.mxu0 0.0
    %3947 = vmatpush.msra.mxu0 0.0
    %3948 = vmatpush.msra.mxu0 %v45
    %3949 = vmatpush.msra.mxu0 %v44
    %3950 = vmatmul.f32.gmra.mxu0 %v3932
    %v3951 = vpop.f32.mrf.mxu0
    %v3952 = vadd.f32 %v3929, %v3951
    %3953 = vdwg.mxu0
    %v3954 = vmax.f32 %v3952, 0.0
    %v3955 = vperm.slane %v26, 0
    %v3957 = vsel %vm3927, %v3954, 0
    %3959 = vmatpush.msra.mxu0 0.0
    %3960 = vmatpush.msra.mxu0 0.0
    %3961 = vmatpush.msra.mxu0 0.0
    %3962 = vmatpush.msra.mxu0 0.0
    %3963 = vmatpush.msra.mxu0 0.0
    %3964 = vmatpush.msra.mxu0 0.0
    %3965 = vmatpush.msra.mxu0 0.0
    %3966 = vmatpush.msra.mxu0 0.0
    %3967 = vmatpush.msra.mxu0 0.0
    %3968 = vmatpush.msra.mxu0 0.0
    %3969 = vmatpush.msra.mxu0 0.0
    %3970 = vmatpush.msra.mxu0 0.0
    %3971 = vmatpush.msra.mxu0 0.0
    %3972 = vmatpush.msra.mxu0 0.0
    %3973 = vmatpush.msra.mxu0 0.0
    %3974 = vmatpush.msra.mxu0 %v25
    %3975 = vmatmul.f32.gmra.mxu0 %v3957
    %v3976 = vpop.f32.mrf.mxu0
    %v3977 = vadd.f32 %v3955, %v3976
    %3978 = vdwg.mxu0
    %v3979 = vxor.u32 %v3977, 2147483648
    %v3980 = vmul.f32 %v3979, 1.442695
    %v3981 = vpow.pop %v3980
    %v3982 = vadd.f32 %v3981, 1.0
    %v3983 = vrcp.pop %v3982
    %v3984 = vmul.f32 %v3982, %v3983
    %v3985 = vsub.f32 1.0, %v3984
    %v3986 = vmul.f32 %v3983, %v3985
    %v3987 = vadd.f32 %v3983, %v3986
    %vm3988 = vweird.f32 %v3982
    %vm3989 = vweird.f32 %v3983
    %vm3990 = vmor %vm3988, %vm3989
    %v3991 = vsel %vm3990, %v3983, %v3987
    %v3992 = vand.u32 2147483647, %v3982
    %vm3993 = vcmp.eq.f32.partialorder %v3992, 8.507059e+37
    %v3994 = vand.u32 %v3982, 2147483648
    %v3995 = vor.u32 1.1754944e-38, %v3994
    %v3996 = vsel %vm3993, %v3995, %v3991
    %v3997 = vmul.f32 1.0, %v3996
    %3998 = vst [vmem:[#allocation2] sm:$0xf] %v3997
    // Predicated region
    $region22: #{tpu_custom_call.1} parent=1 // pred_check
      _
    $region23: #{tpu_custom_call.1} parent=1 // pred_check_branch
      %4000 = sbr.rel (0) target = $region25
    $region24: #{tpu_custom_call.1} parent=1 // pred_region
      %4002 = vsyncadd [#allocation3], 0
      %s4004 = sshll.u32 [#allocation2], 4
      %s4005 = int_to_ptr.vmem [resolvable:$true] %s4004
      %s4006 = sshll.u32 %s5, 4
      %s4007 = int_to_ptr.hbm [resolvable:$true] %s4006
      %4009 = dma.vmem_to_hbm [thread:$0]  %s4005, 64, %s4007, [#allocation3]
    $region25: #{tpu_custom_call.1} parent=1 // pred_fallthru
      _
    // Predicated region
    $region26: #{tpu_custom_call.1} parent=1 // pred_check
      _
    $region27: #{tpu_custom_call.1} parent=1 // pred_check_branch
      %4011 = sbr.rel (0) target = $region29
    $region28: #{tpu_custom_call.1} parent=1 // pred_region
      %4013 = dma.done [#allocation3], 64
    $region29: #{tpu_custom_call.1} parent=1 // pred_fallthru
      _
    %4014 = vsyncpa [#allocation3], 1

</llo_original>
